<compile_context>
chip_gen: v7x
topology: tpu7x:2x2x1
jax: 0.10.0
libtpu: 0.0.40
codegen_flags: <defaults>
</compile_context>

<pallas_src>
import jax
import jax.numpy as jnp
from jax import lax
from jax.experimental import pallas as pl
from jax.experimental.pallas import tpu as pltpu


def _round_up(x, m):
    return (x + m - 1) // m * m


def _pad_k(k):
    # Pad a small K up to a full 128-lane vreg; otherwise keep 8-sublane alignment.
    return _round_up(k, 128) if k <= 128 else _round_up(k, 8)


# ---------------------------------------------------------------------------
# Pallas kernels
# ---------------------------------------------------------------------------
def _conv_bn_relu_pool_kernel(x_ref, w_ref, shift_ref, o_ref):
    """Fused conv-as-matmul + folded-BN shift + ReLU + 2x2 maxpool.

    x_ref:     (4, tmo, K) bf16  -- the four pool taps of tmo pooled pixels (im2col rows)
    w_ref:     (K, Cout)   bf16  -- conv weights with BN scale folded in
    shift_ref: (1, Cout)   f32   -- folded BN shift + conv bias
    o_ref:     (tmo, Cout)       -- pooled activations
    """
    w = w_ref[...]
    y0 = jnp.dot(x_ref[0], w, preferred_element_type=jnp.float32)
    y1 = jnp.dot(x_ref[1], w, preferred_element_type=jnp.float32)
    y2 = jnp.dot(x_ref[2], w, preferred_element_type=jnp.float32)
    y3 = jnp.dot(x_ref[3], w, preferred_element_type=jnp.float32)
    # max_i relu(y_i + shift) == relu(max_i(y_i) + shift): shift is constant per channel.
    y = jnp.maximum(jnp.maximum(y0, y1), jnp.maximum(y2, y3))
    y = jnp.maximum(y + shift_ref[...], 0.0)
    o_ref[...] = y.astype(o_ref.dtype)


def conv_bn_relu_pool(x4, w, shift, *, tmo=512, out_dtype=jnp.bfloat16):
    """x4: (4, M, K) tap-major im2col rows.  Returns pooled activations (M, Cout)."""
    _, M, K = x4.shape
    Cout = w.shape[1]
    tmo = min(tmo, _round_up(M, 8))          # fixed tile, 8-sublane aligned
    Mp = _round_up(M, tmo)                   # padded cdiv grid; never a whole-M block
    if Mp != M:
        x4 = jnp.pad(x4, ((0, 0), (0, Mp - M), (0, 0)))
    out = pl.pallas_call(
        _conv_bn_relu_pool_kernel,
        out_shape=jax.ShapeDtypeStruct((Mp, Cout), out_dtype),
        grid=(Mp // tmo,),
        in_specs=[
            pl.BlockSpec((4, tmo, K), lambda i: (0, i, 0)),
            pl.BlockSpec((K, Cout), lambda i: (0, 0)),
            pl.BlockSpec((1, Cout), lambda i: (0, 0)),
        ],
        out_specs=pl.BlockSpec((tmo, Cout), lambda i: (i, 0)),
        compiler_params=pltpu.CompilerParams(dimension_semantics=("parallel",)),
    )(x4, w, shift)
    return out[:M]


def _mlp_head_kernel(x_ref, w1_ref, b1_ref, w2_ref, b2_ref, o_ref):
    """Fused fc1 + ReLU + fc2; batch and both weight matrices are VMEM-resident."""
    h = jnp.dot(x_ref[...], w1_ref[...], preferred_element_type=jnp.float32)
    h = jnp.maximum(h + b1_ref[...], 0.0)
    o = jnp.dot(h.astype(w2_ref.dtype), w2_ref[...], preferred_element_type=jnp.float32)
    o_ref[...] = (o + b2_ref[...]).astype(o_ref.dtype)


def mlp_head(x, w1, b1, w2, b2):
    B = x.shape[0]
    C = w2.shape[1]
    return pl.pallas_call(
        _mlp_head_kernel,
        out_shape=jax.ShapeDtypeStruct((B, C), jnp.float32),
        in_specs=[pl.BlockSpec(memory_space=pltpu.MemorySpace.VMEM)] * 5,
        out_specs=pl.BlockSpec(memory_space=pltpu.MemorySpace.VMEM),
    )(x, w1, b1, w2, b2)


# ---------------------------------------------------------------------------
# Glue (patch extraction, parameter folding) in plain JAX
# ---------------------------------------------------------------------------
def im2col_pooled(x, k=5, pad=2):
    """NHWC bf16 -> (4, N*Ho*Wo, Kpad) tap-major im2col rows for a 5x5/pad-2 conv
    followed by a 2x2/stride-2 maxpool.  Tap t = 2*di+dj holds the conv output
    pixel (2*ho+di, 2*wo+dj).  K ordered (kh, kw, c); zero-padded to Kpad."""
    N, H, W, C = x.shape
    Ho, Wo = H // 2, W // 2
    K = k * k * C
    Kp = _pad_k(K)
    xp = jnp.pad(x, ((0, 0), (pad, pad), (pad, pad), (0, 0)))
    taps = []
    for di in (0, 1):
        for dj in (0, 1):
            cols = [xp[:, di + kh: di + kh + 2 * (Ho - 1) + 1: 2,
                       dj + kw: dj + kw + 2 * (Wo - 1) + 1: 2, :]
                    for kh in range(k) for kw in range(k)]
            if Kp != K:
                cols.append(jnp.zeros((N, Ho, Wo, Kp - K), x.dtype))
            taps.append(jnp.concatenate(cols, axis=-1).reshape(1, N * Ho * Wo, Kp))
    return jnp.concatenate(taps, axis=0)


def init_params(key, in_channels, h, w, hidden, class_num):
    ks = jax.random.split(key, 16)
    p = {}
    p['conv1_w'] = 0.10 * jax.random.normal(ks[0], (32, in_channels, 5, 5), jnp.float32)  # OIHW
    p['conv1_b'] = 0.10 * jax.random.normal(ks[1], (32,), jnp.float32)
    p['conv2_w'] = 0.05 * jax.random.normal(ks[2], (64, 32, 5, 5), jnp.float32)
    p['conv2_b'] = 0.10 * jax.random.normal(ks[3], (64,), jnp.float32)
    p['bn1_gamma'] = 1.0 + 0.1 * jax.random.normal(ks[4], (32,), jnp.float32)
    p['bn1_beta'] = 0.1 * jax.random.normal(ks[5], (32,), jnp.float32)
    p['bn1_mean'] = 0.1 * jax.random.normal(ks[6], (32,), jnp.float32)
    p['bn1_var'] = 0.5 + jnp.abs(jax.random.normal(ks[7], (32,), jnp.float32))
    p['bn2_gamma'] = 1.0 + 0.1 * jax.random.normal(ks[8], (64,), jnp.float32)
    p['bn2_beta'] = 0.1 * jax.random.normal(ks[9], (64,), jnp.float32)
    p['bn2_mean'] = 0.1 * jax.random.normal(ks[10], (64,), jnp.float32)
    p['bn2_var'] = 0.5 + jnp.abs(jax.random.normal(ks[11], (64,), jnp.float32))
    fc1_in = (h // 2 // 2) * (w // 2 // 2) * 64
    p['fc1_w'] = 0.03 * jax.random.normal(ks[12], (hidden, fc1_in), jnp.float32)   # (out, in)
    p['fc1_b'] = 0.10 * jax.random.normal(ks[13], (hidden,), jnp.float32)
    p['fc2_w'] = 0.10 * jax.random.normal(ks[14], (class_num, hidden), jnp.float32)
    p['fc2_b'] = 0.10 * jax.random.normal(ks[15], (class_num,), jnp.float32)
    return p


def fold_params(p, h, w, eps=1e-5):
    """Fold BN scale into bf16 weight matrices, keep only the per-channel shift;
    zero-pad conv1's K to 128; permute fc1 rows to NHWC-flatten order."""
    def conv_mat(w_oihw, scale):
        o = w_oihw.shape[0]
        # OIHW -> (kh, kw, cin, cout) -> (k*k*cin, cout); matches im2col K ordering.
        m = jnp.transpose(w_oihw, (2, 3, 1, 0)).reshape(-1, o) * scale[None, :]
        k = m.shape[0]
        kp = _pad_k(k)
        if kp != k:
            m = jnp.pad(m, ((0, kp - k), (0, 0)))
        return m.astype(jnp.bfloat16)

    q = {}
    s1 = p['bn1_gamma'] / jnp.sqrt(p['bn1_var'] + eps)
    sh1 = p['bn1_beta'] + (p['conv1_b'] - p['bn1_mean']) * s1
    s2 = p['bn2_gamma'] / jnp.sqrt(p['bn2_var'] + eps)
    sh2 = p['bn2_beta'] + (p['conv2_b'] - p['bn2_mean']) * s2
    q['w1'] = conv_mat(p['conv1_w'], s1)
    q['shift1'] = sh1[None, :].astype(jnp.float32)
    q['w2'] = conv_mat(p['conv2_w'], s2)
    q['shift2'] = sh2[None, :].astype(jnp.float32)

    hidden, fc1_in = p['fc1_w'].shape
    hp, wp = h // 4, w // 4
    c2 = p['conv2_w'].shape[0]
    # torch flatten is NCHW-ordered; permute fc1 weight rows to NHWC order so the
    # pooled NHWC activations can be fed without a runtime transpose.
    w_fc1 = jnp.transpose(p['fc1_w'].reshape(hidden, c2, hp, wp), (2, 3, 1, 0))
    q['fc1_w'] = w_fc1.reshape(fc1_in, hidden).astype(jnp.bfloat16)
    q['fc1_b'] = p['fc1_b'][None, :].astype(jnp.float32)
    q['fc2_w'] = p['fc2_w'].T.astype(jnp.bfloat16)
    q['fc2_b'] = p['fc2_b'][None, :].astype(jnp.float32)
    return q


def convnet_forward(x_nchw, q):
    # layout: input NCHW (PyTorch) -> NHWC bf16 for the fused conv/pool kernels;
    # flatten stays NHWC because fc1 weights were permuted at fold time.
    N, Cin, H, W = x_nchw.shape
    x = jnp.transpose(x_nchw, (0, 2, 3, 1)).astype(jnp.bfloat16)          # NHWC

    p1 = conv_bn_relu_pool(im2col_pooled(x), q['w1'], q['shift1'])        # (N*H/2*W/2, 32)
    p1 = p1.reshape(N, H // 2, W // 2, q['w1'].shape[1])

    p2 = conv_bn_relu_pool(im2col_pooled(p1), q['w2'], q['shift2'])       # (N*H/4*W/4, 64)
    flat = p2.reshape(N, -1)                                              # NHWC flatten

    return mlp_head(flat, q['fc1_w'], q['fc1_b'], q['fc2_w'], q['fc2_b'])


# ---------------------------------------------------------------------------
# Pure-JAX f32 reference (correctness check for the Pallas path)
# ---------------------------------------------------------------------------
def reference_forward(x_nchw, p, eps=1e-5):
    def conv(x, w, b):
        y = lax.conv_general_dilated(x, w, (1, 1), ((2, 2), (2, 2)),
                                     dimension_numbers=('NCHW', 'OIHW', 'NCHW'))
        return y + b[None, :, None, None]

    def bn(x, g, b, m, v):
        s = (g / jnp.sqrt(v + eps))[None, :, None, None]
        return (x - m[None, :, None, None]) * s + b[None, :, None, None]

    def pool(x):
        N, C, H, W = x.shape
        return jnp.max(x.reshape(N, C, H // 2, 2, W // 2, 2), axis=(3, 5))

    x = x_nchw.astype(jnp.float32)
    x = bn(conv(x, p['conv1_w'], p['conv1_b']),
           p['bn1_gamma'], p['bn1_beta'], p['bn1_mean'], p['bn1_var'])
    x = pool(jax.nn.relu(x))
    x = bn(conv(x, p['conv2_w'], p['conv2_b']),
           p['bn2_gamma'], p['bn2_beta'], p['bn2_mean'], p['bn2_var'])
    x = pool(jax.nn.relu(x))
    x = x.reshape(x.shape[0], -1)
    x = jax.nn.relu(x @ p['fc1_w'].T + p['fc1_b'])
    return x @ p['fc2_w'].T + p['fc2_b']


if __name__ == "__main__":
    key = jax.random.PRNGKey(0)
    N, Cin, H, W = 2, 4, 16, 16          # small shapes consistent with the module
    hidden, class_num = 32, 10
    kx, kp = jax.random.split(key)
    x = jax.random.normal(kx, (N, Cin, H, W), jnp.float32)

    params = init_params(kp, Cin, H, W, hidden, class_num)
    folded = fold_params(params, H, W)

    out = jax.jit(convnet_forward)(x, folded)
    out = jax.block_until_ready(out)

    ref = reference_forward(x, params)
    assert out.shape == (N, class_num), out.shape
    assert bool(jnp.all(jnp.isfinite(out)))
    # bf16 matmul operands (f32 accumulation) vs. an all-f32 reference => loose tolerance.
    assert bool(jnp.allclose(out, ref, atol=1e-1, rtol=1e-1)), \
        float(jnp.max(jnp.abs(out - ref)))
    print("KERNEL_OK")
</pallas_src>

<mosaic_0001>
module attributes {stable_mosaic.version = 11 : i64} {
  func.func @_conv_bn_relu_pool_kernel(%arg0: i32, %arg1: memref<4x128x128xbf16, #tpu.memory_space<vmem>>, %arg2: memref<128x32xbf16, #tpu.memory_space<vmem>>, %arg3: memref<1x32xf32, #tpu.memory_space<vmem>>, %arg4: memref<128x32xbf16, #tpu.memory_space<vmem>>) attributes {dimension_semantics = [#tpu.dimension_semantics<parallel>], iteration_bounds = array<i64: 1>, scalar_prefetch = 0 : i64, scratch_operands = 0 : i64, tpu.core_type = #tpu.core_type<tc>, window_params = [{transform_indices = @transform_0, window_bounds = array<i64: 4, 128, 128>}, {pipeline_mode = #tpu.pipeline_mode<synchronous>, transform_indices = @transform_1, window_bounds = array<i64: 128, 32>}, {pipeline_mode = #tpu.pipeline_mode<synchronous>, transform_indices = @transform_2, window_bounds = array<i64: 1, 32>}, {transform_indices = @transform_3, window_bounds = array<i64: 128, 32>}]} {
    %c0 = arith.constant 0 : index
    %c0_0 = arith.constant 0 : index
    %0 = vector.load %arg2[%c0, %c0_0] : memref<128x32xbf16, #tpu.memory_space<vmem>>, vector<128x32xbf16>
    %c0_1 = arith.constant 0 : index
    %c0_2 = arith.constant 0 : index
    %c0_3 = arith.constant 0 : index
    %1 = vector.load %arg1[%c0_1, %c0_2, %c0_3] : memref<4x128x128xbf16, #tpu.memory_space<vmem>>, vector<1x128x128xbf16>
    %2 = vector.shape_cast %1 : vector<1x128x128xbf16> to vector<128x128xbf16>
    %cst = arith.constant dense<0.000000e+00> : vector<128x32xf32>
    %3 = tpu.matmul %2, %0, %cst {dimension_numbers = #tpu.dot_dimension_numbers<[1], [0], [0], [1], [0, 0, 1, 1], [], []>} : vector<128x128xbf16>, vector<128x32xbf16>, vector<128x32xf32> -> vector<128x32xf32>
    %c1 = arith.constant 1 : index
    %c0_4 = arith.constant 0 : index
    %c0_5 = arith.constant 0 : index
    %4 = vector.load %arg1[%c1, %c0_4, %c0_5] : memref<4x128x128xbf16, #tpu.memory_space<vmem>>, vector<1x128x128xbf16>
    %5 = vector.shape_cast %4 : vector<1x128x128xbf16> to vector<128x128xbf16>
    %cst_6 = arith.constant dense<0.000000e+00> : vector<128x32xf32>
    %6 = tpu.matmul %5, %0, %cst_6 {dimension_numbers = #tpu.dot_dimension_numbers<[1], [0], [0], [1], [0, 0, 1, 1], [], []>} : vector<128x128xbf16>, vector<128x32xbf16>, vector<128x32xf32> -> vector<128x32xf32>
    %c2 = arith.constant 2 : index
    %c0_7 = arith.constant 0 : index
    %c0_8 = arith.constant 0 : index
    %7 = vector.load %arg1[%c2, %c0_7, %c0_8] : memref<4x128x128xbf16, #tpu.memory_space<vmem>>, vector<1x128x128xbf16>
    %8 = vector.shape_cast %7 : vector<1x128x128xbf16> to vector<128x128xbf16>
    %cst_9 = arith.constant dense<0.000000e+00> : vector<128x32xf32>
    %9 = tpu.matmul %8, %0, %cst_9 {dimension_numbers = #tpu.dot_dimension_numbers<[1], [0], [0], [1], [0, 0, 1, 1], [], []>} : vector<128x128xbf16>, vector<128x32xbf16>, vector<128x32xf32> -> vector<128x32xf32>
    %c3 = arith.constant 3 : index
    %c0_10 = arith.constant 0 : index
    %c0_11 = arith.constant 0 : index
    %10 = vector.load %arg1[%c3, %c0_10, %c0_11] : memref<4x128x128xbf16, #tpu.memory_space<vmem>>, vector<1x128x128xbf16>
    %11 = vector.shape_cast %10 : vector<1x128x128xbf16> to vector<128x128xbf16>
    %cst_12 = arith.constant dense<0.000000e+00> : vector<128x32xf32>
    %12 = tpu.matmul %11, %0, %cst_12 {dimension_numbers = #tpu.dot_dimension_numbers<[1], [0], [0], [1], [0, 0, 1, 1], [], []>} : vector<128x128xbf16>, vector<128x32xbf16>, vector<128x32xf32> -> vector<128x32xf32>
    %13 = arith.maximumf %3, %6 : vector<128x32xf32>
    %14 = arith.maximumf %9, %12 : vector<128x32xf32>
    %15 = arith.maximumf %13, %14 : vector<128x32xf32>
    %c0_13 = arith.constant 0 : index
    %c0_14 = arith.constant 0 : index
    %16 = vector.load %arg3[%c0_13, %c0_14] : memref<1x32xf32, #tpu.memory_space<vmem>>, vector<1x32xf32>
    %17 = vector.broadcast %16 : vector<1x32xf32> to vector<128x32xf32>
    %18 = arith.addf %15, %17 : vector<128x32xf32>
    %cst_15 = arith.constant 0.000000e+00 : f32
    %19 = vector.broadcast %cst_15 : f32 to vector<128x32xf32>
    %20 = arith.maximumf %18, %19 : vector<128x32xf32>
    %21 = arith.truncf %20 : vector<128x32xf32> to vector<128x32xbf16>
    %c0_16 = arith.constant 0 : index
    %c0_17 = arith.constant 0 : index
    %22 = vector.load %arg4[%c0_16, %c0_17] : memref<128x32xbf16, #tpu.memory_space<vmem>>, vector<128x32xbf16>
    tpu.vector_store %arg4[%c0_16, %c0_17], %21 {strides = array<i32>} : memref<128x32xbf16, #tpu.memory_space<vmem>>, vector<128x32xbf16>,
    return
  }
  func.func @transform_0(%arg0: i32) -> (i32, i32, i32) {
    %c0_i32 = arith.constant 0 : i32
    %c0_i32_0 = arith.constant 0 : i32
    %c0_i32_1 = arith.constant 0 : i32
    return %c0_i32, %arg0, %c0_i32_0 : i32, i32, i32
  }
  func.func @transform_1(%arg0: i32) -> (i32, i32) {
    %c0_i32 = arith.constant 0 : i32
    %c0_i32_0 = arith.constant 0 : i32
    %c0_i32_1 = arith.constant 0 : i32
    return %c0_i32, %c0_i32_0 : i32, i32
  }
  func.func @transform_2(%arg0: i32) -> (i32, i32) {
    %c0_i32 = arith.constant 0 : i32
    %c0_i32_0 = arith.constant 0 : i32
    %c0_i32_1 = arith.constant 0 : i32
    return %c0_i32, %c0_i32_0 : i32, i32
  }
  func.func @transform_3(%arg0: i32) -> (i32, i32) {
    %c0_i32 = arith.constant 0 : i32
    %c0_i32_0 = arith.constant 0 : i32
    return %arg0, %c0_i32 : i32, i32
  }
}

module attributes {stable_mosaic.version = 11 : i64} {
  func.func @_conv_bn_relu_pool_kernel(%arg0: i32, %arg1: memref<4x32x800xbf16, #tpu.memory_space<vmem>>, %arg2: memref<800x64xbf16, #tpu.memory_space<vmem>>, %arg3: memref<1x64xf32, #tpu.memory_space<vmem>>, %arg4: memref<32x64xbf16, #tpu.memory_space<vmem>>) attributes {dimension_semantics = [#tpu.dimension_semantics<parallel>], iteration_bounds = array<i64: 1>, scalar_prefetch = 0 : i64, scratch_operands = 0 : i64, tpu.core_type = #tpu.core_type<tc>, window_params = [{transform_indices = @transform_0, window_bounds = array<i64: 4, 32, 800>}, {pipeline_mode = #tpu.pipeline_mode<synchronous>, transform_indices = @transform_1, window_bounds = array<i64: 800, 64>}, {pipeline_mode = #tpu.pipeline_mode<synchronous>, transform_indices = @transform_2, window_bounds = array<i64: 1, 64>}, {transform_indices = @transform_3, window_bounds = array<i64: 32, 64>}]} {
    %c0 = arith.constant 0 : index
    %c0_0 = arith.constant 0 : index
    %0 = vector.load %arg2[%c0, %c0_0] : memref<800x64xbf16, #tpu.memory_space<vmem>>, vector<800x64xbf16>
    %c0_1 = arith.constant 0 : index
    %c0_2 = arith.constant 0 : index
    %c0_3 = arith.constant 0 : index
    %1 = vector.load %arg1[%c0_1, %c0_2, %c0_3] : memref<4x32x800xbf16, #tpu.memory_space<vmem>>, vector<1x32x800xbf16>
    %2 = vector.shape_cast %1 : vector<1x32x800xbf16> to vector<32x800xbf16>
    %cst = arith.constant dense<0.000000e+00> : vector<32x64xf32>
    %3 = tpu.matmul %2, %0, %cst {dimension_numbers = #tpu.dot_dimension_numbers<[1], [0], [0], [1], [0, 0, 1, 1], [], []>} : vector<32x800xbf16>, vector<800x64xbf16>, vector<32x64xf32> -> vector<32x64xf32>
    %c1 = arith.constant 1 : index
    %c0_4 = arith.constant 0 : index
    %c0_5 = arith.constant 0 : index
    %4 = vector.load %arg1[%c1, %c0_4, %c0_5] : memref<4x32x800xbf16, #tpu.memory_space<vmem>>, vector<1x32x800xbf16>
    %5 = vector.shape_cast %4 : vector<1x32x800xbf16> to vector<32x800xbf16>
    %cst_6 = arith.constant dense<0.000000e+00> : vector<32x64xf32>
    %6 = tpu.matmul %5, %0, %cst_6 {dimension_numbers = #tpu.dot_dimension_numbers<[1], [0], [0], [1], [0, 0, 1, 1], [], []>} : vector<32x800xbf16>, vector<800x64xbf16>, vector<32x64xf32> -> vector<32x64xf32>
    %c2 = arith.constant 2 : index
    %c0_7 = arith.constant 0 : index
    %c0_8 = arith.constant 0 : index
    %7 = vector.load %arg1[%c2, %c0_7, %c0_8] : memref<4x32x800xbf16, #tpu.memory_space<vmem>>, vector<1x32x800xbf16>
    %8 = vector.shape_cast %7 : vector<1x32x800xbf16> to vector<32x800xbf16>
    %cst_9 = arith.constant dense<0.000000e+00> : vector<32x64xf32>
    %9 = tpu.matmul %8, %0, %cst_9 {dimension_numbers = #tpu.dot_dimension_numbers<[1], [0], [0], [1], [0, 0, 1, 1], [], []>} : vector<32x800xbf16>, vector<800x64xbf16>, vector<32x64xf32> -> vector<32x64xf32>
    %c3 = arith.constant 3 : index
    %c0_10 = arith.constant 0 : index
    %c0_11 = arith.constant 0 : index
    %10 = vector.load %arg1[%c3, %c0_10, %c0_11] : memref<4x32x800xbf16, #tpu.memory_space<vmem>>, vector<1x32x800xbf16>
    %11 = vector.shape_cast %10 : vector<1x32x800xbf16> to vector<32x800xbf16>
    %cst_12 = arith.constant dense<0.000000e+00> : vector<32x64xf32>
    %12 = tpu.matmul %11, %0, %cst_12 {dimension_numbers = #tpu.dot_dimension_numbers<[1], [0], [0], [1], [0, 0, 1, 1], [], []>} : vector<32x800xbf16>, vector<800x64xbf16>, vector<32x64xf32> -> vector<32x64xf32>
    %13 = arith.maximumf %3, %6 : vector<32x64xf32>
    %14 = arith.maximumf %9, %12 : vector<32x64xf32>
    %15 = arith.maximumf %13, %14 : vector<32x64xf32>
    %c0_13 = arith.constant 0 : index
    %c0_14 = arith.constant 0 : index
    %16 = vector.load %arg3[%c0_13, %c0_14] : memref<1x64xf32, #tpu.memory_space<vmem>>, vector<1x64xf32>
    %17 = vector.broadcast %16 : vector<1x64xf32> to vector<32x64xf32>
    %18 = arith.addf %15, %17 : vector<32x64xf32>
    %cst_15 = arith.constant 0.000000e+00 : f32
    %19 = vector.broadcast %cst_15 : f32 to vector<32x64xf32>
    %20 = arith.maximumf %18, %19 : vector<32x64xf32>
    %21 = arith.truncf %20 : vector<32x64xf32> to vector<32x64xbf16>
    %c0_16 = arith.constant 0 : index
    %c0_17 = arith.constant 0 : index
    %22 = vector.load %arg4[%c0_16, %c0_17] : memref<32x64xbf16, #tpu.memory_space<vmem>>, vector<32x64xbf16>
    tpu.vector_store %arg4[%c0_16, %c0_17], %21 {strides = array<i32>} : memref<32x64xbf16, #tpu.memory_space<vmem>>, vector<32x64xbf16>,
    return
  }
  func.func @transform_0(%arg0: i32) -> (i32, i32, i32) {
    %c0_i32 = arith.constant 0 : i32
    %c0_i32_0 = arith.constant 0 : i32
    %c0_i32_1 = arith.constant 0 : i32
    return %c0_i32, %arg0, %c0_i32_0 : i32, i32, i32
  }
  func.func @transform_1(%arg0: i32) -> (i32, i32) {
    %c0_i32 = arith.constant 0 : i32
    %c0_i32_0 = arith.constant 0 : i32
    %c0_i32_1 = arith.constant 0 : i32
    return %c0_i32, %c0_i32_0 : i32, i32
  }
  func.func @transform_2(%arg0: i32) -> (i32, i32) {
    %c0_i32 = arith.constant 0 : i32
    %c0_i32_0 = arith.constant 0 : i32
    %c0_i32_1 = arith.constant 0 : i32
    return %c0_i32, %c0_i32_0 : i32, i32
  }
  func.func @transform_3(%arg0: i32) -> (i32, i32) {
    %c0_i32 = arith.constant 0 : i32
    %c0_i32_0 = arith.constant 0 : i32
    return %arg0, %c0_i32 : i32, i32
  }
}

module attributes {stable_mosaic.version = 11 : i64} {
  func.func @_mlp_head_kernel(%arg0: memref<2x1024xbf16, #tpu.memory_space<vmem>>, %arg1: memref<1024x32xbf16, #tpu.memory_space<vmem>>, %arg2: memref<1x32xf32, #tpu.memory_space<vmem>>, %arg3: memref<32x10xbf16, #tpu.memory_space<vmem>>, %arg4: memref<1x10xf32, #tpu.memory_space<vmem>>, %arg5: memref<2x10xf32, #tpu.memory_space<vmem>>) attributes {dimension_semantics = [], scalar_prefetch = 0 : i64, scratch_operands = 0 : i64, tpu.core_type = #tpu.core_type<tc>} {
    %c0 = arith.constant 0 : index
    %c0_0 = arith.constant 0 : index
    %0 = vector.load %arg0[%c0, %c0_0] : memref<2x1024xbf16, #tpu.memory_space<vmem>>, vector<2x1024xbf16>
    %c0_1 = arith.constant 0 : index
    %c0_2 = arith.constant 0 : index
    %1 = vector.load %arg1[%c0_1, %c0_2] : memref<1024x32xbf16, #tpu.memory_space<vmem>>, vector<1024x32xbf16>
    %cst = arith.constant dense<0.000000e+00> : vector<2x32xf32>
    %2 = tpu.matmul %0, %1, %cst {dimension_numbers = #tpu.dot_dimension_numbers<[1], [0], [0], [1], [0, 0, 1, 1], [], []>} : vector<2x1024xbf16>, vector<1024x32xbf16>, vector<2x32xf32> -> vector<2x32xf32>
    %c0_3 = arith.constant 0 : index
    %c0_4 = arith.constant 0 : index
    %3 = vector.load %arg2[%c0_3, %c0_4] : memref<1x32xf32, #tpu.memory_space<vmem>>, vector<1x32xf32>
    %4 = vector.broadcast %3 : vector<1x32xf32> to vector<2x32xf32>
    %5 = arith.addf %2, %4 : vector<2x32xf32>
    %cst_5 = arith.constant 0.000000e+00 : f32
    %6 = vector.broadcast %cst_5 : f32 to vector<2x32xf32>
    %7 = arith.maximumf %5, %6 : vector<2x32xf32>
    %8 = arith.truncf %7 : vector<2x32xf32> to vector<2x32xbf16>
    %c0_6 = arith.constant 0 : index
    %c0_7 = arith.constant 0 : index
    %9 = vector.load %arg3[%c0_6, %c0_7] : memref<32x10xbf16, #tpu.memory_space<vmem>>, vector<32x10xbf16>
    %cst_8 = arith.constant dense<0.000000e+00> : vector<2x10xf32>
    %10 = tpu.matmul %8, %9, %cst_8 {dimension_numbers = #tpu.dot_dimension_numbers<[1], [0], [0], [1], [0, 0, 1, 1], [], []>} : vector<2x32xbf16>, vector<32x10xbf16>, vector<2x10xf32> -> vector<2x10xf32>
    %c0_9 = arith.constant 0 : index
    %c0_10 = arith.constant 0 : index
    %11 = vector.load %arg4[%c0_9, %c0_10] : memref<1x10xf32, #tpu.memory_space<vmem>>, vector<1x10xf32>
    %12 = vector.broadcast %11 : vector<1x10xf32> to vector<2x10xf32>
    %13 = arith.addf %10, %12 : vector<2x10xf32>
    %c0_11 = arith.constant 0 : index
    %c0_12 = arith.constant 0 : index
    %14 = vector.load %arg5[%c0_11, %c0_12] : memref<2x10xf32, #tpu.memory_space<vmem>>, vector<2x10xf32>
    tpu.vector_store %arg5[%c0_11, %c0_12], %13 {strides = array<i32>} : memref<2x10xf32, #tpu.memory_space<vmem>>, vector<2x10xf32>,
    return
  }
}

</mosaic_0001>

<llo_original>
// kernel: convnet_forward.3
$region0: #{convnet_forward.3}
  #allocation0 [shape = 'u32[]', space=smem, size = 0x4, offset = 0x4, fixed_abs, tag = 'smem constant byte address 0x4 - core index']
  #allocation1 [shape = 'u32[144,128]{1,0:T(1,128)}', space=vmem, size = 0x12000, scoped, tag = 'internal scratch']
  %s0 = inlined_call_operand.vmem [shape: bf16[4,128,128], index: 0, kind: input, shape index: {}]
  %s1 = inlined_call_operand.vmem [shape: bf16[128,32], index: 1, kind: input, shape index: {}]
  %s2 = inlined_call_operand.vmem [shape: f32[1,32], index: 2, kind: input, shape index: {}]
  %s3 = inlined_call_operand.vmem [shape: bf16[128,32], index: 3, kind: output, shape index: {}]
  %s4 = sld [smem:[#allocation0]]
  $region22: #{convnet_forward.3} parent=0
    _
  %s6 = ssub.s32 1, %s4
  %s7 = scalar_select 0, %s6, %s4
  // Predicated region
  $region2: #{convnet_forward.3} parent=0 // pred_check
    _
  $region3: #{convnet_forward.3} parent=0 // pred_check_branch
    %9 = sbr.rel (0) target = $region5
  $region4: #{convnet_forward.3} parent=0 // pred_region
    _
  $region5: #{convnet_forward.3} parent=0 // pred_fallthru
    _
  // Predicated region
  $region6: #{convnet_forward.3} parent=0 // pred_check
    _
  $region7: #{convnet_forward.3} parent=0 // pred_check_branch
    %11 = sbr.rel (0) target = $region9
  $region8: #{convnet_forward.3} parent=0 // pred_region
    _
  $region9: #{convnet_forward.3} parent=0 // pred_fallthru
    _
  // Predicated region
  $region10: #{convnet_forward.3} parent=0 // pred_check
    _
  $region11: #{convnet_forward.3} parent=0 // pred_check_branch
    %13 = sbr.rel (0) target = $region13
  $region12: #{convnet_forward.3} parent=0 // pred_region
    _
  $region13: #{convnet_forward.3} parent=0 // pred_fallthru
    _
  %v15 = vld [vmem:[%s1] sm:$0xf]
  %v16 = vld [vmem:[%s1 + $0x4] sm:$0xf]
  %v17 = vld [vmem:[%s1 + $0x8] sm:$0xf]
  %v18 = vld [vmem:[%s1 + $0xc] sm:$0xf]
  %v19 = vld [vmem:[%s1 + $0x10] sm:$0xf]
  %v20 = vld [vmem:[%s1 + $0x14] sm:$0xf]
  %v21 = vld [vmem:[%s1 + $0x18] sm:$0xf]
  %v22 = vld [vmem:[%s1 + $0x1c] sm:$0xf]
  %v23 = vld [vmem:[%s1 + $0x20] sm:$0xf]
  %v24 = vld [vmem:[%s1 + $0x24] sm:$0xf]
  %v25 = vld [vmem:[%s1 + $0x28] sm:$0xf]
  %v26 = vld [vmem:[%s1 + $0x2c] sm:$0xf]
  %v27 = vld [vmem:[%s1 + $0x30] sm:$0xf]
  %v28 = vld [vmem:[%s1 + $0x34] sm:$0xf]
  %v29 = vld [vmem:[%s1 + $0x38] sm:$0xf]
  %v30 = vld [vmem:[%s1 + $0x3c] sm:$0xf]
  %v31 = vld [vmem:[%s0] sm:$0xf]
  %v32 = vld [vmem:[%s0 + $0x4] sm:$0xf]
  %v33 = vld [vmem:[%s0 + $0x8] sm:$0xf]
  %v34 = vld [vmem:[%s0 + $0xc] sm:$0xf]
  %v35 = vld [vmem:[%s0 + $0x10] sm:$0xf]
  %v36 = vld [vmem:[%s0 + $0x14] sm:$0xf]
  %v37 = vld [vmem:[%s0 + $0x18] sm:$0xf]
  %v38 = vld [vmem:[%s0 + $0x1c] sm:$0xf]
  %v39 = vld [vmem:[%s0 + $0x20] sm:$0xf]
  %v40 = vld [vmem:[%s0 + $0x24] sm:$0xf]
  %v41 = vld [vmem:[%s0 + $0x28] sm:$0xf]
  %v42 = vld [vmem:[%s0 + $0x2c] sm:$0xf]
  %v43 = vld [vmem:[%s0 + $0x30] sm:$0xf]
  %v44 = vld [vmem:[%s0 + $0x34] sm:$0xf]
  %v45 = vld [vmem:[%s0 + $0x38] sm:$0xf]
  %v46 = vld [vmem:[%s0 + $0x3c] sm:$0xf]
  %v63 = vunpack.c.l.b16 %v31
  %v64 = vunpack.c.l.b16 %v32
  %v65 = vunpack.c.l.b16 %v33
  %v66 = vunpack.c.l.b16 %v34
  %v67 = vunpack.c.l.b16 %v35
  %v68 = vunpack.c.l.b16 %v36
  %v69 = vunpack.c.l.b16 %v37
  %v70 = vunpack.c.l.b16 %v38
  %v71 = vunpack.c.l.b16 %v39
  %v72 = vunpack.c.l.b16 %v40
  %v73 = vunpack.c.l.b16 %v41
  %v74 = vunpack.c.l.b16 %v42
  %v75 = vunpack.c.l.b16 %v43
  %v76 = vunpack.c.l.b16 %v44
  %v77 = vunpack.c.l.b16 %v45
  %v78 = vunpack.c.l.b16 %v46
  %v79 = vpack.c.b16 %v64, %v63
  %v80 = vpack.c.b16 %v66, %v65
  %v81 = vpack.c.b16 %v68, %v67
  %v82 = vpack.c.b16 %v70, %v69
  %v83 = vpack.c.b16 %v72, %v71
  %v84 = vpack.c.b16 %v74, %v73
  %v85 = vpack.c.b16 %v76, %v75
  %v86 = vpack.c.b16 %v78, %v77
  %v111 = vunpack.c.l.b16 %v15
  %v112 = vunpack.c.l.b16 %v16
  %v113 = vunpack.c.l.b16 %v17
  %v114 = vunpack.c.l.b16 %v18
  %v115 = vunpack.c.l.b16 %v19
  %v116 = vunpack.c.l.b16 %v20
  %v117 = vunpack.c.l.b16 %v21
  %v118 = vunpack.c.l.b16 %v22
  %v119 = vunpack.c.l.b16 %v23
  %v120 = vunpack.c.l.b16 %v24
  %v121 = vunpack.c.l.b16 %v25
  %v122 = vunpack.c.l.b16 %v26
  %v123 = vunpack.c.l.b16 %v27
  %v124 = vunpack.c.l.b16 %v28
  %v125 = vunpack.c.l.b16 %v29
  %v126 = vunpack.c.l.b16 %v30
  %v127 = vpack.c.b16 %v112, %v111
  %v128 = vpack.c.b16 %v114, %v113
  %v129 = vpack.c.b16 %v116, %v115
  %v130 = vpack.c.b16 %v118, %v117
  %v131 = vpack.c.b16 %v120, %v119
  %v132 = vpack.c.b16 %v122, %v121
  %v133 = vpack.c.b16 %v124, %v123
  %v134 = vpack.c.b16 %v126, %v125
  %143 = vmatprep.subr.bf16.mxu0 0
  %144 = vmatpush1.bf16.msra.mxu0 %v127
  %145 = vmatprep.subr.bf16.mxu0 0
  %146 = vmatpush1.bf16.msra.mxu0 %v128
  %147 = vmatprep.subr.bf16.mxu0 0
  %148 = vmatpush1.bf16.msra.mxu0 %v129
  %149 = vmatprep.subr.bf16.mxu0 0
  %150 = vmatpush1.bf16.msra.mxu0 %v130
  %151 = vmatprep.subr.bf16.mxu0 0
  %152 = vmatpush1.bf16.msra.mxu0 %v131
  %153 = vmatprep.subr.bf16.mxu0 0
  %154 = vmatpush1.bf16.msra.mxu0 %v132
  %155 = vmatprep.subr.bf16.mxu0 0
  %156 = vmatpush1.bf16.msra.mxu0 %v133
  %157 = vmatprep.subr.bf16.mxu0 0
  %158 = vmatpush1.bf16.msra.mxu0 %v134
  %159 = vmatprep.subr.bf16.mxu0 0
  %160 = vmatpush1.bf16.msra.mxu0 0
  %161 = vmatprep.subr.bf16.mxu0 0
  %162 = vmatpush1.bf16.msra.mxu0 0
  %163 = vmatprep.subr.bf16.mxu0 0
  %164 = vmatpush1.bf16.msra.mxu0 0
  %165 = vmatprep.subr.bf16.mxu0 0
  %166 = vmatpush1.bf16.msra.mxu0 0
  %167 = vmatprep.subr.bf16.mxu0 0
  %168 = vmatpush1.bf16.msra.mxu0 0
  %169 = vmatprep.subr.bf16.mxu0 0
  %170 = vmatpush1.bf16.msra.mxu0 0
  %171 = vmatprep.subr.bf16.mxu0 0
  %172 = vmatpush1.bf16.msra.mxu0 0
  %173 = vmatprep.subr.bf16.mxu0 0
  %174 = vmatpush1.bf16.msra.mxu0 0
  %175 = vmatprep.mubr.bf16.mxu0 0
  %176 = vmatmul.mubr.bf16.gmra.mrb[0].mxu0 %v79
  %v177 = vpop.f32.mrb[0].mxu0
  %v178 = vadd.f32 0.0, %v177
  %v179 = vpop.f32.mrb[0].mxu0
  %v180 = vpop.f32.mrb[0].mxu0
  %v181 = vadd.f32 0.0, %v180
  %v182 = vpop.f32.mrb[0].mxu0
  %183 = vmatprep.mubr.bf16.mxu0 0
  %184 = vmatmul.mubr.bf16.gmra.mrb[0].mxu0 %v80
  %v185 = vpop.f32.mrb[0].mxu0
  %v186 = vadd.f32 0.0, %v185
  %v187 = vpop.f32.mrb[0].mxu0
  %v188 = vpop.f32.mrb[0].mxu0
  %v189 = vadd.f32 0.0, %v188
  %v190 = vpop.f32.mrb[0].mxu0
  %191 = vmatprep.mubr.bf16.mxu0 0
  %192 = vmatmul.mubr.bf16.gmra.mrb[0].mxu0 %v81
  %v193 = vpop.f32.mrb[0].mxu0
  %v194 = vadd.f32 0.0, %v193
  %v195 = vpop.f32.mrb[0].mxu0
  %v196 = vpop.f32.mrb[0].mxu0
  %v197 = vadd.f32 0.0, %v196
  %v198 = vpop.f32.mrb[0].mxu0
  %199 = vmatprep.mubr.bf16.mxu0 0
  %200 = vmatmul.mubr.bf16.gmra.mrb[0].mxu0 %v82
  %v201 = vpop.f32.mrb[0].mxu0
  %v202 = vadd.f32 0.0, %v201
  %v203 = vpop.f32.mrb[0].mxu0
  %v204 = vpop.f32.mrb[0].mxu0
  %v205 = vadd.f32 0.0, %v204
  %v206 = vpop.f32.mrb[0].mxu0
  %207 = vmatprep.mubr.bf16.mxu0 0
  %208 = vmatmul.mubr.bf16.gmra.mrb[0].mxu0 %v83
  %v209 = vpop.f32.mrb[0].mxu0
  %v210 = vadd.f32 0.0, %v209
  %v211 = vpop.f32.mrb[0].mxu0
  %v212 = vpop.f32.mrb[0].mxu0
  %v213 = vadd.f32 0.0, %v212
  %v214 = vpop.f32.mrb[0].mxu0
  %215 = vmatprep.mubr.bf16.mxu0 0
  %216 = vmatmul.mubr.bf16.gmra.mrb[0].mxu0 %v84
  %v217 = vpop.f32.mrb[0].mxu0
  %v218 = vadd.f32 0.0, %v217
  %v219 = vpop.f32.mrb[0].mxu0
  %v220 = vpop.f32.mrb[0].mxu0
  %v221 = vadd.f32 0.0, %v220
  %v222 = vpop.f32.mrb[0].mxu0
  %223 = vmatprep.mubr.bf16.mxu0 0
  %224 = vmatmul.mubr.bf16.gmra.mrb[0].mxu0 %v85
  %v225 = vpop.f32.mrb[0].mxu0
  %v226 = vadd.f32 0.0, %v225
  %v227 = vpop.f32.mrb[0].mxu0
  %v228 = vpop.f32.mrb[0].mxu0
  %v229 = vadd.f32 0.0, %v228
  %v230 = vpop.f32.mrb[0].mxu0
  %231 = vmatprep.mubr.bf16.mxu0 0
  %232 = vmatmul.mubr.bf16.gmra.mrb[0].mxu0 %v86
  %v233 = vpop.f32.mrb[0].mxu0
  %v234 = vadd.f32 0.0, %v233
  %v235 = vpop.f32.mrb[0].mxu0
  %v236 = vpop.f32.mrb[0].mxu0
  %v237 = vadd.f32 0.0, %v236
  %v238 = vpop.f32.mrb[0].mxu0
  %239 = vdwg.mxu0
  %s240 = scalar_lea.vmem %s0, 64
  %v241 = vld [vmem:[%s240] sm:$0xf]
  %v242 = vld [vmem:[%s240 + $0x4] sm:$0xf]
  %v243 = vld [vmem:[%s240 + $0x8] sm:$0xf]
  %v244 = vld [vmem:[%s240 + $0xc] sm:$0xf]
  %v245 = vld [vmem:[%s240 + $0x10] sm:$0xf]
  %v246 = vld [vmem:[%s240 + $0x14] sm:$0xf]
  %v247 = vld [vmem:[%s240 + $0x18] sm:$0xf]
  %v248 = vld [vmem:[%s240 + $0x1c] sm:$0xf]
  %v249 = vld [vmem:[%s240 + $0x20] sm:$0xf]
  %v250 = vld [vmem:[%s240 + $0x24] sm:$0xf]
  %v251 = vld [vmem:[%s240 + $0x28] sm:$0xf]
  %v252 = vld [vmem:[%s240 + $0x2c] sm:$0xf]
  %v253 = vld [vmem:[%s240 + $0x30] sm:$0xf]
  %v254 = vld [vmem:[%s240 + $0x34] sm:$0xf]
  %v255 = vld [vmem:[%s240 + $0x38] sm:$0xf]
  %v256 = vld [vmem:[%s240 + $0x3c] sm:$0xf]
  %v273 = vunpack.c.l.b16 %v241
  %v274 = vunpack.c.l.b16 %v242
  %v275 = vunpack.c.l.b16 %v243
  %v276 = vunpack.c.l.b16 %v244
  %v277 = vunpack.c.l.b16 %v245
  %v278 = vunpack.c.l.b16 %v246
  %v279 = vunpack.c.l.b16 %v247
  %v280 = vunpack.c.l.b16 %v248
  %v281 = vunpack.c.l.b16 %v249
  %v282 = vunpack.c.l.b16 %v250
  %v283 = vunpack.c.l.b16 %v251
  %v284 = vunpack.c.l.b16 %v252
  %v285 = vunpack.c.l.b16 %v253
  %v286 = vunpack.c.l.b16 %v254
  %v287 = vunpack.c.l.b16 %v255
  %v288 = vunpack.c.l.b16 %v256
  %v289 = vpack.c.b16 %v274, %v273
  %v290 = vpack.c.b16 %v276, %v275
  %v291 = vpack.c.b16 %v278, %v277
  %v292 = vpack.c.b16 %v280, %v279
  %v293 = vpack.c.b16 %v282, %v281
  %v294 = vpack.c.b16 %v284, %v283
  %v295 = vpack.c.b16 %v286, %v285
  %v296 = vpack.c.b16 %v288, %v287
  %305 = vmatprep.subr.bf16.mxu0 0
  %306 = vmatpush1.bf16.msra.mxu0 %v127
  %307 = vmatprep.subr.bf16.mxu0 0
  %308 = vmatpush1.bf16.msra.mxu0 %v128
  %309 = vmatprep.subr.bf16.mxu0 0
  %310 = vmatpush1.bf16.msra.mxu0 %v129
  %311 = vmatprep.subr.bf16.mxu0 0
  %312 = vmatpush1.bf16.msra.mxu0 %v130
  %313 = vmatprep.subr.bf16.mxu0 0
  %314 = vmatpush1.bf16.msra.mxu0 %v131
  %315 = vmatprep.subr.bf16.mxu0 0
  %316 = vmatpush1.bf16.msra.mxu0 %v132
  %317 = vmatprep.subr.bf16.mxu0 0
  %318 = vmatpush1.bf16.msra.mxu0 %v133
  %319 = vmatprep.subr.bf16.mxu0 0
  %320 = vmatpush1.bf16.msra.mxu0 %v134
  %321 = vmatprep.subr.bf16.mxu0 0
  %322 = vmatpush1.bf16.msra.mxu0 0
  %323 = vmatprep.subr.bf16.mxu0 0
  %324 = vmatpush1.bf16.msra.mxu0 0
  %325 = vmatprep.subr.bf16.mxu0 0
  %326 = vmatpush1.bf16.msra.mxu0 0
  %327 = vmatprep.subr.bf16.mxu0 0
  %328 = vmatpush1.bf16.msra.mxu0 0
  %329 = vmatprep.subr.bf16.mxu0 0
  %330 = vmatpush1.bf16.msra.mxu0 0
  %331 = vmatprep.subr.bf16.mxu0 0
  %332 = vmatpush1.bf16.msra.mxu0 0
  %333 = vmatprep.subr.bf16.mxu0 0
  %334 = vmatpush1.bf16.msra.mxu0 0
  %335 = vmatprep.subr.bf16.mxu0 0
  %336 = vmatpush1.bf16.msra.mxu0 0
  %337 = vmatprep.mubr.bf16.mxu0 0
  %338 = vmatmul.mubr.bf16.gmra.mrb[0].mxu0 %v289
  %v339 = vpop.f32.mrb[0].mxu0
  %v340 = vadd.f32 0.0, %v339
  %v341 = vpop.f32.mrb[0].mxu0
  %v342 = vpop.f32.mrb[0].mxu0
  %v343 = vadd.f32 0.0, %v342
  %v344 = vpop.f32.mrb[0].mxu0
  %345 = vmatprep.mubr.bf16.mxu0 0
  %346 = vmatmul.mubr.bf16.gmra.mrb[0].mxu0 %v290
  %v347 = vpop.f32.mrb[0].mxu0
  %v348 = vadd.f32 0.0, %v347
  %v349 = vpop.f32.mrb[0].mxu0
  %v350 = vpop.f32.mrb[0].mxu0
  %v351 = vadd.f32 0.0, %v350
  %v352 = vpop.f32.mrb[0].mxu0
  %353 = vmatprep.mubr.bf16.mxu0 0
  %354 = vmatmul.mubr.bf16.gmra.mrb[0].mxu0 %v291
  %v355 = vpop.f32.mrb[0].mxu0
  %v356 = vadd.f32 0.0, %v355
  %v357 = vpop.f32.mrb[0].mxu0
  %v358 = vpop.f32.mrb[0].mxu0
  %v359 = vadd.f32 0.0, %v358
  %v360 = vpop.f32.mrb[0].mxu0
  %361 = vmatprep.mubr.bf16.mxu0 0
  %362 = vmatmul.mubr.bf16.gmra.mrb[0].mxu0 %v292
  %v363 = vpop.f32.mrb[0].mxu0
  %v364 = vadd.f32 0.0, %v363
  %v365 = vpop.f32.mrb[0].mxu0
  %v366 = vpop.f32.mrb[0].mxu0
  %v367 = vadd.f32 0.0, %v366
  %v368 = vpop.f32.mrb[0].mxu0
  %369 = vmatprep.mubr.bf16.mxu0 0
  %370 = vmatmul.mubr.bf16.gmra.mrb[0].mxu0 %v293
  %v371 = vpop.f32.mrb[0].mxu0
  %v372 = vadd.f32 0.0, %v371
  %v373 = vpop.f32.mrb[0].mxu0
  %v374 = vpop.f32.mrb[0].mxu0
  %v375 = vadd.f32 0.0, %v374
  %v376 = vpop.f32.mrb[0].mxu0
  %377 = vmatprep.mubr.bf16.mxu0 0
  %378 = vmatmul.mubr.bf16.gmra.mrb[0].mxu0 %v294
  %v379 = vpop.f32.mrb[0].mxu0
  %v380 = vadd.f32 0.0, %v379
  %v381 = vpop.f32.mrb[0].mxu0
  %v382 = vpop.f32.mrb[0].mxu0
  %v383 = vadd.f32 0.0, %v382
  %v384 = vpop.f32.mrb[0].mxu0
  %385 = vmatprep.mubr.bf16.mxu0 0
  %386 = vmatmul.mubr.bf16.gmra.mrb[0].mxu0 %v295
  %v387 = vpop.f32.mrb[0].mxu0
  %v388 = vadd.f32 0.0, %v387
  %v389 = vpop.f32.mrb[0].mxu0
  %v390 = vpop.f32.mrb[0].mxu0
  %v391 = vadd.f32 0.0, %v390
  %v392 = vpop.f32.mrb[0].mxu0
  %393 = vmatprep.mubr.bf16.mxu0 0
  %394 = vmatmul.mubr.bf16.gmra.mrb[0].mxu0 %v296
  %v395 = vpop.f32.mrb[0].mxu0
  %v396 = vadd.f32 0.0, %v395
  %v397 = vpop.f32.mrb[0].mxu0
  %v398 = vpop.f32.mrb[0].mxu0
  %v399 = vadd.f32 0.0, %v398
  %v400 = vpop.f32.mrb[0].mxu0
  %401 = vdwg.mxu0
  %s402 = scalar_lea.vmem %s0, 128
  %v403 = vld [vmem:[%s402] sm:$0xf]
  %v404 = vld [vmem:[%s402 + $0x4] sm:$0xf]
  %v405 = vld [vmem:[%s402 + $0x8] sm:$0xf]
  %v406 = vld [vmem:[%s402 + $0xc] sm:$0xf]
  %v407 = vld [vmem:[%s402 + $0x10] sm:$0xf]
  %v408 = vld [vmem:[%s402 + $0x14] sm:$0xf]
  %v409 = vld [vmem:[%s402 + $0x18] sm:$0xf]
  %v410 = vld [vmem:[%s402 + $0x1c] sm:$0xf]
  %v411 = vld [vmem:[%s402 + $0x20] sm:$0xf]
  %v412 = vld [vmem:[%s402 + $0x24] sm:$0xf]
  %v413 = vld [vmem:[%s402 + $0x28] sm:$0xf]
  %v414 = vld [vmem:[%s402 + $0x2c] sm:$0xf]
  %v415 = vld [vmem:[%s402 + $0x30] sm:$0xf]
  %v416 = vld [vmem:[%s402 + $0x34] sm:$0xf]
  %v417 = vld [vmem:[%s402 + $0x38] sm:$0xf]
  %v418 = vld [vmem:[%s402 + $0x3c] sm:$0xf]
  %v435 = vunpack.c.l.b16 %v403
  %v436 = vunpack.c.l.b16 %v404
  %v437 = vunpack.c.l.b16 %v405
  %v438 = vunpack.c.l.b16 %v406
  %v439 = vunpack.c.l.b16 %v407
  %v440 = vunpack.c.l.b16 %v408
  %v441 = vunpack.c.l.b16 %v409
  %v442 = vunpack.c.l.b16 %v410
  %v443 = vunpack.c.l.b16 %v411
  %v444 = vunpack.c.l.b16 %v412
  %v445 = vunpack.c.l.b16 %v413
  %v446 = vunpack.c.l.b16 %v414
  %v447 = vunpack.c.l.b16 %v415
  %v448 = vunpack.c.l.b16 %v416
  %v449 = vunpack.c.l.b16 %v417
  %v450 = vunpack.c.l.b16 %v418
  %v451 = vpack.c.b16 %v436, %v435
  %v452 = vpack.c.b16 %v438, %v437
  %v453 = vpack.c.b16 %v440, %v439
  %v454 = vpack.c.b16 %v442, %v441
  %v455 = vpack.c.b16 %v444, %v443
  %v456 = vpack.c.b16 %v446, %v445
  %v457 = vpack.c.b16 %v448, %v447
  %v458 = vpack.c.b16 %v450, %v449
  %467 = vmatprep.subr.bf16.mxu0 0
  %468 = vmatpush1.bf16.msra.mxu0 %v127
  %469 = vmatprep.subr.bf16.mxu0 0
  %470 = vmatpush1.bf16.msra.mxu0 %v128
  %471 = vmatprep.subr.bf16.mxu0 0
  %472 = vmatpush1.bf16.msra.mxu0 %v129
  %473 = vmatprep.subr.bf16.mxu0 0
  %474 = vmatpush1.bf16.msra.mxu0 %v130
  %475 = vmatprep.subr.bf16.mxu0 0
  %476 = vmatpush1.bf16.msra.mxu0 %v131
  %477 = vmatprep.subr.bf16.mxu0 0
  %478 = vmatpush1.bf16.msra.mxu0 %v132
  %479 = vmatprep.subr.bf16.mxu0 0
  %480 = vmatpush1.bf16.msra.mxu0 %v133
  %481 = vmatprep.subr.bf16.mxu0 0
  %482 = vmatpush1.bf16.msra.mxu0 %v134
  %483 = vmatprep.subr.bf16.mxu0 0
  %484 = vmatpush1.bf16.msra.mxu0 0
  %485 = vmatprep.subr.bf16.mxu0 0
  %486 = vmatpush1.bf16.msra.mxu0 0
  %487 = vmatprep.subr.bf16.mxu0 0
  %488 = vmatpush1.bf16.msra.mxu0 0
  %489 = vmatprep.subr.bf16.mxu0 0
  %490 = vmatpush1.bf16.msra.mxu0 0
  %491 = vmatprep.subr.bf16.mxu0 0
  %492 = vmatpush1.bf16.msra.mxu0 0
  %493 = vmatprep.subr.bf16.mxu0 0
  %494 = vmatpush1.bf16.msra.mxu0 0
  %495 = vmatprep.subr.bf16.mxu0 0
  %496 = vmatpush1.bf16.msra.mxu0 0
  %497 = vmatprep.subr.bf16.mxu0 0
  %498 = vmatpush1.bf16.msra.mxu0 0
  %499 = vmatprep.mubr.bf16.mxu0 0
  %500 = vmatmul.mubr.bf16.gmra.mrb[0].mxu0 %v451
  %v501 = vpop.f32.mrb[0].mxu0
  %v502 = vadd.f32 0.0, %v501
  %v503 = vpop.f32.mrb[0].mxu0
  %v504 = vpop.f32.mrb[0].mxu0
  %v505 = vadd.f32 0.0, %v504
  %v506 = vpop.f32.mrb[0].mxu0
  %507 = vmatprep.mubr.bf16.mxu0 0
  %508 = vmatmul.mubr.bf16.gmra.mrb[0].mxu0 %v452
  %v509 = vpop.f32.mrb[0].mxu0
  %v510 = vadd.f32 0.0, %v509
  %v511 = vpop.f32.mrb[0].mxu0
  %v512 = vpop.f32.mrb[0].mxu0
  %v513 = vadd.f32 0.0, %v512
  %v514 = vpop.f32.mrb[0].mxu0
  %515 = vmatprep.mubr.bf16.mxu0 0
  %516 = vmatmul.mubr.bf16.gmra.mrb[0].mxu0 %v453
  %v517 = vpop.f32.mrb[0].mxu0
  %v518 = vadd.f32 0.0, %v517
  %v519 = vpop.f32.mrb[0].mxu0
  %v520 = vpop.f32.mrb[0].mxu0
  %v521 = vadd.f32 0.0, %v520
  %v522 = vpop.f32.mrb[0].mxu0
  %523 = vmatprep.mubr.bf16.mxu0 0
  %524 = vmatmul.mubr.bf16.gmra.mrb[0].mxu0 %v454
  %v525 = vpop.f32.mrb[0].mxu0
  %v526 = vadd.f32 0.0, %v525
  %v527 = vpop.f32.mrb[0].mxu0
  %v528 = vpop.f32.mrb[0].mxu0
  %v529 = vadd.f32 0.0, %v528
  %v530 = vpop.f32.mrb[0].mxu0
  %531 = vmatprep.mubr.bf16.mxu0 0
  %532 = vmatmul.mubr.bf16.gmra.mrb[0].mxu0 %v455
  %v533 = vpop.f32.mrb[0].mxu0
  %v534 = vadd.f32 0.0, %v533
  %v535 = vpop.f32.mrb[0].mxu0
  %v536 = vpop.f32.mrb[0].mxu0
  %v537 = vadd.f32 0.0, %v536
  %v538 = vpop.f32.mrb[0].mxu0
  %539 = vmatprep.mubr.bf16.mxu0 0
  %540 = vmatmul.mubr.bf16.gmra.mrb[0].mxu0 %v456
  %v541 = vpop.f32.mrb[0].mxu0
  %v542 = vadd.f32 0.0, %v541
  %v543 = vpop.f32.mrb[0].mxu0
  %v544 = vpop.f32.mrb[0].mxu0
  %v545 = vadd.f32 0.0, %v544
  %v546 = vpop.f32.mrb[0].mxu0
  %547 = vmatprep.mubr.bf16.mxu0 0
  %548 = vmatmul.mubr.bf16.gmra.mrb[0].mxu0 %v457
  %v549 = vpop.f32.mrb[0].mxu0
  %v550 = vadd.f32 0.0, %v549
  %v551 = vpop.f32.mrb[0].mxu0
  %v552 = vpop.f32.mrb[0].mxu0
  %v553 = vadd.f32 0.0, %v552
  %v554 = vpop.f32.mrb[0].mxu0
  %555 = vmatprep.mubr.bf16.mxu0 0
  %556 = vmatmul.mubr.bf16.gmra.mrb[0].mxu0 %v458
  %v557 = vpop.f32.mrb[0].mxu0
  %v558 = vadd.f32 0.0, %v557
  %v559 = vpop.f32.mrb[0].mxu0
  %v560 = vpop.f32.mrb[0].mxu0
  %v561 = vadd.f32 0.0, %v560
  %v562 = vpop.f32.mrb[0].mxu0
  %563 = vdwg.mxu0
  %s564 = scalar_lea.vmem %s0, 192
  %v565 = vld [vmem:[%s564] sm:$0xf]
  %v566 = vld [vmem:[%s564 + $0x4] sm:$0xf]
  %v567 = vld [vmem:[%s564 + $0x8] sm:$0xf]
  %v568 = vld [vmem:[%s564 + $0xc] sm:$0xf]
  %v569 = vld [vmem:[%s564 + $0x10] sm:$0xf]
  %v570 = vld [vmem:[%s564 + $0x14] sm:$0xf]
  %v571 = vld [vmem:[%s564 + $0x18] sm:$0xf]
  %v572 = vld [vmem:[%s564 + $0x1c] sm:$0xf]
  %v573 = vld [vmem:[%s564 + $0x20] sm:$0xf]
  %v574 = vld [vmem:[%s564 + $0x24] sm:$0xf]
  %v575 = vld [vmem:[%s564 + $0x28] sm:$0xf]
  %v576 = vld [vmem:[%s564 + $0x2c] sm:$0xf]
  %v577 = vld [vmem:[%s564 + $0x30] sm:$0xf]
  %v578 = vld [vmem:[%s564 + $0x34] sm:$0xf]
  %v579 = vld [vmem:[%s564 + $0x38] sm:$0xf]
  %v580 = vld [vmem:[%s564 + $0x3c] sm:$0xf]
  %v597 = vunpack.c.l.b16 %v565
  %v598 = vunpack.c.l.b16 %v566
  %v599 = vunpack.c.l.b16 %v567
  %v600 = vunpack.c.l.b16 %v568
  %v601 = vunpack.c.l.b16 %v569
  %v602 = vunpack.c.l.b16 %v570
  %v603 = vunpack.c.l.b16 %v571
  %v604 = vunpack.c.l.b16 %v572
  %v605 = vunpack.c.l.b16 %v573
  %v606 = vunpack.c.l.b16 %v574
  %v607 = vunpack.c.l.b16 %v575
  %v608 = vunpack.c.l.b16 %v576
  %v609 = vunpack.c.l.b16 %v577
  %v610 = vunpack.c.l.b16 %v578
  %v611 = vunpack.c.l.b16 %v579
  %v612 = vunpack.c.l.b16 %v580
  %v613 = vpack.c.b16 %v598, %v597
  %v614 = vpack.c.b16 %v600, %v599
  %v615 = vpack.c.b16 %v602, %v601
  %v616 = vpack.c.b16 %v604, %v603
  %v617 = vpack.c.b16 %v606, %v605
  %v618 = vpack.c.b16 %v608, %v607
  %v619 = vpack.c.b16 %v610, %v609
  %v620 = vpack.c.b16 %v612, %v611
  %629 = vmatprep.subr.bf16.mxu0 0
  %630 = vmatpush1.bf16.msra.mxu0 %v127
  %631 = vmatprep.subr.bf16.mxu0 0
  %632 = vmatpush1.bf16.msra.mxu0 %v128
  %633 = vmatprep.subr.bf16.mxu0 0
  %634 = vmatpush1.bf16.msra.mxu0 %v129
  %635 = vmatprep.subr.bf16.mxu0 0
  %636 = vmatpush1.bf16.msra.mxu0 %v130
  %637 = vmatprep.subr.bf16.mxu0 0
  %638 = vmatpush1.bf16.msra.mxu0 %v131
  %639 = vmatprep.subr.bf16.mxu0 0
  %640 = vmatpush1.bf16.msra.mxu0 %v132
  %641 = vmatprep.subr.bf16.mxu0 0
  %642 = vmatpush1.bf16.msra.mxu0 %v133
  %643 = vmatprep.subr.bf16.mxu0 0
  %644 = vmatpush1.bf16.msra.mxu0 %v134
  %645 = vmatprep.subr.bf16.mxu0 0
  %646 = vmatpush1.bf16.msra.mxu0 0
  %647 = vmatprep.subr.bf16.mxu0 0
  %648 = vmatpush1.bf16.msra.mxu0 0
  %649 = vmatprep.subr.bf16.mxu0 0
  %650 = vmatpush1.bf16.msra.mxu0 0
  %651 = vmatprep.subr.bf16.mxu0 0
  %652 = vmatpush1.bf16.msra.mxu0 0
  %653 = vmatprep.subr.bf16.mxu0 0
  %654 = vmatpush1.bf16.msra.mxu0 0
  %655 = vmatprep.subr.bf16.mxu0 0
  %656 = vmatpush1.bf16.msra.mxu0 0
  %657 = vmatprep.subr.bf16.mxu0 0
  %658 = vmatpush1.bf16.msra.mxu0 0
  %659 = vmatprep.subr.bf16.mxu0 0
  %660 = vmatpush1.bf16.msra.mxu0 0
  %661 = vmatprep.mubr.bf16.mxu0 0
  %662 = vmatmul.mubr.bf16.gmra.mrb[0].mxu0 %v613
  %v663 = vpop.f32.mrb[0].mxu0
  %v664 = vadd.f32 0.0, %v663
  %v665 = vpop.f32.mrb[0].mxu0
  %v666 = vpop.f32.mrb[0].mxu0
  %v667 = vadd.f32 0.0, %v666
  %v668 = vpop.f32.mrb[0].mxu0
  %669 = vmatprep.mubr.bf16.mxu0 0
  %670 = vmatmul.mubr.bf16.gmra.mrb[0].mxu0 %v614
  %v671 = vpop.f32.mrb[0].mxu0
  %v672 = vadd.f32 0.0, %v671
  %v673 = vpop.f32.mrb[0].mxu0
  %v674 = vpop.f32.mrb[0].mxu0
  %v675 = vadd.f32 0.0, %v674
  %v676 = vpop.f32.mrb[0].mxu0
  %677 = vmatprep.mubr.bf16.mxu0 0
  %678 = vmatmul.mubr.bf16.gmra.mrb[0].mxu0 %v615
  %v679 = vpop.f32.mrb[0].mxu0
  %v680 = vadd.f32 0.0, %v679
  %v681 = vpop.f32.mrb[0].mxu0
  %v682 = vpop.f32.mrb[0].mxu0
  %v683 = vadd.f32 0.0, %v682
  %v684 = vpop.f32.mrb[0].mxu0
  %685 = vmatprep.mubr.bf16.mxu0 0
  %686 = vmatmul.mubr.bf16.gmra.mrb[0].mxu0 %v616
  %v687 = vpop.f32.mrb[0].mxu0
  %v688 = vadd.f32 0.0, %v687
  %v689 = vpop.f32.mrb[0].mxu0
  %v690 = vpop.f32.mrb[0].mxu0
  %v691 = vadd.f32 0.0, %v690
  %v692 = vpop.f32.mrb[0].mxu0
  %693 = vmatprep.mubr.bf16.mxu0 0
  %694 = vmatmul.mubr.bf16.gmra.mrb[0].mxu0 %v617
  %v695 = vpop.f32.mrb[0].mxu0
  %v696 = vadd.f32 0.0, %v695
  %v697 = vpop.f32.mrb[0].mxu0
  %v698 = vpop.f32.mrb[0].mxu0
  %v699 = vadd.f32 0.0, %v698
  %v700 = vpop.f32.mrb[0].mxu0
  %701 = vmatprep.mubr.bf16.mxu0 0
  %702 = vmatmul.mubr.bf16.gmra.mrb[0].mxu0 %v618
  %v703 = vpop.f32.mrb[0].mxu0
  %v704 = vadd.f32 0.0, %v703
  %v705 = vpop.f32.mrb[0].mxu0
  %v706 = vpop.f32.mrb[0].mxu0
  %v707 = vadd.f32 0.0, %v706
  %v708 = vpop.f32.mrb[0].mxu0
  %709 = vmatprep.mubr.bf16.mxu0 0
  %710 = vmatmul.mubr.bf16.gmra.mrb[0].mxu0 %v619
  %v711 = vpop.f32.mrb[0].mxu0
  %v712 = vadd.f32 0.0, %v711
  %v713 = vpop.f32.mrb[0].mxu0
  %v714 = vpop.f32.mrb[0].mxu0
  %v715 = vadd.f32 0.0, %v714
  %v716 = vpop.f32.mrb[0].mxu0
  %717 = vmatprep.mubr.bf16.mxu0 0
  %718 = vmatmul.mubr.bf16.gmra.mrb[0].mxu0 %v620
  %v719 = vpop.f32.mrb[0].mxu0
  %v720 = vadd.f32 0.0, %v719
  %v721 = vpop.f32.mrb[0].mxu0
  %v722 = vpop.f32.mrb[0].mxu0
  %v723 = vadd.f32 0.0, %v722
  %v724 = vpop.f32.mrb[0].mxu0
  %725 = vdwg.mxu0
  %v726 = vmax.f32 %v178, %v340
  %v727 = vmax.f32 %v181, %v343
  %v728 = vmax.f32 %v186, %v348
  %v729 = vmax.f32 %v189, %v351
  %v730 = vmax.f32 %v194, %v356
  %v731 = vmax.f32 %v197, %v359
  %v732 = vmax.f32 %v202, %v364
  %v733 = vmax.f32 %v205, %v367
  %v734 = vmax.f32 %v210, %v372
  %v735 = vmax.f32 %v213, %v375
  %v736 = vmax.f32 %v218, %v380
  %v737 = vmax.f32 %v221, %v383
  %v738 = vmax.f32 %v226, %v388
  %v739 = vmax.f32 %v229, %v391
  %v740 = vmax.f32 %v234, %v396
  %v741 = vmax.f32 %v237, %v399
  %v742 = vmax.f32 %v502, %v664
  %v743 = vmax.f32 %v505, %v667
  %v744 = vmax.f32 %v510, %v672
  %v745 = vmax.f32 %v513, %v675
  %v746 = vmax.f32 %v518, %v680
  %v747 = vmax.f32 %v521, %v683
  %v748 = vmax.f32 %v526, %v688
  %v749 = vmax.f32 %v529, %v691
  %v750 = vmax.f32 %v534, %v696
  %v751 = vmax.f32 %v537, %v699
  %v752 = vmax.f32 %v542, %v704
  %v753 = vmax.f32 %v545, %v707
  %v754 = vmax.f32 %v550, %v712
  %v755 = vmax.f32 %v553, %v715
  %v756 = vmax.f32 %v558, %v720
  %v757 = vmax.f32 %v561, %v723
  %v758 = vmax.f32 %v726, %v742
  %v759 = vmax.f32 %v727, %v743
  %v760 = vmax.f32 %v728, %v744
  %v761 = vmax.f32 %v729, %v745
  %v762 = vmax.f32 %v730, %v746
  %v763 = vmax.f32 %v731, %v747
  %v764 = vmax.f32 %v732, %v748
  %v765 = vmax.f32 %v733, %v749
  %v766 = vmax.f32 %v734, %v750
  %v767 = vmax.f32 %v735, %v751
  %v768 = vmax.f32 %v736, %v752
  %v769 = vmax.f32 %v737, %v753
  %v770 = vmax.f32 %v738, %v754
  %v771 = vmax.f32 %v739, %v755
  %v772 = vmax.f32 %v740, %v756
  %v773 = vmax.f32 %v741, %v757
  %v774 = vld [vmem:[%s2] sm:$0x1]
  %v776 = vlaneseq
  %v777 = vshrl.u32 %v776, 7
  %v778 = vsub.s32 0, %v777
  %v779 = vrot.slane %v774, %v778
  %v781 = vadd.f32 %v758, %v779
  %v782 = vadd.f32 %v759, %v779
  %v783 = vadd.f32 %v760, %v779
  %v784 = vadd.f32 %v761, %v779
  %v785 = vadd.f32 %v762, %v779
  %v786 = vadd.f32 %v763, %v779
  %v787 = vadd.f32 %v764, %v779
  %v788 = vadd.f32 %v765, %v779
  %v789 = vadd.f32 %v766, %v779
  %v790 = vadd.f32 %v767, %v779
  %v791 = vadd.f32 %v768, %v779
  %v792 = vadd.f32 %v769, %v779
  %v793 = vadd.f32 %v770, %v779
  %v794 = vadd.f32 %v771, %v779
  %v795 = vadd.f32 %v772, %v779
  %v796 = vadd.f32 %v773, %v779
  %v797 = vmax.f32 %v781, 0.0
  %v798 = vmax.f32 %v782, 0.0
  %v799 = vmax.f32 %v783, 0.0
  %v800 = vmax.f32 %v784, 0.0
  %v801 = vmax.f32 %v785, 0.0
  %v802 = vmax.f32 %v786, 0.0
  %v803 = vmax.f32 %v787, 0.0
  %v804 = vmax.f32 %v788, 0.0
  %v805 = vmax.f32 %v789, 0.0
  %v806 = vmax.f32 %v790, 0.0
  %v807 = vmax.f32 %v791, 0.0
  %v808 = vmax.f32 %v792, 0.0
  %v809 = vmax.f32 %v793, 0.0
  %v810 = vmax.f32 %v794, 0.0
  %v811 = vmax.f32 %v795, 0.0
  %v812 = vmax.f32 %v796, 0.0
  %v813 = vpack.c.bf16 %v798, %v797
  %v814 = vpack.c.bf16 %v800, %v799
  %v815 = vpack.c.bf16 %v802, %v801
  %v816 = vpack.c.bf16 %v804, %v803
  %v817 = vpack.c.bf16 %v806, %v805
  %v818 = vpack.c.bf16 %v808, %v807
  %v819 = vpack.c.bf16 %v810, %v809
  %v820 = vpack.c.bf16 %v812, %v811
  %v829 = vunpack.c.l.b16 %v813
  %v830 = vunpack.c.h.b16 %v813
  %v831 = vunpack.c.l.b16 %v814
  %v832 = vunpack.c.h.b16 %v814
  %v833 = vunpack.c.l.b16 %v815
  %v834 = vunpack.c.h.b16 %v815
  %v835 = vunpack.c.l.b16 %v816
  %v836 = vunpack.c.h.b16 %v816
  %v837 = vunpack.c.l.b16 %v817
  %v838 = vunpack.c.h.b16 %v817
  %v839 = vunpack.c.l.b16 %v818
  %v840 = vunpack.c.h.b16 %v818
  %v841 = vunpack.c.l.b16 %v819
  %v842 = vunpack.c.h.b16 %v819
  %v843 = vunpack.c.l.b16 %v820
  %v844 = vunpack.c.h.b16 %v820
  %v845 = vpack.c.b16 %v829, %v829
  %v846 = vpack.c.b16 %v830, %v830
  %v847 = vpack.c.b16 %v831, %v831
  %v848 = vpack.c.b16 %v832, %v832
  %v849 = vpack.c.b16 %v833, %v833
  %v850 = vpack.c.b16 %v834, %v834
  %v851 = vpack.c.b16 %v835, %v835
  %v852 = vpack.c.b16 %v836, %v836
  %v853 = vpack.c.b16 %v837, %v837
  %v854 = vpack.c.b16 %v838, %v838
  %v855 = vpack.c.b16 %v839, %v839
  %v856 = vpack.c.b16 %v840, %v840
  %v857 = vpack.c.b16 %v841, %v841
  %v858 = vpack.c.b16 %v842, %v842
  %v859 = vpack.c.b16 %v843, %v843
  %v860 = vpack.c.b16 %v844, %v844
  %vm877 = vcmask 257024
  %878 = vst.msk [vmem:[%s3] sm:$0xf] %vm877, %v845
  %879 = vst.msk [vmem:[%s3 + $0x4] sm:$0xf] %vm877, %v846
  %880 = vst.msk [vmem:[%s3 + $0x8] sm:$0xf] %vm877, %v847
  %881 = vst.msk [vmem:[%s3 + $0xc] sm:$0xf] %vm877, %v848
  %882 = vst.msk [vmem:[%s3 + $0x10] sm:$0xf] %vm877, %v849
  %883 = vst.msk [vmem:[%s3 + $0x14] sm:$0xf] %vm877, %v850
  %884 = vst.msk [vmem:[%s3 + $0x18] sm:$0xf] %vm877, %v851
  %885 = vst.msk [vmem:[%s3 + $0x1c] sm:$0xf] %vm877, %v852
  %886 = vst.msk [vmem:[%s3 + $0x20] sm:$0xf] %vm877, %v853
  %887 = vst.msk [vmem:[%s3 + $0x24] sm:$0xf] %vm877, %v854
  %888 = vst.msk [vmem:[%s3 + $0x28] sm:$0xf] %vm877, %v855
  %889 = vst.msk [vmem:[%s3 + $0x2c] sm:$0xf] %vm877, %v856
  %890 = vst.msk [vmem:[%s3 + $0x30] sm:$0xf] %vm877, %v857
  %891 = vst.msk [vmem:[%s3 + $0x34] sm:$0xf] %vm877, %v858
  %892 = vst.msk [vmem:[%s3 + $0x38] sm:$0xf] %vm877, %v859
  %893 = vst.msk [vmem:[%s3 + $0x3c] sm:$0xf] %vm877, %v860
  // Predicated region
  $region14: #{convnet_forward.3} parent=0 // pred_check
    _
  $region15: #{convnet_forward.3} parent=0 // pred_check_branch
    %895 = sbr.rel (0) target = $region17
  $region16: #{convnet_forward.3} parent=0 // pred_region
    _
  $region17: #{convnet_forward.3} parent=0 // pred_fallthru
    _
  // Predicated region
  $region18: #{convnet_forward.3} parent=0 // pred_check
    _
  $region19: #{convnet_forward.3} parent=0 // pred_check_branch
    %897 = sbr.rel (0) target = $region21
  $region20: #{convnet_forward.3} parent=0 // pred_region
    _
  $region21: #{convnet_forward.3} parent=0 // pred_fallthru
    _

// kernel: convnet_forward.4
$region0: #{convnet_forward.4}
  #allocation0 [shape = 'u32[]', space=smem, size = 0x4, offset = 0x4, fixed_abs, tag = 'smem constant byte address 0x4 - core index']
  #allocation1 [shape = 'u32[144,128]{1,0:T(1,128)}', space=vmem, size = 0x12000, scoped, tag = 'internal scratch']
  %s0 = inlined_call_operand.vmem [shape: bf16[4,32,800], index: 0, kind: input, shape index: {}]
  %s1 = inlined_call_operand.vmem [shape: bf16[800,64], index: 1, kind: input, shape index: {}]
  %s2 = inlined_call_operand.vmem [shape: f32[1,64], index: 2, kind: input, shape index: {}]
  %s3 = inlined_call_operand.vmem [shape: bf16[32,64], index: 3, kind: output, shape index: {}]
  %s4 = sld [smem:[#allocation0]]
  $region22: #{convnet_forward.4} parent=0
    _
  %s6 = ssub.s32 1, %s4
  %s7 = scalar_select 0, %s6, %s4
  // Predicated region
  $region2: #{convnet_forward.4} parent=0 // pred_check
    _
  $region3: #{convnet_forward.4} parent=0 // pred_check_branch
    %9 = sbr.rel (0) target = $region5
  $region4: #{convnet_forward.4} parent=0 // pred_region
    _
  $region5: #{convnet_forward.4} parent=0 // pred_fallthru
    _
  // Predicated region
  $region6: #{convnet_forward.4} parent=0 // pred_check
    _
  $region7: #{convnet_forward.4} parent=0 // pred_check_branch
    %11 = sbr.rel (0) target = $region9
  $region8: #{convnet_forward.4} parent=0 // pred_region
    _
  $region9: #{convnet_forward.4} parent=0 // pred_fallthru
    _
  // Predicated region
  $region10: #{convnet_forward.4} parent=0 // pred_check
    _
  $region11: #{convnet_forward.4} parent=0 // pred_check_branch
    %13 = sbr.rel (0) target = $region13
  $region12: #{convnet_forward.4} parent=0 // pred_region
    _
  $region13: #{convnet_forward.4} parent=0 // pred_fallthru
    _
  %v15 = vld [vmem:[%s1] sm:$0xf]
  %v16 = vld [vmem:[%s1 + $0x4] sm:$0xf]
  %v17 = vld [vmem:[%s1 + $0x8] sm:$0xf]
  %v18 = vld [vmem:[%s1 + $0xc] sm:$0xf]
  %v19 = vld [vmem:[%s1 + $0x10] sm:$0xf]
  %v20 = vld [vmem:[%s1 + $0x14] sm:$0xf]
  %v21 = vld [vmem:[%s1 + $0x18] sm:$0xf]
  %v22 = vld [vmem:[%s1 + $0x1c] sm:$0xf]
  %v23 = vld [vmem:[%s1 + $0x20] sm:$0xf]
  %v24 = vld [vmem:[%s1 + $0x24] sm:$0xf]
  %v25 = vld [vmem:[%s1 + $0x28] sm:$0xf]
  %v26 = vld [vmem:[%s1 + $0x2c] sm:$0xf]
  %v27 = vld [vmem:[%s1 + $0x30] sm:$0xf]
  %v28 = vld [vmem:[%s1 + $0x34] sm:$0xf]
  %v29 = vld [vmem:[%s1 + $0x38] sm:$0xf]
  %v30 = vld [vmem:[%s1 + $0x3c] sm:$0xf]
  %v31 = vld [vmem:[%s1 + $0x40] sm:$0xf]
  %v32 = vld [vmem:[%s1 + $0x44] sm:$0xf]
  %v33 = vld [vmem:[%s1 + $0x48] sm:$0xf]
  %v34 = vld [vmem:[%s1 + $0x4c] sm:$0xf]
  %v35 = vld [vmem:[%s1 + $0x50] sm:$0xf]
  %v36 = vld [vmem:[%s1 + $0x54] sm:$0xf]
  %v37 = vld [vmem:[%s1 + $0x58] sm:$0xf]
  %v38 = vld [vmem:[%s1 + $0x5c] sm:$0xf]
  %v39 = vld [vmem:[%s1 + $0x60] sm:$0xf]
  %v40 = vld [vmem:[%s1 + $0x64] sm:$0xf]
  %v41 = vld [vmem:[%s1 + $0x68] sm:$0xf]
  %v42 = vld [vmem:[%s1 + $0x6c] sm:$0xf]
  %v43 = vld [vmem:[%s1 + $0x70] sm:$0xf]
  %v44 = vld [vmem:[%s1 + $0x74] sm:$0xf]
  %v45 = vld [vmem:[%s1 + $0x78] sm:$0xf]
  %v46 = vld [vmem:[%s1 + $0x7c] sm:$0xf]
  %v47 = vld [vmem:[%s1 + $0x80] sm:$0xf]
  %v48 = vld [vmem:[%s1 + $0x84] sm:$0xf]
  %v49 = vld [vmem:[%s1 + $0x88] sm:$0xf]
  %v50 = vld [vmem:[%s1 + $0x8c] sm:$0xf]
  %v51 = vld [vmem:[%s1 + $0x90] sm:$0xf]
  %v52 = vld [vmem:[%s1 + $0x94] sm:$0xf]
  %v53 = vld [vmem:[%s1 + $0x98] sm:$0xf]
  %v54 = vld [vmem:[%s1 + $0x9c] sm:$0xf]
  %v55 = vld [vmem:[%s1 + $0xa0] sm:$0xf]
  %v56 = vld [vmem:[%s1 + $0xa4] sm:$0xf]
  %v57 = vld [vmem:[%s1 + $0xa8] sm:$0xf]
  %v58 = vld [vmem:[%s1 + $0xac] sm:$0xf]
  %v59 = vld [vmem:[%s1 + $0xb0] sm:$0xf]
  %v60 = vld [vmem:[%s1 + $0xb4] sm:$0xf]
  %v61 = vld [vmem:[%s1 + $0xb8] sm:$0xf]
  %v62 = vld [vmem:[%s1 + $0xbc] sm:$0xf]
  %v63 = vld [vmem:[%s1 + $0xc0] sm:$0xf]
  %v64 = vld [vmem:[%s1 + $0xc4] sm:$0xf]
  %v65 = vld [vmem:[%s1 + $0xc8] sm:$0xf]
  %v66 = vld [vmem:[%s1 + $0xcc] sm:$0xf]
  %v67 = vld [vmem:[%s1 + $0xd0] sm:$0xf]
  %v68 = vld [vmem:[%s1 + $0xd4] sm:$0xf]
  %v69 = vld [vmem:[%s1 + $0xd8] sm:$0xf]
  %v70 = vld [vmem:[%s1 + $0xdc] sm:$0xf]
  %v71 = vld [vmem:[%s1 + $0xe0] sm:$0xf]
  %v72 = vld [vmem:[%s1 + $0xe4] sm:$0xf]
  %v73 = vld [vmem:[%s1 + $0xe8] sm:$0xf]
  %v74 = vld [vmem:[%s1 + $0xec] sm:$0xf]
  %v75 = vld [vmem:[%s1 + $0xf0] sm:$0xf]
  %v76 = vld [vmem:[%s1 + $0xf4] sm:$0xf]
  %v77 = vld [vmem:[%s1 + $0xf8] sm:$0xf]
  %v78 = vld [vmem:[%s1 + $0xfc] sm:$0xf]
  %v79 = vld [vmem:[%s1 + $0x100] sm:$0xf]
  %v80 = vld [vmem:[%s1 + $0x104] sm:$0xf]
  %v81 = vld [vmem:[%s1 + $0x108] sm:$0xf]
  %v82 = vld [vmem:[%s1 + $0x10c] sm:$0xf]
  %v83 = vld [vmem:[%s1 + $0x110] sm:$0xf]
  %v84 = vld [vmem:[%s1 + $0x114] sm:$0xf]
  %v85 = vld [vmem:[%s1 + $0x118] sm:$0xf]
  %v86 = vld [vmem:[%s1 + $0x11c] sm:$0xf]
  %v87 = vld [vmem:[%s1 + $0x120] sm:$0xf]
  %v88 = vld [vmem:[%s1 + $0x124] sm:$0xf]
  %v89 = vld [vmem:[%s1 + $0x128] sm:$0xf]
  %v90 = vld [vmem:[%s1 + $0x12c] sm:$0xf]
  %v91 = vld [vmem:[%s1 + $0x130] sm:$0xf]
  %v92 = vld [vmem:[%s1 + $0x134] sm:$0xf]
  %v93 = vld [vmem:[%s1 + $0x138] sm:$0xf]
  %v94 = vld [vmem:[%s1 + $0x13c] sm:$0xf]
  %v95 = vld [vmem:[%s1 + $0x140] sm:$0xf]
  %v96 = vld [vmem:[%s1 + $0x144] sm:$0xf]
  %v97 = vld [vmem:[%s1 + $0x148] sm:$0xf]
  %v98 = vld [vmem:[%s1 + $0x14c] sm:$0xf]
  %v99 = vld [vmem:[%s1 + $0x150] sm:$0xf]
  %v100 = vld [vmem:[%s1 + $0x154] sm:$0xf]
  %v101 = vld [vmem:[%s1 + $0x158] sm:$0xf]
  %v102 = vld [vmem:[%s1 + $0x15c] sm:$0xf]
  %v103 = vld [vmem:[%s1 + $0x160] sm:$0xf]
  %v104 = vld [vmem:[%s1 + $0x164] sm:$0xf]
  %v105 = vld [vmem:[%s1 + $0x168] sm:$0xf]
  %v106 = vld [vmem:[%s1 + $0x16c] sm:$0xf]
  %v107 = vld [vmem:[%s1 + $0x170] sm:$0xf]
  %v108 = vld [vmem:[%s1 + $0x174] sm:$0xf]
  %v109 = vld [vmem:[%s1 + $0x178] sm:$0xf]
  %v110 = vld [vmem:[%s1 + $0x17c] sm:$0xf]
  %v111 = vld [vmem:[%s1 + $0x180] sm:$0xf]
  %v112 = vld [vmem:[%s1 + $0x184] sm:$0xf]
  %v113 = vld [vmem:[%s1 + $0x188] sm:$0xf]
  %v114 = vld [vmem:[%s1 + $0x18c] sm:$0xf]
  %v115 = vld [vmem:[%s0] sm:$0xff]
  %v116 = vld [vmem:[%s0 + $0x8] sm:$0xff]
  %v117 = vld [vmem:[%s0 + $0x10] sm:$0xff]
  %v118 = vld [vmem:[%s0 + $0x18] sm:$0xf]
  %v119 = vld [vmem:[%s0 + $0x1c] sm:$0xff]
  %v120 = vld [vmem:[%s0 + $0x24] sm:$0xff]
  %v121 = vld [vmem:[%s0 + $0x2c] sm:$0xff]
  %v122 = vld [vmem:[%s0 + $0x34] sm:$0xf]
  %v123 = vld [vmem:[%s0 + $0x38] sm:$0xff]
  %v124 = vld [vmem:[%s0 + $0x40] sm:$0xff]
  %v125 = vld [vmem:[%s0 + $0x48] sm:$0xff]
  %v126 = vld [vmem:[%s0 + $0x50] sm:$0xf]
  %v127 = vld [vmem:[%s0 + $0x54] sm:$0xff]
  %v128 = vld [vmem:[%s0 + $0x5c] sm:$0xff]
  %v129 = vld [vmem:[%s0 + $0x64] sm:$0xff]
  %v130 = vld [vmem:[%s0 + $0x6c] sm:$0xf]
  %v147 = vunpack.c.l.b16 %v115
  %v148 = vunpack.c.h.b16 %v115
  %v149 = vunpack.c.l.b16 %v116
  %v150 = vunpack.c.h.b16 %v116
  %v151 = vunpack.c.l.b16 %v117
  %v152 = vunpack.c.h.b16 %v117
  %v153 = vunpack.c.l.b16 %v118
  %v154 = vunpack.c.l.b16 %v119
  %v155 = vunpack.c.h.b16 %v119
  %v156 = vunpack.c.l.b16 %v120
  %v157 = vunpack.c.h.b16 %v120
  %v158 = vunpack.c.l.b16 %v121
  %v159 = vunpack.c.h.b16 %v121
  %v160 = vunpack.c.l.b16 %v122
  %v161 = vunpack.c.l.b16 %v123
  %v162 = vunpack.c.h.b16 %v123
  %v163 = vunpack.c.l.b16 %v124
  %v164 = vunpack.c.h.b16 %v124
  %v165 = vunpack.c.l.b16 %v125
  %v166 = vunpack.c.h.b16 %v125
  %v167 = vunpack.c.l.b16 %v126
  %v168 = vunpack.c.l.b16 %v127
  %v169 = vunpack.c.h.b16 %v127
  %v170 = vunpack.c.l.b16 %v128
  %v171 = vunpack.c.h.b16 %v128
  %v172 = vunpack.c.l.b16 %v129
  %v173 = vunpack.c.h.b16 %v129
  %v174 = vunpack.c.l.b16 %v130
  %v175 = vpack.c.b16 %v154, %v147
  %v176 = vpack.c.b16 %v155, %v148
  %v177 = vpack.c.b16 %v156, %v149
  %v178 = vpack.c.b16 %v157, %v150
  %v179 = vpack.c.b16 %v158, %v151
  %v180 = vpack.c.b16 %v159, %v152
  %v181 = vpack.c.b16 %v160, %v153
  %v182 = vpack.c.b16 %v168, %v161
  %v183 = vpack.c.b16 %v169, %v162
  %v184 = vpack.c.b16 %v170, %v163
  %v185 = vpack.c.b16 %v171, %v164
  %v186 = vpack.c.b16 %v172, %v165
  %v187 = vpack.c.b16 %v173, %v166
  %v188 = vpack.c.b16 %v174, %v167
  %v301 = vunpack.c.l.b16 %v15
  %v302 = vunpack.c.l.b16 %v16
  %v303 = vunpack.c.l.b16 %v17
  %v304 = vunpack.c.l.b16 %v18
  %v305 = vunpack.c.l.b16 %v19
  %v306 = vunpack.c.l.b16 %v20
  %v307 = vunpack.c.l.b16 %v21
  %v308 = vunpack.c.l.b16 %v22
  %v309 = vunpack.c.l.b16 %v23
  %v310 = vunpack.c.l.b16 %v24
  %v311 = vunpack.c.l.b16 %v25
  %v312 = vunpack.c.l.b16 %v26
  %v313 = vunpack.c.l.b16 %v27
  %v314 = vunpack.c.l.b16 %v28
  %v315 = vunpack.c.l.b16 %v29
  %v316 = vunpack.c.l.b16 %v30
  %v317 = vunpack.c.l.b16 %v31
  %v318 = vunpack.c.l.b16 %v32
  %v319 = vunpack.c.l.b16 %v33
  %v320 = vunpack.c.l.b16 %v34
  %v321 = vunpack.c.l.b16 %v35
  %v322 = vunpack.c.l.b16 %v36
  %v323 = vunpack.c.l.b16 %v37
  %v324 = vunpack.c.l.b16 %v38
  %v325 = vunpack.c.l.b16 %v39
  %v326 = vunpack.c.l.b16 %v40
  %v327 = vunpack.c.l.b16 %v41
  %v328 = vunpack.c.l.b16 %v42
  %v329 = vunpack.c.l.b16 %v43
  %v330 = vunpack.c.l.b16 %v44
  %v331 = vunpack.c.l.b16 %v45
  %v332 = vunpack.c.l.b16 %v46
  %v333 = vunpack.c.l.b16 %v47
  %v334 = vunpack.c.l.b16 %v48
  %v335 = vunpack.c.l.b16 %v49
  %v336 = vunpack.c.l.b16 %v50
  %v337 = vunpack.c.l.b16 %v51
  %v338 = vunpack.c.l.b16 %v52
  %v339 = vunpack.c.l.b16 %v53
  %v340 = vunpack.c.l.b16 %v54
  %v341 = vunpack.c.l.b16 %v55
  %v342 = vunpack.c.l.b16 %v56
  %v343 = vunpack.c.l.b16 %v57
  %v344 = vunpack.c.l.b16 %v58
  %v345 = vunpack.c.l.b16 %v59
  %v346 = vunpack.c.l.b16 %v60
  %v347 = vunpack.c.l.b16 %v61
  %v348 = vunpack.c.l.b16 %v62
  %v349 = vunpack.c.l.b16 %v63
  %v350 = vunpack.c.l.b16 %v64
  %v351 = vunpack.c.l.b16 %v65
  %v352 = vunpack.c.l.b16 %v66
  %v353 = vunpack.c.l.b16 %v67
  %v354 = vunpack.c.l.b16 %v68
  %v355 = vunpack.c.l.b16 %v69
  %v356 = vunpack.c.l.b16 %v70
  %v357 = vunpack.c.l.b16 %v71
  %v358 = vunpack.c.l.b16 %v72
  %v359 = vunpack.c.l.b16 %v73
  %v360 = vunpack.c.l.b16 %v74
  %v361 = vunpack.c.l.b16 %v75
  %v362 = vunpack.c.l.b16 %v76
  %v363 = vunpack.c.l.b16 %v77
  %v364 = vunpack.c.l.b16 %v78
  %v365 = vunpack.c.l.b16 %v79
  %v366 = vunpack.c.l.b16 %v80
  %v367 = vunpack.c.l.b16 %v81
  %v368 = vunpack.c.l.b16 %v82
  %v369 = vunpack.c.l.b16 %v83
  %v370 = vunpack.c.l.b16 %v84
  %v371 = vunpack.c.l.b16 %v85
  %v372 = vunpack.c.l.b16 %v86
  %v373 = vunpack.c.l.b16 %v87
  %v374 = vunpack.c.l.b16 %v88
  %v375 = vunpack.c.l.b16 %v89
  %v376 = vunpack.c.l.b16 %v90
  %v377 = vunpack.c.l.b16 %v91
  %v378 = vunpack.c.l.b16 %v92
  %v379 = vunpack.c.l.b16 %v93
  %v380 = vunpack.c.l.b16 %v94
  %v381 = vunpack.c.l.b16 %v95
  %v382 = vunpack.c.l.b16 %v96
  %v383 = vunpack.c.l.b16 %v97
  %v384 = vunpack.c.l.b16 %v98
  %v385 = vunpack.c.l.b16 %v99
  %v386 = vunpack.c.l.b16 %v100
  %v387 = vunpack.c.l.b16 %v101
  %v388 = vunpack.c.l.b16 %v102
  %v389 = vunpack.c.l.b16 %v103
  %v390 = vunpack.c.l.b16 %v104
  %v391 = vunpack.c.l.b16 %v105
  %v392 = vunpack.c.l.b16 %v106
  %v393 = vunpack.c.l.b16 %v107
  %v394 = vunpack.c.l.b16 %v108
  %v395 = vunpack.c.l.b16 %v109
  %v396 = vunpack.c.l.b16 %v110
  %v397 = vunpack.c.l.b16 %v111
  %v398 = vunpack.c.l.b16 %v112
  %v399 = vunpack.c.l.b16 %v113
  %v400 = vunpack.c.l.b16 %v114
  %v401 = vpack.c.b16 %v302, %v301
  %v402 = vpack.c.b16 %v304, %v303
  %v403 = vpack.c.b16 %v306, %v305
  %v404 = vpack.c.b16 %v308, %v307
  %v405 = vpack.c.b16 %v310, %v309
  %v406 = vpack.c.b16 %v312, %v311
  %v407 = vpack.c.b16 %v314, %v313
  %v408 = vpack.c.b16 %v316, %v315
  %v409 = vpack.c.b16 %v318, %v317
  %v410 = vpack.c.b16 %v320, %v319
  %v411 = vpack.c.b16 %v322, %v321
  %v412 = vpack.c.b16 %v324, %v323
  %v413 = vpack.c.b16 %v326, %v325
  %v414 = vpack.c.b16 %v328, %v327
  %v415 = vpack.c.b16 %v330, %v329
  %v416 = vpack.c.b16 %v332, %v331
  %v417 = vpack.c.b16 %v334, %v333
  %v418 = vpack.c.b16 %v336, %v335
  %v419 = vpack.c.b16 %v338, %v337
  %v420 = vpack.c.b16 %v340, %v339
  %v421 = vpack.c.b16 %v342, %v341
  %v422 = vpack.c.b16 %v344, %v343
  %v423 = vpack.c.b16 %v346, %v345
  %v424 = vpack.c.b16 %v348, %v347
  %v425 = vpack.c.b16 %v350, %v349
  %v426 = vpack.c.b16 %v352, %v351
  %v427 = vpack.c.b16 %v354, %v353
  %v428 = vpack.c.b16 %v356, %v355
  %v429 = vpack.c.b16 %v358, %v357
  %v430 = vpack.c.b16 %v360, %v359
  %v431 = vpack.c.b16 %v362, %v361
  %v432 = vpack.c.b16 %v364, %v363
  %v433 = vpack.c.b16 %v366, %v365
  %v434 = vpack.c.b16 %v368, %v367
  %v435 = vpack.c.b16 %v370, %v369
  %v436 = vpack.c.b16 %v372, %v371
  %v437 = vpack.c.b16 %v374, %v373
  %v438 = vpack.c.b16 %v376, %v375
  %v439 = vpack.c.b16 %v378, %v377
  %v440 = vpack.c.b16 %v380, %v379
  %v441 = vpack.c.b16 %v382, %v381
  %v442 = vpack.c.b16 %v384, %v383
  %v443 = vpack.c.b16 %v386, %v385
  %v444 = vpack.c.b16 %v388, %v387
  %v445 = vpack.c.b16 %v390, %v389
  %v446 = vpack.c.b16 %v392, %v391
  %v447 = vpack.c.b16 %v394, %v393
  %v448 = vpack.c.b16 %v396, %v395
  %v449 = vpack.c.b16 %v398, %v397
  %v450 = vpack.c.b16 %v400, %v399
  %vm501 = vcmask 261120
  %v503 = vsel %vm501, %v181, 0
  %v506 = vsel %vm501, %v188, 0
  %508 = vmatprep.subr.bf16.mxu0 0
  %509 = vmatpush1.bf16.msra.mxu0 %v401
  %510 = vmatprep.subr.bf16.mxu0 0
  %511 = vmatpush1.bf16.msra.mxu0 %v402
  %512 = vmatprep.subr.bf16.mxu0 0
  %513 = vmatpush1.bf16.msra.mxu0 %v403
  %514 = vmatprep.subr.bf16.mxu0 0
  %515 = vmatpush1.bf16.msra.mxu0 %v404
  %516 = vmatprep.subr.bf16.mxu0 0
  %517 = vmatpush1.bf16.msra.mxu0 %v405
  %518 = vmatprep.subr.bf16.mxu0 0
  %519 = vmatpush1.bf16.msra.mxu0 %v406
  %520 = vmatprep.subr.bf16.mxu0 0
  %521 = vmatpush1.bf16.msra.mxu0 %v407
  %522 = vmatprep.subr.bf16.mxu0 0
  %523 = vmatpush1.bf16.msra.mxu0 %v408
  %524 = vmatprep.subr.bf16.mxu0 0
  %525 = vmatpush1.bf16.msra.mxu0 %v409
  %526 = vmatprep.subr.bf16.mxu0 0
  %527 = vmatpush1.bf16.msra.mxu0 %v410
  %528 = vmatprep.subr.bf16.mxu0 0
  %529 = vmatpush1.bf16.msra.mxu0 %v411
  %530 = vmatprep.subr.bf16.mxu0 0
  %531 = vmatpush1.bf16.msra.mxu0 %v412
  %532 = vmatprep.subr.bf16.mxu0 0
  %533 = vmatpush1.bf16.msra.mxu0 %v413
  %534 = vmatprep.subr.bf16.mxu0 0
  %535 = vmatpush1.bf16.msra.mxu0 %v414
  %536 = vmatprep.subr.bf16.mxu0 0
  %537 = vmatpush1.bf16.msra.mxu0 %v415
  %538 = vmatprep.subr.bf16.mxu0 0
  %539 = vmatpush1.bf16.msra.mxu0 %v416
  %540 = vmatprep.mubr.bf16.mxu0 %v176
  %541 = vmatmul.mubr.bf16.gmra.mrb[0].mxu0 %v175
  %v542 = vpop.f32.mrb[0].mxu0
  %v543 = vadd.f32 0.0, %v542
  %v544 = vpop.f32.mrb[0].mxu0
  %v545 = vpop.f32.mrb[0].mxu0
  %v546 = vadd.f32 0.0, %v545
  %v547 = vpop.f32.mrb[0].mxu0
  %548 = vmatprep.mubr.bf16.mxu0 %v183
  %549 = vmatmul.mubr.bf16.gmra.mrb[0].mxu0 %v182
  %v550 = vpop.f32.mrb[0].mxu0
  %v551 = vadd.f32 0.0, %v550
  %v552 = vpop.f32.mrb[0].mxu0
  %v553 = vpop.f32.mrb[0].mxu0
  %v554 = vadd.f32 0.0, %v553
  %v555 = vpop.f32.mrb[0].mxu0
  %556 = vdwg.mxu0
  %557 = vmatprep.subr.bf16.mxu0 0
  %558 = vmatpush1.bf16.msra.mxu0 %v417
  %559 = vmatprep.subr.bf16.mxu0 0
  %560 = vmatpush1.bf16.msra.mxu0 %v418
  %561 = vmatprep.subr.bf16.mxu0 0
  %562 = vmatpush1.bf16.msra.mxu0 %v419
  %563 = vmatprep.subr.bf16.mxu0 0
  %564 = vmatpush1.bf16.msra.mxu0 %v420
  %565 = vmatprep.subr.bf16.mxu0 0
  %566 = vmatpush1.bf16.msra.mxu0 %v421
  %567 = vmatprep.subr.bf16.mxu0 0
  %568 = vmatpush1.bf16.msra.mxu0 %v422
  %569 = vmatprep.subr.bf16.mxu0 0
  %570 = vmatpush1.bf16.msra.mxu0 %v423
  %571 = vmatprep.subr.bf16.mxu0 0
  %572 = vmatpush1.bf16.msra.mxu0 %v424
  %573 = vmatprep.subr.bf16.mxu0 0
  %574 = vmatpush1.bf16.msra.mxu0 %v425
  %575 = vmatprep.subr.bf16.mxu0 0
  %576 = vmatpush1.bf16.msra.mxu0 %v426
  %577 = vmatprep.subr.bf16.mxu0 0
  %578 = vmatpush1.bf16.msra.mxu0 %v427
  %579 = vmatprep.subr.bf16.mxu0 0
  %580 = vmatpush1.bf16.msra.mxu0 %v428
  %581 = vmatprep.subr.bf16.mxu0 0
  %582 = vmatpush1.bf16.msra.mxu0 %v429
  %583 = vmatprep.subr.bf16.mxu0 0
  %584 = vmatpush1.bf16.msra.mxu0 %v430
  %585 = vmatprep.subr.bf16.mxu0 0
  %586 = vmatpush1.bf16.msra.mxu0 %v431
  %587 = vmatprep.subr.bf16.mxu0 0
  %588 = vmatpush1.bf16.msra.mxu0 %v432
  %589 = vmatprep.mubr.bf16.mxu0 %v178
  %590 = vmatmul.mubr.bf16.gmra.mrb[0].mxu0 %v177
  %v591 = vpop.f32.mrb[0].mxu0
  %v592 = vadd.f32 %v543, %v591
  %v593 = vpop.f32.mrb[0].mxu0
  %v594 = vpop.f32.mrb[0].mxu0
  %v595 = vadd.f32 %v546, %v594
  %v596 = vpop.f32.mrb[0].mxu0
  %597 = vmatprep.mubr.bf16.mxu0 %v185
  %598 = vmatmul.mubr.bf16.gmra.mrb[0].mxu0 %v184
  %v599 = vpop.f32.mrb[0].mxu0
  %v600 = vadd.f32 %v551, %v599
  %v601 = vpop.f32.mrb[0].mxu0
  %v602 = vpop.f32.mrb[0].mxu0
  %v603 = vadd.f32 %v554, %v602
  %v604 = vpop.f32.mrb[0].mxu0
  %605 = vdwg.mxu0
  %606 = vmatprep.subr.bf16.mxu0 0
  %607 = vmatpush1.bf16.msra.mxu0 %v433
  %608 = vmatprep.subr.bf16.mxu0 0
  %609 = vmatpush1.bf16.msra.mxu0 %v434
  %610 = vmatprep.subr.bf16.mxu0 0
  %611 = vmatpush1.bf16.msra.mxu0 %v435
  %612 = vmatprep.subr.bf16.mxu0 0
  %613 = vmatpush1.bf16.msra.mxu0 %v436
  %614 = vmatprep.subr.bf16.mxu0 0
  %615 = vmatpush1.bf16.msra.mxu0 %v437
  %616 = vmatprep.subr.bf16.mxu0 0
  %617 = vmatpush1.bf16.msra.mxu0 %v438
  %618 = vmatprep.subr.bf16.mxu0 0
  %619 = vmatpush1.bf16.msra.mxu0 %v439
  %620 = vmatprep.subr.bf16.mxu0 0
  %621 = vmatpush1.bf16.msra.mxu0 %v440
  %622 = vmatprep.subr.bf16.mxu0 0
  %623 = vmatpush1.bf16.msra.mxu0 %v441
  %624 = vmatprep.subr.bf16.mxu0 0
  %625 = vmatpush1.bf16.msra.mxu0 %v442
  %626 = vmatprep.subr.bf16.mxu0 0
  %627 = vmatpush1.bf16.msra.mxu0 %v443
  %628 = vmatprep.subr.bf16.mxu0 0
  %629 = vmatpush1.bf16.msra.mxu0 %v444
  %630 = vmatprep.subr.bf16.mxu0 0
  %631 = vmatpush1.bf16.msra.mxu0 %v445
  %632 = vmatprep.subr.bf16.mxu0 0
  %633 = vmatpush1.bf16.msra.mxu0 %v446
  %634 = vmatprep.subr.bf16.mxu0 0
  %635 = vmatpush1.bf16.msra.mxu0 %v447
  %636 = vmatprep.subr.bf16.mxu0 0
  %637 = vmatpush1.bf16.msra.mxu0 %v448
  %638 = vmatprep.mubr.bf16.mxu0 %v180
  %639 = vmatmul.mubr.bf16.gmra.mrb[0].mxu0 %v179
  %v640 = vpop.f32.mrb[0].mxu0
  %v641 = vadd.f32 %v592, %v640
  %v642 = vpop.f32.mrb[0].mxu0
  %v643 = vpop.f32.mrb[0].mxu0
  %v644 = vadd.f32 %v595, %v643
  %v645 = vpop.f32.mrb[0].mxu0
  %646 = vmatprep.mubr.bf16.mxu0 %v187
  %647 = vmatmul.mubr.bf16.gmra.mrb[0].mxu0 %v186
  %v648 = vpop.f32.mrb[0].mxu0
  %v649 = vadd.f32 %v600, %v648
  %v650 = vpop.f32.mrb[0].mxu0
  %v651 = vpop.f32.mrb[0].mxu0
  %v652 = vadd.f32 %v603, %v651
  %v653 = vpop.f32.mrb[0].mxu0
  %654 = vdwg.mxu0
  %655 = vmatprep.subr.bf16.mxu0 0
  %656 = vmatpush1.bf16.msra.mxu0 %v449
  %657 = vmatprep.subr.bf16.mxu0 0
  %658 = vmatpush1.bf16.msra.mxu0 %v450
  %659 = vmatprep.subr.bf16.mxu0 0
  %660 = vmatpush1.bf16.msra.mxu0 0
  %661 = vmatprep.subr.bf16.mxu0 0
  %662 = vmatpush1.bf16.msra.mxu0 0
  %663 = vmatprep.subr.bf16.mxu0 0
  %664 = vmatpush1.bf16.msra.mxu0 0
  %665 = vmatprep.subr.bf16.mxu0 0
  %666 = vmatpush1.bf16.msra.mxu0 0
  %667 = vmatprep.subr.bf16.mxu0 0
  %668 = vmatpush1.bf16.msra.mxu0 0
  %669 = vmatprep.subr.bf16.mxu0 0
  %670 = vmatpush1.bf16.msra.mxu0 0
  %671 = vmatprep.subr.bf16.mxu0 0
  %672 = vmatpush1.bf16.msra.mxu0 0
  %673 = vmatprep.subr.bf16.mxu0 0
  %674 = vmatpush1.bf16.msra.mxu0 0
  %675 = vmatprep.subr.bf16.mxu0 0
  %676 = vmatpush1.bf16.msra.mxu0 0
  %677 = vmatprep.subr.bf16.mxu0 0
  %678 = vmatpush1.bf16.msra.mxu0 0
  %679 = vmatprep.subr.bf16.mxu0 0
  %680 = vmatpush1.bf16.msra.mxu0 0
  %681 = vmatprep.subr.bf16.mxu0 0
  %682 = vmatpush1.bf16.msra.mxu0 0
  %683 = vmatprep.subr.bf16.mxu0 0
  %684 = vmatpush1.bf16.msra.mxu0 0
  %685 = vmatprep.subr.bf16.mxu0 0
  %686 = vmatpush1.bf16.msra.mxu0 0
  %687 = vmatprep.mubr.bf16.mxu0 0
  %688 = vmatmul.mubr.bf16.gmra.mrb[0].mxu0 %v503
  %v689 = vpop.f32.mrb[0].mxu0
  %v690 = vadd.f32 %v641, %v689
  %v691 = vpop.f32.mrb[0].mxu0
  %v692 = vpop.f32.mrb[0].mxu0
  %v693 = vadd.f32 %v644, %v692
  %v694 = vpop.f32.mrb[0].mxu0
  %695 = vmatprep.mubr.bf16.mxu0 0
  %696 = vmatmul.mubr.bf16.gmra.mrb[0].mxu0 %v506
  %v697 = vpop.f32.mrb[0].mxu0
  %v698 = vadd.f32 %v649, %v697
  %v699 = vpop.f32.mrb[0].mxu0
  %v700 = vpop.f32.mrb[0].mxu0
  %v701 = vadd.f32 %v652, %v700
  %v702 = vpop.f32.mrb[0].mxu0
  %703 = vdwg.mxu0
  %s704 = scalar_lea.vmem %s0, 112
  %v705 = vld [vmem:[%s704] sm:$0xff]
  %v706 = vld [vmem:[%s704 + $0x8] sm:$0xff]
  %v707 = vld [vmem:[%s704 + $0x10] sm:$0xff]
  %v708 = vld [vmem:[%s704 + $0x18] sm:$0xf]
  %v709 = vld [vmem:[%s704 + $0x1c] sm:$0xff]
  %v710 = vld [vmem:[%s704 + $0x24] sm:$0xff]
  %v711 = vld [vmem:[%s704 + $0x2c] sm:$0xff]
  %v712 = vld [vmem:[%s704 + $0x34] sm:$0xf]
  %v713 = vld [vmem:[%s704 + $0x38] sm:$0xff]
  %v714 = vld [vmem:[%s704 + $0x40] sm:$0xff]
  %v715 = vld [vmem:[%s704 + $0x48] sm:$0xff]
  %v716 = vld [vmem:[%s704 + $0x50] sm:$0xf]
  %v717 = vld [vmem:[%s704 + $0x54] sm:$0xff]
  %v718 = vld [vmem:[%s704 + $0x5c] sm:$0xff]
  %v719 = vld [vmem:[%s704 + $0x64] sm:$0xff]
  %v720 = vld [vmem:[%s704 + $0x6c] sm:$0xf]
  %v737 = vunpack.c.l.b16 %v705
  %v738 = vunpack.c.h.b16 %v705
  %v739 = vunpack.c.l.b16 %v706
  %v740 = vunpack.c.h.b16 %v706
  %v741 = vunpack.c.l.b16 %v707
  %v742 = vunpack.c.h.b16 %v707
  %v743 = vunpack.c.l.b16 %v708
  %v744 = vunpack.c.l.b16 %v709
  %v745 = vunpack.c.h.b16 %v709
  %v746 = vunpack.c.l.b16 %v710
  %v747 = vunpack.c.h.b16 %v710
  %v748 = vunpack.c.l.b16 %v711
  %v749 = vunpack.c.h.b16 %v711
  %v750 = vunpack.c.l.b16 %v712
  %v751 = vunpack.c.l.b16 %v713
  %v752 = vunpack.c.h.b16 %v713
  %v753 = vunpack.c.l.b16 %v714
  %v754 = vunpack.c.h.b16 %v714
  %v755 = vunpack.c.l.b16 %v715
  %v756 = vunpack.c.h.b16 %v715
  %v757 = vunpack.c.l.b16 %v716
  %v758 = vunpack.c.l.b16 %v717
  %v759 = vunpack.c.h.b16 %v717
  %v760 = vunpack.c.l.b16 %v718
  %v761 = vunpack.c.h.b16 %v718
  %v762 = vunpack.c.l.b16 %v719
  %v763 = vunpack.c.h.b16 %v719
  %v764 = vunpack.c.l.b16 %v720
  %v765 = vpack.c.b16 %v744, %v737
  %v766 = vpack.c.b16 %v745, %v738
  %v767 = vpack.c.b16 %v746, %v739
  %v768 = vpack.c.b16 %v747, %v740
  %v769 = vpack.c.b16 %v748, %v741
  %v770 = vpack.c.b16 %v749, %v742
  %v771 = vpack.c.b16 %v750, %v743
  %v772 = vpack.c.b16 %v758, %v751
  %v773 = vpack.c.b16 %v759, %v752
  %v774 = vpack.c.b16 %v760, %v753
  %v775 = vpack.c.b16 %v761, %v754
  %v776 = vpack.c.b16 %v762, %v755
  %v777 = vpack.c.b16 %v763, %v756
  %v778 = vpack.c.b16 %v764, %v757
  %v792 = vsel %vm501, %v771, 0
  %v795 = vsel %vm501, %v778, 0
  %797 = vmatprep.subr.bf16.mxu0 0
  %798 = vmatpush1.bf16.msra.mxu0 %v401
  %799 = vmatprep.subr.bf16.mxu0 0
  %800 = vmatpush1.bf16.msra.mxu0 %v402
  %801 = vmatprep.subr.bf16.mxu0 0
  %802 = vmatpush1.bf16.msra.mxu0 %v403
  %803 = vmatprep.subr.bf16.mxu0 0
  %804 = vmatpush1.bf16.msra.mxu0 %v404
  %805 = vmatprep.subr.bf16.mxu0 0
  %806 = vmatpush1.bf16.msra.mxu0 %v405
  %807 = vmatprep.subr.bf16.mxu0 0
  %808 = vmatpush1.bf16.msra.mxu0 %v406
  %809 = vmatprep.subr.bf16.mxu0 0
  %810 = vmatpush1.bf16.msra.mxu0 %v407
  %811 = vmatprep.subr.bf16.mxu0 0
  %812 = vmatpush1.bf16.msra.mxu0 %v408
  %813 = vmatprep.subr.bf16.mxu0 0
  %814 = vmatpush1.bf16.msra.mxu0 %v409
  %815 = vmatprep.subr.bf16.mxu0 0
  %816 = vmatpush1.bf16.msra.mxu0 %v410
  %817 = vmatprep.subr.bf16.mxu0 0
  %818 = vmatpush1.bf16.msra.mxu0 %v411
  %819 = vmatprep.subr.bf16.mxu0 0
  %820 = vmatpush1.bf16.msra.mxu0 %v412
  %821 = vmatprep.subr.bf16.mxu0 0
  %822 = vmatpush1.bf16.msra.mxu0 %v413
  %823 = vmatprep.subr.bf16.mxu0 0
  %824 = vmatpush1.bf16.msra.mxu0 %v414
  %825 = vmatprep.subr.bf16.mxu0 0
  %826 = vmatpush1.bf16.msra.mxu0 %v415
  %827 = vmatprep.subr.bf16.mxu0 0
  %828 = vmatpush1.bf16.msra.mxu0 %v416
  %829 = vmatprep.mubr.bf16.mxu0 %v766
  %830 = vmatmul.mubr.bf16.gmra.mrb[0].mxu0 %v765
  %v831 = vpop.f32.mrb[0].mxu0
  %v832 = vadd.f32 0.0, %v831
  %v833 = vpop.f32.mrb[0].mxu0
  %v834 = vpop.f32.mrb[0].mxu0
  %v835 = vadd.f32 0.0, %v834
  %v836 = vpop.f32.mrb[0].mxu0
  %837 = vmatprep.mubr.bf16.mxu0 %v773
  %838 = vmatmul.mubr.bf16.gmra.mrb[0].mxu0 %v772
  %v839 = vpop.f32.mrb[0].mxu0
  %v840 = vadd.f32 0.0, %v839
  %v841 = vpop.f32.mrb[0].mxu0
  %v842 = vpop.f32.mrb[0].mxu0
  %v843 = vadd.f32 0.0, %v842
  %v844 = vpop.f32.mrb[0].mxu0
  %845 = vdwg.mxu0
  %846 = vmatprep.subr.bf16.mxu0 0
  %847 = vmatpush1.bf16.msra.mxu0 %v417
  %848 = vmatprep.subr.bf16.mxu0 0
  %849 = vmatpush1.bf16.msra.mxu0 %v418
  %850 = vmatprep.subr.bf16.mxu0 0
  %851 = vmatpush1.bf16.msra.mxu0 %v419
  %852 = vmatprep.subr.bf16.mxu0 0
  %853 = vmatpush1.bf16.msra.mxu0 %v420
  %854 = vmatprep.subr.bf16.mxu0 0
  %855 = vmatpush1.bf16.msra.mxu0 %v421
  %856 = vmatprep.subr.bf16.mxu0 0
  %857 = vmatpush1.bf16.msra.mxu0 %v422
  %858 = vmatprep.subr.bf16.mxu0 0
  %859 = vmatpush1.bf16.msra.mxu0 %v423
  %860 = vmatprep.subr.bf16.mxu0 0
  %861 = vmatpush1.bf16.msra.mxu0 %v424
  %862 = vmatprep.subr.bf16.mxu0 0
  %863 = vmatpush1.bf16.msra.mxu0 %v425
  %864 = vmatprep.subr.bf16.mxu0 0
  %865 = vmatpush1.bf16.msra.mxu0 %v426
  %866 = vmatprep.subr.bf16.mxu0 0
  %867 = vmatpush1.bf16.msra.mxu0 %v427
  %868 = vmatprep.subr.bf16.mxu0 0
  %869 = vmatpush1.bf16.msra.mxu0 %v428
  %870 = vmatprep.subr.bf16.mxu0 0
  %871 = vmatpush1.bf16.msra.mxu0 %v429
  %872 = vmatprep.subr.bf16.mxu0 0
  %873 = vmatpush1.bf16.msra.mxu0 %v430
  %874 = vmatprep.subr.bf16.mxu0 0
  %875 = vmatpush1.bf16.msra.mxu0 %v431
  %876 = vmatprep.subr.bf16.mxu0 0
  %877 = vmatpush1.bf16.msra.mxu0 %v432
  %878 = vmatprep.mubr.bf16.mxu0 %v768
  %879 = vmatmul.mubr.bf16.gmra.mrb[0].mxu0 %v767
  %v880 = vpop.f32.mrb[0].mxu0
  %v881 = vadd.f32 %v832, %v880
  %v882 = vpop.f32.mrb[0].mxu0
  %v883 = vpop.f32.mrb[0].mxu0
  %v884 = vadd.f32 %v835, %v883
  %v885 = vpop.f32.mrb[0].mxu0
  %886 = vmatprep.mubr.bf16.mxu0 %v775
  %887 = vmatmul.mubr.bf16.gmra.mrb[0].mxu0 %v774
  %v888 = vpop.f32.mrb[0].mxu0
  %v889 = vadd.f32 %v840, %v888
  %v890 = vpop.f32.mrb[0].mxu0
  %v891 = vpop.f32.mrb[0].mxu0
  %v892 = vadd.f32 %v843, %v891
  %v893 = vpop.f32.mrb[0].mxu0
  %894 = vdwg.mxu0
  %895 = vmatprep.subr.bf16.mxu0 0
  %896 = vmatpush1.bf16.msra.mxu0 %v433
  %897 = vmatprep.subr.bf16.mxu0 0
  %898 = vmatpush1.bf16.msra.mxu0 %v434
  %899 = vmatprep.subr.bf16.mxu0 0
  %900 = vmatpush1.bf16.msra.mxu0 %v435
  %901 = vmatprep.subr.bf16.mxu0 0
  %902 = vmatpush1.bf16.msra.mxu0 %v436
  %903 = vmatprep.subr.bf16.mxu0 0
  %904 = vmatpush1.bf16.msra.mxu0 %v437
  %905 = vmatprep.subr.bf16.mxu0 0
  %906 = vmatpush1.bf16.msra.mxu0 %v438
  %907 = vmatprep.subr.bf16.mxu0 0
  %908 = vmatpush1.bf16.msra.mxu0 %v439
  %909 = vmatprep.subr.bf16.mxu0 0
  %910 = vmatpush1.bf16.msra.mxu0 %v440
  %911 = vmatprep.subr.bf16.mxu0 0
  %912 = vmatpush1.bf16.msra.mxu0 %v441
  %913 = vmatprep.subr.bf16.mxu0 0
  %914 = vmatpush1.bf16.msra.mxu0 %v442
  %915 = vmatprep.subr.bf16.mxu0 0
  %916 = vmatpush1.bf16.msra.mxu0 %v443
  %917 = vmatprep.subr.bf16.mxu0 0
  %918 = vmatpush1.bf16.msra.mxu0 %v444
  %919 = vmatprep.subr.bf16.mxu0 0
  %920 = vmatpush1.bf16.msra.mxu0 %v445
  %921 = vmatprep.subr.bf16.mxu0 0
  %922 = vmatpush1.bf16.msra.mxu0 %v446
  %923 = vmatprep.subr.bf16.mxu0 0
  %924 = vmatpush1.bf16.msra.mxu0 %v447
  %925 = vmatprep.subr.bf16.mxu0 0
  %926 = vmatpush1.bf16.msra.mxu0 %v448
  %927 = vmatprep.mubr.bf16.mxu0 %v770
  %928 = vmatmul.mubr.bf16.gmra.mrb[0].mxu0 %v769
  %v929 = vpop.f32.mrb[0].mxu0
  %v930 = vadd.f32 %v881, %v929
  %v931 = vpop.f32.mrb[0].mxu0
  %v932 = vpop.f32.mrb[0].mxu0
  %v933 = vadd.f32 %v884, %v932
  %v934 = vpop.f32.mrb[0].mxu0
  %935 = vmatprep.mubr.bf16.mxu0 %v777
  %936 = vmatmul.mubr.bf16.gmra.mrb[0].mxu0 %v776
  %v937 = vpop.f32.mrb[0].mxu0
  %v938 = vadd.f32 %v889, %v937
  %v939 = vpop.f32.mrb[0].mxu0
  %v940 = vpop.f32.mrb[0].mxu0
  %v941 = vadd.f32 %v892, %v940
  %v942 = vpop.f32.mrb[0].mxu0
  %943 = vdwg.mxu0
  %944 = vmatprep.subr.bf16.mxu0 0
  %945 = vmatpush1.bf16.msra.mxu0 %v449
  %946 = vmatprep.subr.bf16.mxu0 0
  %947 = vmatpush1.bf16.msra.mxu0 %v450
  %948 = vmatprep.subr.bf16.mxu0 0
  %949 = vmatpush1.bf16.msra.mxu0 0
  %950 = vmatprep.subr.bf16.mxu0 0
  %951 = vmatpush1.bf16.msra.mxu0 0
  %952 = vmatprep.subr.bf16.mxu0 0
  %953 = vmatpush1.bf16.msra.mxu0 0
  %954 = vmatprep.subr.bf16.mxu0 0
  %955 = vmatpush1.bf16.msra.mxu0 0
  %956 = vmatprep.subr.bf16.mxu0 0
  %957 = vmatpush1.bf16.msra.mxu0 0
  %958 = vmatprep.subr.bf16.mxu0 0
  %959 = vmatpush1.bf16.msra.mxu0 0
  %960 = vmatprep.subr.bf16.mxu0 0
  %961 = vmatpush1.bf16.msra.mxu0 0
  %962 = vmatprep.subr.bf16.mxu0 0
  %963 = vmatpush1.bf16.msra.mxu0 0
  %964 = vmatprep.subr.bf16.mxu0 0
  %965 = vmatpush1.bf16.msra.mxu0 0
  %966 = vmatprep.subr.bf16.mxu0 0
  %967 = vmatpush1.bf16.msra.mxu0 0
  %968 = vmatprep.subr.bf16.mxu0 0
  %969 = vmatpush1.bf16.msra.mxu0 0
  %970 = vmatprep.subr.bf16.mxu0 0
  %971 = vmatpush1.bf16.msra.mxu0 0
  %972 = vmatprep.subr.bf16.mxu0 0
  %973 = vmatpush1.bf16.msra.mxu0 0
  %974 = vmatprep.subr.bf16.mxu0 0
  %975 = vmatpush1.bf16.msra.mxu0 0
  %976 = vmatprep.mubr.bf16.mxu0 0
  %977 = vmatmul.mubr.bf16.gmra.mrb[0].mxu0 %v792
  %v978 = vpop.f32.mrb[0].mxu0
  %v979 = vadd.f32 %v930, %v978
  %v980 = vpop.f32.mrb[0].mxu0
  %v981 = vpop.f32.mrb[0].mxu0
  %v982 = vadd.f32 %v933, %v981
  %v983 = vpop.f32.mrb[0].mxu0
  %984 = vmatprep.mubr.bf16.mxu0 0
  %985 = vmatmul.mubr.bf16.gmra.mrb[0].mxu0 %v795
  %v986 = vpop.f32.mrb[0].mxu0
  %v987 = vadd.f32 %v938, %v986
  %v988 = vpop.f32.mrb[0].mxu0
  %v989 = vpop.f32.mrb[0].mxu0
  %v990 = vadd.f32 %v941, %v989
  %v991 = vpop.f32.mrb[0].mxu0
  %992 = vdwg.mxu0
  %s993 = scalar_lea.vmem %s0, 224
  %v994 = vld [vmem:[%s993] sm:$0xff]
  %v995 = vld [vmem:[%s993 + $0x8] sm:$0xff]
  %v996 = vld [vmem:[%s993 + $0x10] sm:$0xff]
  %v997 = vld [vmem:[%s993 + $0x18] sm:$0xf]
  %v998 = vld [vmem:[%s993 + $0x1c] sm:$0xff]
  %v999 = vld [vmem:[%s993 + $0x24] sm:$0xff]
  %v1000 = vld [vmem:[%s993 + $0x2c] sm:$0xff]
  %v1001 = vld [vmem:[%s993 + $0x34] sm:$0xf]
  %v1002 = vld [vmem:[%s993 + $0x38] sm:$0xff]
  %v1003 = vld [vmem:[%s993 + $0x40] sm:$0xff]
  %v1004 = vld [vmem:[%s993 + $0x48] sm:$0xff]
  %v1005 = vld [vmem:[%s993 + $0x50] sm:$0xf]
  %v1006 = vld [vmem:[%s993 + $0x54] sm:$0xff]
  %v1007 = vld [vmem:[%s993 + $0x5c] sm:$0xff]
  %v1008 = vld [vmem:[%s993 + $0x64] sm:$0xff]
  %v1009 = vld [vmem:[%s993 + $0x6c] sm:$0xf]
  %v1026 = vunpack.c.l.b16 %v994
  %v1027 = vunpack.c.h.b16 %v994
  %v1028 = vunpack.c.l.b16 %v995
  %v1029 = vunpack.c.h.b16 %v995
  %v1030 = vunpack.c.l.b16 %v996
  %v1031 = vunpack.c.h.b16 %v996
  %v1032 = vunpack.c.l.b16 %v997
  %v1033 = vunpack.c.l.b16 %v998
  %v1034 = vunpack.c.h.b16 %v998
  %v1035 = vunpack.c.l.b16 %v999
  %v1036 = vunpack.c.h.b16 %v999
  %v1037 = vunpack.c.l.b16 %v1000
  %v1038 = vunpack.c.h.b16 %v1000
  %v1039 = vunpack.c.l.b16 %v1001
  %v1040 = vunpack.c.l.b16 %v1002
  %v1041 = vunpack.c.h.b16 %v1002
  %v1042 = vunpack.c.l.b16 %v1003
  %v1043 = vunpack.c.h.b16 %v1003
  %v1044 = vunpack.c.l.b16 %v1004
  %v1045 = vunpack.c.h.b16 %v1004
  %v1046 = vunpack.c.l.b16 %v1005
  %v1047 = vunpack.c.l.b16 %v1006
  %v1048 = vunpack.c.h.b16 %v1006
  %v1049 = vunpack.c.l.b16 %v1007
  %v1050 = vunpack.c.h.b16 %v1007
  %v1051 = vunpack.c.l.b16 %v1008
  %v1052 = vunpack.c.h.b16 %v1008
  %v1053 = vunpack.c.l.b16 %v1009
  %v1054 = vpack.c.b16 %v1033, %v1026
  %v1055 = vpack.c.b16 %v1034, %v1027
  %v1056 = vpack.c.b16 %v1035, %v1028
  %v1057 = vpack.c.b16 %v1036, %v1029
  %v1058 = vpack.c.b16 %v1037, %v1030
  %v1059 = vpack.c.b16 %v1038, %v1031
  %v1060 = vpack.c.b16 %v1039, %v1032
  %v1061 = vpack.c.b16 %v1047, %v1040
  %v1062 = vpack.c.b16 %v1048, %v1041
  %v1063 = vpack.c.b16 %v1049, %v1042
  %v1064 = vpack.c.b16 %v1050, %v1043
  %v1065 = vpack.c.b16 %v1051, %v1044
  %v1066 = vpack.c.b16 %v1052, %v1045
  %v1067 = vpack.c.b16 %v1053, %v1046
  %v1081 = vsel %vm501, %v1060, 0
  %v1084 = vsel %vm501, %v1067, 0
  %1086 = vmatprep.subr.bf16.mxu0 0
  %1087 = vmatpush1.bf16.msra.mxu0 %v401
  %1088 = vmatprep.subr.bf16.mxu0 0
  %1089 = vmatpush1.bf16.msra.mxu0 %v402
  %1090 = vmatprep.subr.bf16.mxu0 0
  %1091 = vmatpush1.bf16.msra.mxu0 %v403
  %1092 = vmatprep.subr.bf16.mxu0 0
  %1093 = vmatpush1.bf16.msra.mxu0 %v404
  %1094 = vmatprep.subr.bf16.mxu0 0
  %1095 = vmatpush1.bf16.msra.mxu0 %v405
  %1096 = vmatprep.subr.bf16.mxu0 0
  %1097 = vmatpush1.bf16.msra.mxu0 %v406
  %1098 = vmatprep.subr.bf16.mxu0 0
  %1099 = vmatpush1.bf16.msra.mxu0 %v407
  %1100 = vmatprep.subr.bf16.mxu0 0
  %1101 = vmatpush1.bf16.msra.mxu0 %v408
  %1102 = vmatprep.subr.bf16.mxu0 0
  %1103 = vmatpush1.bf16.msra.mxu0 %v409
  %1104 = vmatprep.subr.bf16.mxu0 0
  %1105 = vmatpush1.bf16.msra.mxu0 %v410
  %1106 = vmatprep.subr.bf16.mxu0 0
  %1107 = vmatpush1.bf16.msra.mxu0 %v411
  %1108 = vmatprep.subr.bf16.mxu0 0
  %1109 = vmatpush1.bf16.msra.mxu0 %v412
  %1110 = vmatprep.subr.bf16.mxu0 0
  %1111 = vmatpush1.bf16.msra.mxu0 %v413
  %1112 = vmatprep.subr.bf16.mxu0 0
  %1113 = vmatpush1.bf16.msra.mxu0 %v414
  %1114 = vmatprep.subr.bf16.mxu0 0
  %1115 = vmatpush1.bf16.msra.mxu0 %v415
  %1116 = vmatprep.subr.bf16.mxu0 0
  %1117 = vmatpush1.bf16.msra.mxu0 %v416
  %1118 = vmatprep.mubr.bf16.mxu0 %v1055
  %1119 = vmatmul.mubr.bf16.gmra.mrb[0].mxu0 %v1054
  %v1120 = vpop.f32.mrb[0].mxu0
  %v1121 = vadd.f32 0.0, %v1120
  %v1122 = vpop.f32.mrb[0].mxu0
  %v1123 = vpop.f32.mrb[0].mxu0
  %v1124 = vadd.f32 0.0, %v1123
  %v1125 = vpop.f32.mrb[0].mxu0
  %1126 = vmatprep.mubr.bf16.mxu0 %v1062
  %1127 = vmatmul.mubr.bf16.gmra.mrb[0].mxu0 %v1061
  %v1128 = vpop.f32.mrb[0].mxu0
  %v1129 = vadd.f32 0.0, %v1128
  %v1130 = vpop.f32.mrb[0].mxu0
  %v1131 = vpop.f32.mrb[0].mxu0
  %v1132 = vadd.f32 0.0, %v1131
  %v1133 = vpop.f32.mrb[0].mxu0
  %1134 = vdwg.mxu0
  %1135 = vmatprep.subr.bf16.mxu0 0
  %1136 = vmatpush1.bf16.msra.mxu0 %v417
  %1137 = vmatprep.subr.bf16.mxu0 0
  %1138 = vmatpush1.bf16.msra.mxu0 %v418
  %1139 = vmatprep.subr.bf16.mxu0 0
  %1140 = vmatpush1.bf16.msra.mxu0 %v419
  %1141 = vmatprep.subr.bf16.mxu0 0
  %1142 = vmatpush1.bf16.msra.mxu0 %v420
  %1143 = vmatprep.subr.bf16.mxu0 0
  %1144 = vmatpush1.bf16.msra.mxu0 %v421
  %1145 = vmatprep.subr.bf16.mxu0 0
  %1146 = vmatpush1.bf16.msra.mxu0 %v422
  %1147 = vmatprep.subr.bf16.mxu0 0
  %1148 = vmatpush1.bf16.msra.mxu0 %v423
  %1149 = vmatprep.subr.bf16.mxu0 0
  %1150 = vmatpush1.bf16.msra.mxu0 %v424
  %1151 = vmatprep.subr.bf16.mxu0 0
  %1152 = vmatpush1.bf16.msra.mxu0 %v425
  %1153 = vmatprep.subr.bf16.mxu0 0
  %1154 = vmatpush1.bf16.msra.mxu0 %v426
  %1155 = vmatprep.subr.bf16.mxu0 0
  %1156 = vmatpush1.bf16.msra.mxu0 %v427
  %1157 = vmatprep.subr.bf16.mxu0 0
  %1158 = vmatpush1.bf16.msra.mxu0 %v428
  %1159 = vmatprep.subr.bf16.mxu0 0
  %1160 = vmatpush1.bf16.msra.mxu0 %v429
  %1161 = vmatprep.subr.bf16.mxu0 0
  %1162 = vmatpush1.bf16.msra.mxu0 %v430
  %1163 = vmatprep.subr.bf16.mxu0 0
  %1164 = vmatpush1.bf16.msra.mxu0 %v431
  %1165 = vmatprep.subr.bf16.mxu0 0
  %1166 = vmatpush1.bf16.msra.mxu0 %v432
  %1167 = vmatprep.mubr.bf16.mxu0 %v1057
  %1168 = vmatmul.mubr.bf16.gmra.mrb[0].mxu0 %v1056
  %v1169 = vpop.f32.mrb[0].mxu0
  %v1170 = vadd.f32 %v1121, %v1169
  %v1171 = vpop.f32.mrb[0].mxu0
  %v1172 = vpop.f32.mrb[0].mxu0
  %v1173 = vadd.f32 %v1124, %v1172
  %v1174 = vpop.f32.mrb[0].mxu0
  %1175 = vmatprep.mubr.bf16.mxu0 %v1064
  %1176 = vmatmul.mubr.bf16.gmra.mrb[0].mxu0 %v1063
  %v1177 = vpop.f32.mrb[0].mxu0
  %v1178 = vadd.f32 %v1129, %v1177
  %v1179 = vpop.f32.mrb[0].mxu0
  %v1180 = vpop.f32.mrb[0].mxu0
  %v1181 = vadd.f32 %v1132, %v1180
  %v1182 = vpop.f32.mrb[0].mxu0
  %1183 = vdwg.mxu0
  %1184 = vmatprep.subr.bf16.mxu0 0
  %1185 = vmatpush1.bf16.msra.mxu0 %v433
  %1186 = vmatprep.subr.bf16.mxu0 0
  %1187 = vmatpush1.bf16.msra.mxu0 %v434
  %1188 = vmatprep.subr.bf16.mxu0 0
  %1189 = vmatpush1.bf16.msra.mxu0 %v435
  %1190 = vmatprep.subr.bf16.mxu0 0
  %1191 = vmatpush1.bf16.msra.mxu0 %v436
  %1192 = vmatprep.subr.bf16.mxu0 0
  %1193 = vmatpush1.bf16.msra.mxu0 %v437
  %1194 = vmatprep.subr.bf16.mxu0 0
  %1195 = vmatpush1.bf16.msra.mxu0 %v438
  %1196 = vmatprep.subr.bf16.mxu0 0
  %1197 = vmatpush1.bf16.msra.mxu0 %v439
  %1198 = vmatprep.subr.bf16.mxu0 0
  %1199 = vmatpush1.bf16.msra.mxu0 %v440
  %1200 = vmatprep.subr.bf16.mxu0 0
  %1201 = vmatpush1.bf16.msra.mxu0 %v441
  %1202 = vmatprep.subr.bf16.mxu0 0
  %1203 = vmatpush1.bf16.msra.mxu0 %v442
  %1204 = vmatprep.subr.bf16.mxu0 0
  %1205 = vmatpush1.bf16.msra.mxu0 %v443
  %1206 = vmatprep.subr.bf16.mxu0 0
  %1207 = vmatpush1.bf16.msra.mxu0 %v444
  %1208 = vmatprep.subr.bf16.mxu0 0
  %1209 = vmatpush1.bf16.msra.mxu0 %v445
  %1210 = vmatprep.subr.bf16.mxu0 0
  %1211 = vmatpush1.bf16.msra.mxu0 %v446
  %1212 = vmatprep.subr.bf16.mxu0 0
  %1213 = vmatpush1.bf16.msra.mxu0 %v447
  %1214 = vmatprep.subr.bf16.mxu0 0
  %1215 = vmatpush1.bf16.msra.mxu0 %v448
  %1216 = vmatprep.mubr.bf16.mxu0 %v1059
  %1217 = vmatmul.mubr.bf16.gmra.mrb[0].mxu0 %v1058
  %v1218 = vpop.f32.mrb[0].mxu0
  %v1219 = vadd.f32 %v1170, %v1218
  %v1220 = vpop.f32.mrb[0].mxu0
  %v1221 = vpop.f32.mrb[0].mxu0
  %v1222 = vadd.f32 %v1173, %v1221
  %v1223 = vpop.f32.mrb[0].mxu0
  %1224 = vmatprep.mubr.bf16.mxu0 %v1066
  %1225 = vmatmul.mubr.bf16.gmra.mrb[0].mxu0 %v1065
  %v1226 = vpop.f32.mrb[0].mxu0
  %v1227 = vadd.f32 %v1178, %v1226
  %v1228 = vpop.f32.mrb[0].mxu0
  %v1229 = vpop.f32.mrb[0].mxu0
  %v1230 = vadd.f32 %v1181, %v1229
  %v1231 = vpop.f32.mrb[0].mxu0
  %1232 = vdwg.mxu0
  %1233 = vmatprep.subr.bf16.mxu0 0
  %1234 = vmatpush1.bf16.msra.mxu0 %v449
  %1235 = vmatprep.subr.bf16.mxu0 0
  %1236 = vmatpush1.bf16.msra.mxu0 %v450
  %1237 = vmatprep.subr.bf16.mxu0 0
  %1238 = vmatpush1.bf16.msra.mxu0 0
  %1239 = vmatprep.subr.bf16.mxu0 0
  %1240 = vmatpush1.bf16.msra.mxu0 0
  %1241 = vmatprep.subr.bf16.mxu0 0
  %1242 = vmatpush1.bf16.msra.mxu0 0
  %1243 = vmatprep.subr.bf16.mxu0 0
  %1244 = vmatpush1.bf16.msra.mxu0 0
  %1245 = vmatprep.subr.bf16.mxu0 0
  %1246 = vmatpush1.bf16.msra.mxu0 0
  %1247 = vmatprep.subr.bf16.mxu0 0
  %1248 = vmatpush1.bf16.msra.mxu0 0
  %1249 = vmatprep.subr.bf16.mxu0 0
  %1250 = vmatpush1.bf16.msra.mxu0 0
  %1251 = vmatprep.subr.bf16.mxu0 0
  %1252 = vmatpush1.bf16.msra.mxu0 0
  %1253 = vmatprep.subr.bf16.mxu0 0
  %1254 = vmatpush1.bf16.msra.mxu0 0
  %1255 = vmatprep.subr.bf16.mxu0 0
  %1256 = vmatpush1.bf16.msra.mxu0 0
  %1257 = vmatprep.subr.bf16.mxu0 0
  %1258 = vmatpush1.bf16.msra.mxu0 0
  %1259 = vmatprep.subr.bf16.mxu0 0
  %1260 = vmatpush1.bf16.msra.mxu0 0
  %1261 = vmatprep.subr.bf16.mxu0 0
  %1262 = vmatpush1.bf16.msra.mxu0 0
  %1263 = vmatprep.subr.bf16.mxu0 0
  %1264 = vmatpush1.bf16.msra.mxu0 0
  %1265 = vmatprep.mubr.bf16.mxu0 0
  %1266 = vmatmul.mubr.bf16.gmra.mrb[0].mxu0 %v1081
  %v1267 = vpop.f32.mrb[0].mxu0
  %v1268 = vadd.f32 %v1219, %v1267
  %v1269 = vpop.f32.mrb[0].mxu0
  %v1270 = vpop.f32.mrb[0].mxu0
  %v1271 = vadd.f32 %v1222, %v1270
  %v1272 = vpop.f32.mrb[0].mxu0
  %1273 = vmatprep.mubr.bf16.mxu0 0
  %1274 = vmatmul.mubr.bf16.gmra.mrb[0].mxu0 %v1084
  %v1275 = vpop.f32.mrb[0].mxu0
  %v1276 = vadd.f32 %v1227, %v1275
  %v1277 = vpop.f32.mrb[0].mxu0
  %v1278 = vpop.f32.mrb[0].mxu0
  %v1279 = vadd.f32 %v1230, %v1278
  %v1280 = vpop.f32.mrb[0].mxu0
  %1281 = vdwg.mxu0
  %s1282 = scalar_lea.vmem %s0, 336
  %v1283 = vld [vmem:[%s1282] sm:$0xff]
  %v1284 = vld [vmem:[%s1282 + $0x8] sm:$0xff]
  %v1285 = vld [vmem:[%s1282 + $0x10] sm:$0xff]
  %v1286 = vld [vmem:[%s1282 + $0x18] sm:$0xf]
  %v1287 = vld [vmem:[%s1282 + $0x1c] sm:$0xff]
  %v1288 = vld [vmem:[%s1282 + $0x24] sm:$0xff]
  %v1289 = vld [vmem:[%s1282 + $0x2c] sm:$0xff]
  %v1290 = vld [vmem:[%s1282 + $0x34] sm:$0xf]
  %v1291 = vld [vmem:[%s1282 + $0x38] sm:$0xff]
  %v1292 = vld [vmem:[%s1282 + $0x40] sm:$0xff]
  %v1293 = vld [vmem:[%s1282 + $0x48] sm:$0xff]
  %v1294 = vld [vmem:[%s1282 + $0x50] sm:$0xf]
  %v1295 = vld [vmem:[%s1282 + $0x54] sm:$0xff]
  %v1296 = vld [vmem:[%s1282 + $0x5c] sm:$0xff]
  %v1297 = vld [vmem:[%s1282 + $0x64] sm:$0xff]
  %v1298 = vld [vmem:[%s1282 + $0x6c] sm:$0xf]
  %v1315 = vunpack.c.l.b16 %v1283
  %v1316 = vunpack.c.h.b16 %v1283
  %v1317 = vunpack.c.l.b16 %v1284
  %v1318 = vunpack.c.h.b16 %v1284
  %v1319 = vunpack.c.l.b16 %v1285
  %v1320 = vunpack.c.h.b16 %v1285
  %v1321 = vunpack.c.l.b16 %v1286
  %v1322 = vunpack.c.l.b16 %v1287
  %v1323 = vunpack.c.h.b16 %v1287
  %v1324 = vunpack.c.l.b16 %v1288
  %v1325 = vunpack.c.h.b16 %v1288
  %v1326 = vunpack.c.l.b16 %v1289
  %v1327 = vunpack.c.h.b16 %v1289
  %v1328 = vunpack.c.l.b16 %v1290
  %v1329 = vunpack.c.l.b16 %v1291
  %v1330 = vunpack.c.h.b16 %v1291
  %v1331 = vunpack.c.l.b16 %v1292
  %v1332 = vunpack.c.h.b16 %v1292
  %v1333 = vunpack.c.l.b16 %v1293
  %v1334 = vunpack.c.h.b16 %v1293
  %v1335 = vunpack.c.l.b16 %v1294
  %v1336 = vunpack.c.l.b16 %v1295
  %v1337 = vunpack.c.h.b16 %v1295
  %v1338 = vunpack.c.l.b16 %v1296
  %v1339 = vunpack.c.h.b16 %v1296
  %v1340 = vunpack.c.l.b16 %v1297
  %v1341 = vunpack.c.h.b16 %v1297
  %v1342 = vunpack.c.l.b16 %v1298
  %v1343 = vpack.c.b16 %v1322, %v1315
  %v1344 = vpack.c.b16 %v1323, %v1316
  %v1345 = vpack.c.b16 %v1324, %v1317
  %v1346 = vpack.c.b16 %v1325, %v1318
  %v1347 = vpack.c.b16 %v1326, %v1319
  %v1348 = vpack.c.b16 %v1327, %v1320
  %v1349 = vpack.c.b16 %v1328, %v1321
  %v1350 = vpack.c.b16 %v1336, %v1329
  %v1351 = vpack.c.b16 %v1337, %v1330
  %v1352 = vpack.c.b16 %v1338, %v1331
  %v1353 = vpack.c.b16 %v1339, %v1332
  %v1354 = vpack.c.b16 %v1340, %v1333
  %v1355 = vpack.c.b16 %v1341, %v1334
  %v1356 = vpack.c.b16 %v1342, %v1335
  %v1370 = vsel %vm501, %v1349, 0
  %v1373 = vsel %vm501, %v1356, 0
  %1375 = vmatprep.subr.bf16.mxu0 0
  %1376 = vmatpush1.bf16.msra.mxu0 %v401
  %1377 = vmatprep.subr.bf16.mxu0 0
  %1378 = vmatpush1.bf16.msra.mxu0 %v402
  %1379 = vmatprep.subr.bf16.mxu0 0
  %1380 = vmatpush1.bf16.msra.mxu0 %v403
  %1381 = vmatprep.subr.bf16.mxu0 0
  %1382 = vmatpush1.bf16.msra.mxu0 %v404
  %1383 = vmatprep.subr.bf16.mxu0 0
  %1384 = vmatpush1.bf16.msra.mxu0 %v405
  %1385 = vmatprep.subr.bf16.mxu0 0
  %1386 = vmatpush1.bf16.msra.mxu0 %v406
  %1387 = vmatprep.subr.bf16.mxu0 0
  %1388 = vmatpush1.bf16.msra.mxu0 %v407
  %1389 = vmatprep.subr.bf16.mxu0 0
  %1390 = vmatpush1.bf16.msra.mxu0 %v408
  %1391 = vmatprep.subr.bf16.mxu0 0
  %1392 = vmatpush1.bf16.msra.mxu0 %v409
  %1393 = vmatprep.subr.bf16.mxu0 0
  %1394 = vmatpush1.bf16.msra.mxu0 %v410
  %1395 = vmatprep.subr.bf16.mxu0 0
  %1396 = vmatpush1.bf16.msra.mxu0 %v411
  %1397 = vmatprep.subr.bf16.mxu0 0
  %1398 = vmatpush1.bf16.msra.mxu0 %v412
  %1399 = vmatprep.subr.bf16.mxu0 0
  %1400 = vmatpush1.bf16.msra.mxu0 %v413
  %1401 = vmatprep.subr.bf16.mxu0 0
  %1402 = vmatpush1.bf16.msra.mxu0 %v414
  %1403 = vmatprep.subr.bf16.mxu0 0
  %1404 = vmatpush1.bf16.msra.mxu0 %v415
  %1405 = vmatprep.subr.bf16.mxu0 0
  %1406 = vmatpush1.bf16.msra.mxu0 %v416
  %1407 = vmatprep.mubr.bf16.mxu0 %v1344
  %1408 = vmatmul.mubr.bf16.gmra.mrb[0].mxu0 %v1343
  %v1409 = vpop.f32.mrb[0].mxu0
  %v1410 = vadd.f32 0.0, %v1409
  %v1411 = vpop.f32.mrb[0].mxu0
  %v1412 = vpop.f32.mrb[0].mxu0
  %v1413 = vadd.f32 0.0, %v1412
  %v1414 = vpop.f32.mrb[0].mxu0
  %1415 = vmatprep.mubr.bf16.mxu0 %v1351
  %1416 = vmatmul.mubr.bf16.gmra.mrb[0].mxu0 %v1350
  %v1417 = vpop.f32.mrb[0].mxu0
  %v1418 = vadd.f32 0.0, %v1417
  %v1419 = vpop.f32.mrb[0].mxu0
  %v1420 = vpop.f32.mrb[0].mxu0
  %v1421 = vadd.f32 0.0, %v1420
  %v1422 = vpop.f32.mrb[0].mxu0
  %1423 = vdwg.mxu0
  %1424 = vmatprep.subr.bf16.mxu0 0
  %1425 = vmatpush1.bf16.msra.mxu0 %v417
  %1426 = vmatprep.subr.bf16.mxu0 0
  %1427 = vmatpush1.bf16.msra.mxu0 %v418
  %1428 = vmatprep.subr.bf16.mxu0 0
  %1429 = vmatpush1.bf16.msra.mxu0 %v419
  %1430 = vmatprep.subr.bf16.mxu0 0
  %1431 = vmatpush1.bf16.msra.mxu0 %v420
  %1432 = vmatprep.subr.bf16.mxu0 0
  %1433 = vmatpush1.bf16.msra.mxu0 %v421
  %1434 = vmatprep.subr.bf16.mxu0 0
  %1435 = vmatpush1.bf16.msra.mxu0 %v422
  %1436 = vmatprep.subr.bf16.mxu0 0
  %1437 = vmatpush1.bf16.msra.mxu0 %v423
  %1438 = vmatprep.subr.bf16.mxu0 0
  %1439 = vmatpush1.bf16.msra.mxu0 %v424
  %1440 = vmatprep.subr.bf16.mxu0 0
  %1441 = vmatpush1.bf16.msra.mxu0 %v425
  %1442 = vmatprep.subr.bf16.mxu0 0
  %1443 = vmatpush1.bf16.msra.mxu0 %v426
  %1444 = vmatprep.subr.bf16.mxu0 0
  %1445 = vmatpush1.bf16.msra.mxu0 %v427
  %1446 = vmatprep.subr.bf16.mxu0 0
  %1447 = vmatpush1.bf16.msra.mxu0 %v428
  %1448 = vmatprep.subr.bf16.mxu0 0
  %1449 = vmatpush1.bf16.msra.mxu0 %v429
  %1450 = vmatprep.subr.bf16.mxu0 0
  %1451 = vmatpush1.bf16.msra.mxu0 %v430
  %1452 = vmatprep.subr.bf16.mxu0 0
  %1453 = vmatpush1.bf16.msra.mxu0 %v431
  %1454 = vmatprep.subr.bf16.mxu0 0
  %1455 = vmatpush1.bf16.msra.mxu0 %v432
  %1456 = vmatprep.mubr.bf16.mxu0 %v1346
  %1457 = vmatmul.mubr.bf16.gmra.mrb[0].mxu0 %v1345
  %v1458 = vpop.f32.mrb[0].mxu0
  %v1459 = vadd.f32 %v1410, %v1458
  %v1460 = vpop.f32.mrb[0].mxu0
  %v1461 = vpop.f32.mrb[0].mxu0
  %v1462 = vadd.f32 %v1413, %v1461
  %v1463 = vpop.f32.mrb[0].mxu0
  %1464 = vmatprep.mubr.bf16.mxu0 %v1353
  %1465 = vmatmul.mubr.bf16.gmra.mrb[0].mxu0 %v1352
  %v1466 = vpop.f32.mrb[0].mxu0
  %v1467 = vadd.f32 %v1418, %v1466
  %v1468 = vpop.f32.mrb[0].mxu0
  %v1469 = vpop.f32.mrb[0].mxu0
  %v1470 = vadd.f32 %v1421, %v1469
  %v1471 = vpop.f32.mrb[0].mxu0
  %1472 = vdwg.mxu0
  %1473 = vmatprep.subr.bf16.mxu0 0
  %1474 = vmatpush1.bf16.msra.mxu0 %v433
  %1475 = vmatprep.subr.bf16.mxu0 0
  %1476 = vmatpush1.bf16.msra.mxu0 %v434
  %1477 = vmatprep.subr.bf16.mxu0 0
  %1478 = vmatpush1.bf16.msra.mxu0 %v435
  %1479 = vmatprep.subr.bf16.mxu0 0
  %1480 = vmatpush1.bf16.msra.mxu0 %v436
  %1481 = vmatprep.subr.bf16.mxu0 0
  %1482 = vmatpush1.bf16.msra.mxu0 %v437
  %1483 = vmatprep.subr.bf16.mxu0 0
  %1484 = vmatpush1.bf16.msra.mxu0 %v438
  %1485 = vmatprep.subr.bf16.mxu0 0
  %1486 = vmatpush1.bf16.msra.mxu0 %v439
  %1487 = vmatprep.subr.bf16.mxu0 0
  %1488 = vmatpush1.bf16.msra.mxu0 %v440
  %1489 = vmatprep.subr.bf16.mxu0 0
  %1490 = vmatpush1.bf16.msra.mxu0 %v441
  %1491 = vmatprep.subr.bf16.mxu0 0
  %1492 = vmatpush1.bf16.msra.mxu0 %v442
  %1493 = vmatprep.subr.bf16.mxu0 0
  %1494 = vmatpush1.bf16.msra.mxu0 %v443
  %1495 = vmatprep.subr.bf16.mxu0 0
  %1496 = vmatpush1.bf16.msra.mxu0 %v444
  %1497 = vmatprep.subr.bf16.mxu0 0
  %1498 = vmatpush1.bf16.msra.mxu0 %v445
  %1499 = vmatprep.subr.bf16.mxu0 0
  %1500 = vmatpush1.bf16.msra.mxu0 %v446
  %1501 = vmatprep.subr.bf16.mxu0 0
  %1502 = vmatpush1.bf16.msra.mxu0 %v447
  %1503 = vmatprep.subr.bf16.mxu0 0
  %1504 = vmatpush1.bf16.msra.mxu0 %v448
  %1505 = vmatprep.mubr.bf16.mxu0 %v1348
  %1506 = vmatmul.mubr.bf16.gmra.mrb[0].mxu0 %v1347
  %v1507 = vpop.f32.mrb[0].mxu0
  %v1508 = vadd.f32 %v1459, %v1507
  %v1509 = vpop.f32.mrb[0].mxu0
  %v1510 = vpop.f32.mrb[0].mxu0
  %v1511 = vadd.f32 %v1462, %v1510
  %v1512 = vpop.f32.mrb[0].mxu0
  %1513 = vmatprep.mubr.bf16.mxu0 %v1355
  %1514 = vmatmul.mubr.bf16.gmra.mrb[0].mxu0 %v1354
  %v1515 = vpop.f32.mrb[0].mxu0
  %v1516 = vadd.f32 %v1467, %v1515
  %v1517 = vpop.f32.mrb[0].mxu0
  %v1518 = vpop.f32.mrb[0].mxu0
  %v1519 = vadd.f32 %v1470, %v1518
  %v1520 = vpop.f32.mrb[0].mxu0
  %1521 = vdwg.mxu0
  %1522 = vmatprep.subr.bf16.mxu0 0
  %1523 = vmatpush1.bf16.msra.mxu0 %v449
  %1524 = vmatprep.subr.bf16.mxu0 0
  %1525 = vmatpush1.bf16.msra.mxu0 %v450
  %1526 = vmatprep.subr.bf16.mxu0 0
  %1527 = vmatpush1.bf16.msra.mxu0 0
  %1528 = vmatprep.subr.bf16.mxu0 0
  %1529 = vmatpush1.bf16.msra.mxu0 0
  %1530 = vmatprep.subr.bf16.mxu0 0
  %1531 = vmatpush1.bf16.msra.mxu0 0
  %1532 = vmatprep.subr.bf16.mxu0 0
  %1533 = vmatpush1.bf16.msra.mxu0 0
  %1534 = vmatprep.subr.bf16.mxu0 0
  %1535 = vmatpush1.bf16.msra.mxu0 0
  %1536 = vmatprep.subr.bf16.mxu0 0
  %1537 = vmatpush1.bf16.msra.mxu0 0
  %1538 = vmatprep.subr.bf16.mxu0 0
  %1539 = vmatpush1.bf16.msra.mxu0 0
  %1540 = vmatprep.subr.bf16.mxu0 0
  %1541 = vmatpush1.bf16.msra.mxu0 0
  %1542 = vmatprep.subr.bf16.mxu0 0
  %1543 = vmatpush1.bf16.msra.mxu0 0
  %1544 = vmatprep.subr.bf16.mxu0 0
  %1545 = vmatpush1.bf16.msra.mxu0 0
  %1546 = vmatprep.subr.bf16.mxu0 0
  %1547 = vmatpush1.bf16.msra.mxu0 0
  %1548 = vmatprep.subr.bf16.mxu0 0
  %1549 = vmatpush1.bf16.msra.mxu0 0
  %1550 = vmatprep.subr.bf16.mxu0 0
  %1551 = vmatpush1.bf16.msra.mxu0 0
  %1552 = vmatprep.subr.bf16.mxu0 0
  %1553 = vmatpush1.bf16.msra.mxu0 0
  %1554 = vmatprep.mubr.bf16.mxu0 0
  %1555 = vmatmul.mubr.bf16.gmra.mrb[0].mxu0 %v1370
  %v1556 = vpop.f32.mrb[0].mxu0
  %v1557 = vadd.f32 %v1508, %v1556
  %v1558 = vpop.f32.mrb[0].mxu0
  %v1559 = vpop.f32.mrb[0].mxu0
  %v1560 = vadd.f32 %v1511, %v1559
  %v1561 = vpop.f32.mrb[0].mxu0
  %1562 = vmatprep.mubr.bf16.mxu0 0
  %1563 = vmatmul.mubr.bf16.gmra.mrb[0].mxu0 %v1373
  %v1564 = vpop.f32.mrb[0].mxu0
  %v1565 = vadd.f32 %v1516, %v1564
  %v1566 = vpop.f32.mrb[0].mxu0
  %v1567 = vpop.f32.mrb[0].mxu0
  %v1568 = vadd.f32 %v1519, %v1567
  %v1569 = vpop.f32.mrb[0].mxu0
  %1570 = vdwg.mxu0
  %v1571 = vmax.f32 %v690, %v979
  %v1572 = vmax.f32 %v693, %v982
  %v1573 = vmax.f32 %v698, %v987
  %v1574 = vmax.f32 %v701, %v990
  %v1575 = vmax.f32 %v1268, %v1557
  %v1576 = vmax.f32 %v1271, %v1560
  %v1577 = vmax.f32 %v1276, %v1565
  %v1578 = vmax.f32 %v1279, %v1568
  %v1579 = vmax.f32 %v1571, %v1575
  %v1580 = vmax.f32 %v1572, %v1576
  %v1581 = vmax.f32 %v1573, %v1577
  %v1582 = vmax.f32 %v1574, %v1578
  %v1583 = vld [vmem:[%s2] sm:$0x1]
  %v1585 = vlaneseq
  %v1586 = vshrl.u32 %v1585, 7
  %v1587 = vsub.s32 0, %v1586
  %v1588 = vrot.slane %v1583, %v1587
  %v1590 = vadd.f32 %v1579, %v1588
  %v1591 = vadd.f32 %v1580, %v1588
  %v1592 = vadd.f32 %v1581, %v1588
  %v1593 = vadd.f32 %v1582, %v1588
  %v1594 = vmax.f32 %v1590, 0.0
  %v1595 = vmax.f32 %v1591, 0.0
  %v1596 = vmax.f32 %v1592, 0.0
  %v1597 = vmax.f32 %v1593, 0.0
  %v1598 = vpack.c.bf16 %v1595, %v1594
  %v1599 = vpack.c.bf16 %v1597, %v1596
  %v1602 = vunpack.c.l.b16 %v1598
  %v1603 = vunpack.c.h.b16 %v1598
  %v1604 = vunpack.c.l.b16 %v1599
  %v1605 = vunpack.c.h.b16 %v1599
  %v1606 = vpack.c.b16 %v1602, %v1602
  %v1607 = vpack.c.b16 %v1603, %v1603
  %v1608 = vpack.c.b16 %v1604, %v1604
  %v1609 = vpack.c.b16 %v1605, %v1605
  %vm1614 = vcmask 519168
  %1615 = vst.msk [vmem:[%s3] sm:$0xf] %vm1614, %v1606
  %1616 = vst.msk [vmem:[%s3 + $0x4] sm:$0xf] %vm1614, %v1607
  %1617 = vst.msk [vmem:[%s3 + $0x8] sm:$0xf] %vm1614, %v1608
  %1618 = vst.msk [vmem:[%s3 + $0xc] sm:$0xf] %vm1614, %v1609
  // Predicated region
  $region14: #{convnet_forward.4} parent=0 // pred_check
    _
  $region15: #{convnet_forward.4} parent=0 // pred_check_branch
    %1620 = sbr.rel (0) target = $region17
  $region16: #{convnet_forward.4} parent=0 // pred_region
    _
  $region17: #{convnet_forward.4} parent=0 // pred_fallthru
    _
  // Predicated region
  $region18: #{convnet_forward.4} parent=0 // pred_check
    _
  $region19: #{convnet_forward.4} parent=0 // pred_check_branch
    %1622 = sbr.rel (0) target = $region21
  $region20: #{convnet_forward.4} parent=0 // pred_region
    _
  $region21: #{convnet_forward.4} parent=0 // pred_fallthru
    _

// kernel: convnet_forward.5
$region0: #{convnet_forward.5}
  #allocation0 [shape = 'u32[]', space=smem, size = 0x4, offset = 0x4, fixed_abs, tag = 'smem constant byte address 0x4 - core index']
  #allocation1 [shape = 'u32[144,128]{1,0:T(1,128)}', space=vmem, size = 0x12000, scoped, tag = 'internal scratch']
  %s0 = inlined_call_operand.vmem [shape: bf16[2,1024], index: 0, kind: input, shape index: {}]
  %s1 = inlined_call_operand.vmem [shape: bf16[1024,32], index: 1, kind: input, shape index: {}]
  %s2 = inlined_call_operand.vmem [shape: f32[1,32], index: 2, kind: input, shape index: {}]
  %s3 = inlined_call_operand.vmem [shape: bf16[32,10], index: 3, kind: input, shape index: {}]
  %s4 = inlined_call_operand.vmem [shape: f32[1,10], index: 4, kind: input, shape index: {}]
  %s5 = inlined_call_operand.hbm [shape: f32[2,10], index: 5, kind: output, shape index: {}]
  %s6 = sld [smem:[#allocation0]]
  $region30: #{convnet_forward.5} parent=0
    _
  %s8 = ssub.s32 1, %s6
  %s9 = scalar_select 0, %s8, %s6
  $region1: #{convnet_forward.5} parent=0
    #allocation2 [shape = 'u8[1024]{0}', space=vmem, size = 0x400, scoped, tag = 'output window, operand 0, single buffered']
    #allocation3 [shape = 's32[1]{0}', space=sflag, size = 0x4, scoped, tag = 'scoped memory for convnet_forward.5']
    %10 = vsyncpa [#allocation3], 0
    // Predicated region
    $region2: #{convnet_forward.5} parent=1 // pred_check
      _
    $region3: #{convnet_forward.5} parent=1 // pred_check_branch
      %12 = sbr.rel (0) target = $region5
    $region4: #{convnet_forward.5} parent=1 // pred_region
      _
    $region5: #{convnet_forward.5} parent=1 // pred_fallthru
      _
    // Predicated region
    $region6: #{convnet_forward.5} parent=1 // pred_check
      _
    $region7: #{convnet_forward.5} parent=1 // pred_check_branch
      %14 = sbr.rel (0) target = $region9
    $region8: #{convnet_forward.5} parent=1 // pred_region
      _
    $region9: #{convnet_forward.5} parent=1 // pred_fallthru
      _
    // Predicated region
    $region10: #{convnet_forward.5} parent=1 // pred_check
      _
    $region11: #{convnet_forward.5} parent=1 // pred_check_branch
      %16 = sbr.rel (0) target = $region13
    $region12: #{convnet_forward.5} parent=1 // pred_region
      _
    $region13: #{convnet_forward.5} parent=1 // pred_fallthru
      _
    // Predicated region
    $region14: #{convnet_forward.5} parent=1 // pred_check
      _
    $region15: #{convnet_forward.5} parent=1 // pred_check_branch
      %18 = sbr.rel (0) target = $region17
    $region16: #{convnet_forward.5} parent=1 // pred_region
      _
    $region17: #{convnet_forward.5} parent=1 // pred_fallthru
      _
    // Predicated region
    $region18: #{convnet_forward.5} parent=1 // pred_check
      _
    $region19: #{convnet_forward.5} parent=1 // pred_check_branch
      %20 = sbr.rel (0) target = $region21
    $region20: #{convnet_forward.5} parent=1 // pred_region
      _
    $region21: #{convnet_forward.5} parent=1 // pred_fallthru
      _
    %v22 = vld [vmem:[%s0] sm:$0xff]
    %v23 = vld [vmem:[%s1] sm:$0xf]
    %v24 = vld [vmem:[%s1 + $0x4] sm:$0xf]
    %v25 = vld [vmem:[%s1 + $0x8] sm:$0xf]
    %v26 = vld [vmem:[%s1 + $0xc] sm:$0xf]
    %v27 = vld [vmem:[%s1 + $0x10] sm:$0xf]
    %v28 = vld [vmem:[%s1 + $0x14] sm:$0xf]
    %v29 = vld [vmem:[%s1 + $0x18] sm:$0xf]
    %v30 = vld [vmem:[%s1 + $0x1c] sm:$0xf]
    %v31 = vld [vmem:[%s1 + $0x20] sm:$0xf]
    %v32 = vld [vmem:[%s1 + $0x24] sm:$0xf]
    %v33 = vld [vmem:[%s1 + $0x28] sm:$0xf]
    %v34 = vld [vmem:[%s1 + $0x2c] sm:$0xf]
    %v35 = vld [vmem:[%s1 + $0x30] sm:$0xf]
    %v36 = vld [vmem:[%s1 + $0x34] sm:$0xf]
    %v37 = vld [vmem:[%s1 + $0x38] sm:$0xf]
    %v38 = vld [vmem:[%s1 + $0x3c] sm:$0xf]
    %v39 = vld [vmem:[%s1 + $0x40] sm:$0xf]
    %v40 = vld [vmem:[%s1 + $0x44] sm:$0xf]
    %v41 = vld [vmem:[%s1 + $0x48] sm:$0xf]
    %v42 = vld [vmem:[%s1 + $0x4c] sm:$0xf]
    %v43 = vld [vmem:[%s1 + $0x50] sm:$0xf]
    %v44 = vld [vmem:[%s1 + $0x54] sm:$0xf]
    %v45 = vld [vmem:[%s1 + $0x58] sm:$0xf]
    %v46 = vld [vmem:[%s1 + $0x5c] sm:$0xf]
    %v47 = vld [vmem:[%s1 + $0x60] sm:$0xf]
    %v48 = vld [vmem:[%s1 + $0x64] sm:$0xf]
    %v49 = vld [vmem:[%s1 + $0x68] sm:$0xf]
    %v50 = vld [vmem:[%s1 + $0x6c] sm:$0xf]
    %v51 = vld [vmem:[%s1 + $0x70] sm:$0xf]
    %v52 = vld [vmem:[%s1 + $0x74] sm:$0xf]
    %v53 = vld [vmem:[%s1 + $0x78] sm:$0xf]
    %v54 = vld [vmem:[%s1 + $0x7c] sm:$0xf]
    %v55 = vld [vmem:[%s1 + $0x80] sm:$0xf]
    %v56 = vld [vmem:[%s1 + $0x84] sm:$0xf]
    %v57 = vld [vmem:[%s1 + $0x88] sm:$0xf]
    %v58 = vld [vmem:[%s1 + $0x8c] sm:$0xf]
    %v59 = vld [vmem:[%s1 + $0x90] sm:$0xf]
    %v60 = vld [vmem:[%s1 + $0x94] sm:$0xf]
    %v61 = vld [vmem:[%s1 + $0x98] sm:$0xf]
    %v62 = vld [vmem:[%s1 + $0x9c] sm:$0xf]
    %v63 = vld [vmem:[%s1 + $0xa0] sm:$0xf]
    %v64 = vld [vmem:[%s1 + $0xa4] sm:$0xf]
    %v65 = vld [vmem:[%s1 + $0xa8] sm:$0xf]
    %v66 = vld [vmem:[%s1 + $0xac] sm:$0xf]
    %v67 = vld [vmem:[%s1 + $0xb0] sm:$0xf]
    %v68 = vld [vmem:[%s1 + $0xb4] sm:$0xf]
    %v69 = vld [vmem:[%s1 + $0xb8] sm:$0xf]
    %v70 = vld [vmem:[%s1 + $0xbc] sm:$0xf]
    %v71 = vld [vmem:[%s1 + $0xc0] sm:$0xf]
    %v72 = vld [vmem:[%s1 + $0xc4] sm:$0xf]
    %v73 = vld [vmem:[%s1 + $0xc8] sm:$0xf]
    %v74 = vld [vmem:[%s1 + $0xcc] sm:$0xf]
    %v75 = vld [vmem:[%s1 + $0xd0] sm:$0xf]
    %v76 = vld [vmem:[%s1 + $0xd4] sm:$0xf]
    %v77 = vld [vmem:[%s1 + $0xd8] sm:$0xf]
    %v78 = vld [vmem:[%s1 + $0xdc] sm:$0xf]
    %v79 = vld [vmem:[%s1 + $0xe0] sm:$0xf]
    %v80 = vld [vmem:[%s1 + $0xe4] sm:$0xf]
    %v81 = vld [vmem:[%s1 + $0xe8] sm:$0xf]
    %v82 = vld [vmem:[%s1 + $0xec] sm:$0xf]
    %v83 = vld [vmem:[%s1 + $0xf0] sm:$0xf]
    %v84 = vld [vmem:[%s1 + $0xf4] sm:$0xf]
    %v85 = vld [vmem:[%s1 + $0xf8] sm:$0xf]
    %v86 = vld [vmem:[%s1 + $0xfc] sm:$0xf]
    %v87 = vld [vmem:[%s1 + $0x100] sm:$0xf]
    %v88 = vld [vmem:[%s1 + $0x104] sm:$0xf]
    %v89 = vld [vmem:[%s1 + $0x108] sm:$0xf]
    %v90 = vld [vmem:[%s1 + $0x10c] sm:$0xf]
    %v91 = vld [vmem:[%s1 + $0x110] sm:$0xf]
    %v92 = vld [vmem:[%s1 + $0x114] sm:$0xf]
    %v93 = vld [vmem:[%s1 + $0x118] sm:$0xf]
    %v94 = vld [vmem:[%s1 + $0x11c] sm:$0xf]
    %v95 = vld [vmem:[%s1 + $0x120] sm:$0xf]
    %v96 = vld [vmem:[%s1 + $0x124] sm:$0xf]
    %v97 = vld [vmem:[%s1 + $0x128] sm:$0xf]
    %v98 = vld [vmem:[%s1 + $0x12c] sm:$0xf]
    %v99 = vld [vmem:[%s1 + $0x130] sm:$0xf]
    %v100 = vld [vmem:[%s1 + $0x134] sm:$0xf]
    %v101 = vld [vmem:[%s1 + $0x138] sm:$0xf]
    %v102 = vld [vmem:[%s1 + $0x13c] sm:$0xf]
    %v103 = vld [vmem:[%s1 + $0x140] sm:$0xf]
    %v104 = vld [vmem:[%s1 + $0x144] sm:$0xf]
    %v105 = vld [vmem:[%s1 + $0x148] sm:$0xf]
    %v106 = vld [vmem:[%s1 + $0x14c] sm:$0xf]
    %v107 = vld [vmem:[%s1 + $0x150] sm:$0xf]
    %v108 = vld [vmem:[%s1 + $0x154] sm:$0xf]
    %v109 = vld [vmem:[%s1 + $0x158] sm:$0xf]
    %v110 = vld [vmem:[%s1 + $0x15c] sm:$0xf]
    %v111 = vld [vmem:[%s1 + $0x160] sm:$0xf]
    %v112 = vld [vmem:[%s1 + $0x164] sm:$0xf]
    %v113 = vld [vmem:[%s1 + $0x168] sm:$0xf]
    %v114 = vld [vmem:[%s1 + $0x16c] sm:$0xf]
    %v115 = vld [vmem:[%s1 + $0x170] sm:$0xf]
    %v116 = vld [vmem:[%s1 + $0x174] sm:$0xf]
    %v117 = vld [vmem:[%s1 + $0x178] sm:$0xf]
    %v118 = vld [vmem:[%s1 + $0x17c] sm:$0xf]
    %v119 = vld [vmem:[%s1 + $0x180] sm:$0xf]
    %v120 = vld [vmem:[%s1 + $0x184] sm:$0xf]
    %v121 = vld [vmem:[%s1 + $0x188] sm:$0xf]
    %v122 = vld [vmem:[%s1 + $0x18c] sm:$0xf]
    %v123 = vld [vmem:[%s1 + $0x190] sm:$0xf]
    %v124 = vld [vmem:[%s1 + $0x194] sm:$0xf]
    %v125 = vld [vmem:[%s1 + $0x198] sm:$0xf]
    %v126 = vld [vmem:[%s1 + $0x19c] sm:$0xf]
    %v127 = vld [vmem:[%s1 + $0x1a0] sm:$0xf]
    %v128 = vld [vmem:[%s1 + $0x1a4] sm:$0xf]
    %v129 = vld [vmem:[%s1 + $0x1a8] sm:$0xf]
    %v130 = vld [vmem:[%s1 + $0x1ac] sm:$0xf]
    %v131 = vld [vmem:[%s1 + $0x1b0] sm:$0xf]
    %v132 = vld [vmem:[%s1 + $0x1b4] sm:$0xf]
    %v133 = vld [vmem:[%s1 + $0x1b8] sm:$0xf]
    %v134 = vld [vmem:[%s1 + $0x1bc] sm:$0xf]
    %v135 = vld [vmem:[%s1 + $0x1c0] sm:$0xf]
    %v136 = vld [vmem:[%s1 + $0x1c4] sm:$0xf]
    %v137 = vld [vmem:[%s1 + $0x1c8] sm:$0xf]
    %v138 = vld [vmem:[%s1 + $0x1cc] sm:$0xf]
    %v139 = vld [vmem:[%s1 + $0x1d0] sm:$0xf]
    %v140 = vld [vmem:[%s1 + $0x1d4] sm:$0xf]
    %v141 = vld [vmem:[%s1 + $0x1d8] sm:$0xf]
    %v142 = vld [vmem:[%s1 + $0x1dc] sm:$0xf]
    %v143 = vld [vmem:[%s1 + $0x1e0] sm:$0xf]
    %v144 = vld [vmem:[%s1 + $0x1e4] sm:$0xf]
    %v145 = vld [vmem:[%s1 + $0x1e8] sm:$0xf]
    %v146 = vld [vmem:[%s1 + $0x1ec] sm:$0xf]
    %v147 = vld [vmem:[%s1 + $0x1f0] sm:$0xf]
    %v148 = vld [vmem:[%s1 + $0x1f4] sm:$0xf]
    %v149 = vld [vmem:[%s1 + $0x1f8] sm:$0xf]
    %v150 = vld [vmem:[%s1 + $0x1fc] sm:$0xf]
    %v151 = vld [vmem:[%s2] sm:$0x1]
    %v153 = vlaneseq
    %v154 = vshrl.u32 %v153, 7
    %v155 = vsub.s32 0, %v154
    %v156 = vrot.slane %v151, %v155
    %v159 = vcombine.high %v22, %v22
    %v161 = vunpack.c.l.s4 1966171168
    %v162 = vunpack.c.0.s8 %v161
    %v163 = vlaneseq
    %v164 = vshrl.u32 %v163, 7
    %v165 = vsub.s32 %v162, %v164
    %v166 = vrot.slane %v22, %v165
    %v168 = vunpack.c.l.s4 1966171168
    %v169 = vunpack.c.0.s8 %v168
    %v170 = vlaneseq
    %v171 = vshrl.u32 %v170, 7
    %v172 = vsub.s32 %v169, %v171
    %v173 = vrot.slane %v159, %v172
    %v174 = vcombine.high %v166, %v166
    %v175 = vcombine.high %v173, %v173
    %v177 = vunpack.c.l.s4 1966171168
    %v178 = vunpack.c.0.s8 %v177
    %v179 = vlaneseq
    %v180 = vshrl.u32 %v179, 7
    %v181 = vsub.s32 %v178, %v180
    %v182 = vrot.slane %v166, %v181
    %v184 = vunpack.c.l.s4 1966171168
    %v185 = vunpack.c.0.s8 %v184
    %v186 = vlaneseq
    %v187 = vshrl.u32 %v186, 7
    %v188 = vsub.s32 %v185, %v187
    %v189 = vrot.slane %v173, %v188
    %v191 = vunpack.c.l.s4 1966171168
    %v192 = vunpack.c.0.s8 %v191
    %v193 = vlaneseq
    %v194 = vshrl.u32 %v193, 7
    %v195 = vsub.s32 %v192, %v194
    %v196 = vrot.slane %v174, %v195
    %v198 = vunpack.c.l.s4 1966171168
    %v199 = vunpack.c.0.s8 %v198
    %v200 = vlaneseq
    %v201 = vshrl.u32 %v200, 7
    %v202 = vsub.s32 %v199, %v201
    %v203 = vrot.slane %v175, %v202
    %v204 = vcombine.high %v182, %v182
    %v205 = vcombine.high %v189, %v189
    %v206 = vcombine.high %v196, %v196
    %v207 = vcombine.high %v203, %v203
    %v344 = vunpack.c.l.b16 %v23
    %v345 = vunpack.c.l.b16 %v24
    %v346 = vunpack.c.l.b16 %v25
    %v347 = vunpack.c.l.b16 %v26
    %v348 = vunpack.c.l.b16 %v27
    %v349 = vunpack.c.l.b16 %v28
    %v350 = vunpack.c.l.b16 %v29
    %v351 = vunpack.c.l.b16 %v30
    %v352 = vunpack.c.l.b16 %v31
    %v353 = vunpack.c.l.b16 %v32
    %v354 = vunpack.c.l.b16 %v33
    %v355 = vunpack.c.l.b16 %v34
    %v356 = vunpack.c.l.b16 %v35
    %v357 = vunpack.c.l.b16 %v36
    %v358 = vunpack.c.l.b16 %v37
    %v359 = vunpack.c.l.b16 %v38
    %v360 = vunpack.c.l.b16 %v39
    %v361 = vunpack.c.l.b16 %v40
    %v362 = vunpack.c.l.b16 %v41
    %v363 = vunpack.c.l.b16 %v42
    %v364 = vunpack.c.l.b16 %v43
    %v365 = vunpack.c.l.b16 %v44
    %v366 = vunpack.c.l.b16 %v45
    %v367 = vunpack.c.l.b16 %v46
    %v368 = vunpack.c.l.b16 %v47
    %v369 = vunpack.c.l.b16 %v48
    %v370 = vunpack.c.l.b16 %v49
    %v371 = vunpack.c.l.b16 %v50
    %v372 = vunpack.c.l.b16 %v51
    %v373 = vunpack.c.l.b16 %v52
    %v374 = vunpack.c.l.b16 %v53
    %v375 = vunpack.c.l.b16 %v54
    %v376 = vunpack.c.l.b16 %v55
    %v377 = vunpack.c.l.b16 %v56
    %v378 = vunpack.c.l.b16 %v57
    %v379 = vunpack.c.l.b16 %v58
    %v380 = vunpack.c.l.b16 %v59
    %v381 = vunpack.c.l.b16 %v60
    %v382 = vunpack.c.l.b16 %v61
    %v383 = vunpack.c.l.b16 %v62
    %v384 = vunpack.c.l.b16 %v63
    %v385 = vunpack.c.l.b16 %v64
    %v386 = vunpack.c.l.b16 %v65
    %v387 = vunpack.c.l.b16 %v66
    %v388 = vunpack.c.l.b16 %v67
    %v389 = vunpack.c.l.b16 %v68
    %v390 = vunpack.c.l.b16 %v69
    %v391 = vunpack.c.l.b16 %v70
    %v392 = vunpack.c.l.b16 %v71
    %v393 = vunpack.c.l.b16 %v72
    %v394 = vunpack.c.l.b16 %v73
    %v395 = vunpack.c.l.b16 %v74
    %v396 = vunpack.c.l.b16 %v75
    %v397 = vunpack.c.l.b16 %v76
    %v398 = vunpack.c.l.b16 %v77
    %v399 = vunpack.c.l.b16 %v78
    %v400 = vunpack.c.l.b16 %v79
    %v401 = vunpack.c.l.b16 %v80
    %v402 = vunpack.c.l.b16 %v81
    %v403 = vunpack.c.l.b16 %v82
    %v404 = vunpack.c.l.b16 %v83
    %v405 = vunpack.c.l.b16 %v84
    %v406 = vunpack.c.l.b16 %v85
    %v407 = vunpack.c.l.b16 %v86
    %v408 = vunpack.c.l.b16 %v87
    %v409 = vunpack.c.l.b16 %v88
    %v410 = vunpack.c.l.b16 %v89
    %v411 = vunpack.c.l.b16 %v90
    %v412 = vunpack.c.l.b16 %v91
    %v413 = vunpack.c.l.b16 %v92
    %v414 = vunpack.c.l.b16 %v93
    %v415 = vunpack.c.l.b16 %v94
    %v416 = vunpack.c.l.b16 %v95
    %v417 = vunpack.c.l.b16 %v96
    %v418 = vunpack.c.l.b16 %v97
    %v419 = vunpack.c.l.b16 %v98
    %v420 = vunpack.c.l.b16 %v99
    %v421 = vunpack.c.l.b16 %v100
    %v422 = vunpack.c.l.b16 %v101
    %v423 = vunpack.c.l.b16 %v102
    %v424 = vunpack.c.l.b16 %v103
    %v425 = vunpack.c.l.b16 %v104
    %v426 = vunpack.c.l.b16 %v105
    %v427 = vunpack.c.l.b16 %v106
    %v428 = vunpack.c.l.b16 %v107
    %v429 = vunpack.c.l.b16 %v108
    %v430 = vunpack.c.l.b16 %v109
    %v431 = vunpack.c.l.b16 %v110
    %v432 = vunpack.c.l.b16 %v111
    %v433 = vunpack.c.l.b16 %v112
    %v434 = vunpack.c.l.b16 %v113
    %v435 = vunpack.c.l.b16 %v114
    %v436 = vunpack.c.l.b16 %v115
    %v437 = vunpack.c.l.b16 %v116
    %v438 = vunpack.c.l.b16 %v117
    %v439 = vunpack.c.l.b16 %v118
    %v440 = vunpack.c.l.b16 %v119
    %v441 = vunpack.c.l.b16 %v120
    %v442 = vunpack.c.l.b16 %v121
    %v443 = vunpack.c.l.b16 %v122
    %v444 = vunpack.c.l.b16 %v123
    %v445 = vunpack.c.l.b16 %v124
    %v446 = vunpack.c.l.b16 %v125
    %v447 = vunpack.c.l.b16 %v126
    %v448 = vunpack.c.l.b16 %v127
    %v449 = vunpack.c.l.b16 %v128
    %v450 = vunpack.c.l.b16 %v129
    %v451 = vunpack.c.l.b16 %v130
    %v452 = vunpack.c.l.b16 %v131
    %v453 = vunpack.c.l.b16 %v132
    %v454 = vunpack.c.l.b16 %v133
    %v455 = vunpack.c.l.b16 %v134
    %v456 = vunpack.c.l.b16 %v135
    %v457 = vunpack.c.l.b16 %v136
    %v458 = vunpack.c.l.b16 %v137
    %v459 = vunpack.c.l.b16 %v138
    %v460 = vunpack.c.l.b16 %v139
    %v461 = vunpack.c.l.b16 %v140
    %v462 = vunpack.c.l.b16 %v141
    %v463 = vunpack.c.l.b16 %v142
    %v464 = vunpack.c.l.b16 %v143
    %v465 = vunpack.c.l.b16 %v144
    %v466 = vunpack.c.l.b16 %v145
    %v467 = vunpack.c.l.b16 %v146
    %v468 = vunpack.c.l.b16 %v147
    %v469 = vunpack.c.l.b16 %v148
    %v470 = vunpack.c.l.b16 %v149
    %v471 = vunpack.c.l.b16 %v150
    %v472 = vpack.c.b16 %v345, %v344
    %v473 = vpack.c.b16 %v347, %v346
    %v474 = vpack.c.b16 %v349, %v348
    %v475 = vpack.c.b16 %v351, %v350
    %v476 = vpack.c.b16 %v353, %v352
    %v477 = vpack.c.b16 %v355, %v354
    %v478 = vpack.c.b16 %v357, %v356
    %v479 = vpack.c.b16 %v359, %v358
    %v480 = vpack.c.b16 %v361, %v360
    %v481 = vpack.c.b16 %v363, %v362
    %v482 = vpack.c.b16 %v365, %v364
    %v483 = vpack.c.b16 %v367, %v366
    %v484 = vpack.c.b16 %v369, %v368
    %v485 = vpack.c.b16 %v371, %v370
    %v486 = vpack.c.b16 %v373, %v372
    %v487 = vpack.c.b16 %v375, %v374
    %v488 = vpack.c.b16 %v377, %v376
    %v489 = vpack.c.b16 %v379, %v378
    %v490 = vpack.c.b16 %v381, %v380
    %v491 = vpack.c.b16 %v383, %v382
    %v492 = vpack.c.b16 %v385, %v384
    %v493 = vpack.c.b16 %v387, %v386
    %v494 = vpack.c.b16 %v389, %v388
    %v495 = vpack.c.b16 %v391, %v390
    %v496 = vpack.c.b16 %v393, %v392
    %v497 = vpack.c.b16 %v395, %v394
    %v498 = vpack.c.b16 %v397, %v396
    %v499 = vpack.c.b16 %v399, %v398
    %v500 = vpack.c.b16 %v401, %v400
    %v501 = vpack.c.b16 %v403, %v402
    %v502 = vpack.c.b16 %v405, %v404
    %v503 = vpack.c.b16 %v407, %v406
    %v504 = vpack.c.b16 %v409, %v408
    %v505 = vpack.c.b16 %v411, %v410
    %v506 = vpack.c.b16 %v413, %v412
    %v507 = vpack.c.b16 %v415, %v414
    %v508 = vpack.c.b16 %v417, %v416
    %v509 = vpack.c.b16 %v419, %v418
    %v510 = vpack.c.b16 %v421, %v420
    %v511 = vpack.c.b16 %v423, %v422
    %v512 = vpack.c.b16 %v425, %v424
    %v513 = vpack.c.b16 %v427, %v426
    %v514 = vpack.c.b16 %v429, %v428
    %v515 = vpack.c.b16 %v431, %v430
    %v516 = vpack.c.b16 %v433, %v432
    %v517 = vpack.c.b16 %v435, %v434
    %v518 = vpack.c.b16 %v437, %v436
    %v519 = vpack.c.b16 %v439, %v438
    %v520 = vpack.c.b16 %v441, %v440
    %v521 = vpack.c.b16 %v443, %v442
    %v522 = vpack.c.b16 %v445, %v444
    %v523 = vpack.c.b16 %v447, %v446
    %v524 = vpack.c.b16 %v449, %v448
    %v525 = vpack.c.b16 %v451, %v450
    %v526 = vpack.c.b16 %v453, %v452
    %v527 = vpack.c.b16 %v455, %v454
    %v528 = vpack.c.b16 %v457, %v456
    %v529 = vpack.c.b16 %v459, %v458
    %v530 = vpack.c.b16 %v461, %v460
    %v531 = vpack.c.b16 %v463, %v462
    %v532 = vpack.c.b16 %v465, %v464
    %v533 = vpack.c.b16 %v467, %v466
    %v534 = vpack.c.b16 %v469, %v468
    %v535 = vpack.c.b16 %v471, %v470
    %600 = vmatprep.subr.bf16.mxu0 0
    %601 = vmatpush1.bf16.msra.mxu0 %v472
    %602 = vmatprep.subr.bf16.mxu0 0
    %603 = vmatpush1.bf16.msra.mxu0 %v473
    %604 = vmatprep.subr.bf16.mxu0 0
    %605 = vmatpush1.bf16.msra.mxu0 %v474
    %606 = vmatprep.subr.bf16.mxu0 0
    %607 = vmatpush1.bf16.msra.mxu0 %v475
    %608 = vmatprep.subr.bf16.mxu0 0
    %609 = vmatpush1.bf16.msra.mxu0 %v476
    %610 = vmatprep.subr.bf16.mxu0 0
    %611 = vmatpush1.bf16.msra.mxu0 %v477
    %612 = vmatprep.subr.bf16.mxu0 0
    %613 = vmatpush1.bf16.msra.mxu0 %v478
    %614 = vmatprep.subr.bf16.mxu0 0
    %615 = vmatpush1.bf16.msra.mxu0 %v479
    %616 = vmatprep.subr.bf16.mxu0 0
    %617 = vmatpush1.bf16.msra.mxu0 %v480
    %618 = vmatprep.subr.bf16.mxu0 0
    %619 = vmatpush1.bf16.msra.mxu0 %v481
    %620 = vmatprep.subr.bf16.mxu0 0
    %621 = vmatpush1.bf16.msra.mxu0 %v482
    %622 = vmatprep.subr.bf16.mxu0 0
    %623 = vmatpush1.bf16.msra.mxu0 %v483
    %624 = vmatprep.subr.bf16.mxu0 0
    %625 = vmatpush1.bf16.msra.mxu0 %v484
    %626 = vmatprep.subr.bf16.mxu0 0
    %627 = vmatpush1.bf16.msra.mxu0 %v485
    %628 = vmatprep.subr.bf16.mxu0 0
    %629 = vmatpush1.bf16.msra.mxu0 %v486
    %630 = vmatprep.subr.bf16.mxu0 0
    %631 = vmatpush1.bf16.msra.mxu0 %v487
    %632 = vmatprep.mubr.bf16.mxu0 %v196
    %633 = vmatmul.mubr.bf16.gmra.mrb[0].mxu0 %v182
    %v634 = vpop.f32.mrb[0].mxu0
    %v635 = vadd.f32 %v156, %v634
    %v636 = vpop.f32.mrb[0].mxu0
    %v637 = vpop.f32.mrb[0].mxu0
    %v638 = vpop.f32.mrb[0].mxu0
    %639 = vdwg.mxu0
    %640 = vmatprep.subr.bf16.mxu0 0
    %641 = vmatpush1.bf16.msra.mxu0 %v488
    %642 = vmatprep.subr.bf16.mxu0 0
    %643 = vmatpush1.bf16.msra.mxu0 %v489
    %644 = vmatprep.subr.bf16.mxu0 0
    %645 = vmatpush1.bf16.msra.mxu0 %v490
    %646 = vmatprep.subr.bf16.mxu0 0
    %647 = vmatpush1.bf16.msra.mxu0 %v491
    %648 = vmatprep.subr.bf16.mxu0 0
    %649 = vmatpush1.bf16.msra.mxu0 %v492
    %650 = vmatprep.subr.bf16.mxu0 0
    %651 = vmatpush1.bf16.msra.mxu0 %v493
    %652 = vmatprep.subr.bf16.mxu0 0
    %653 = vmatpush1.bf16.msra.mxu0 %v494
    %654 = vmatprep.subr.bf16.mxu0 0
    %655 = vmatpush1.bf16.msra.mxu0 %v495
    %656 = vmatprep.subr.bf16.mxu0 0
    %657 = vmatpush1.bf16.msra.mxu0 %v496
    %658 = vmatprep.subr.bf16.mxu0 0
    %659 = vmatpush1.bf16.msra.mxu0 %v497
    %660 = vmatprep.subr.bf16.mxu0 0
    %661 = vmatpush1.bf16.msra.mxu0 %v498
    %662 = vmatprep.subr.bf16.mxu0 0
    %663 = vmatpush1.bf16.msra.mxu0 %v499
    %664 = vmatprep.subr.bf16.mxu0 0
    %665 = vmatpush1.bf16.msra.mxu0 %v500
    %666 = vmatprep.subr.bf16.mxu0 0
    %667 = vmatpush1.bf16.msra.mxu0 %v501
    %668 = vmatprep.subr.bf16.mxu0 0
    %669 = vmatpush1.bf16.msra.mxu0 %v502
    %670 = vmatprep.subr.bf16.mxu0 0
    %671 = vmatpush1.bf16.msra.mxu0 %v503
    %672 = vmatprep.mubr.bf16.mxu0 %v206
    %673 = vmatmul.mubr.bf16.gmra.mrb[0].mxu0 %v204
    %v674 = vpop.f32.mrb[0].mxu0
    %v675 = vadd.f32 %v635, %v674
    %v676 = vpop.f32.mrb[0].mxu0
    %v677 = vpop.f32.mrb[0].mxu0
    %v678 = vpop.f32.mrb[0].mxu0
    %679 = vdwg.mxu0
    %680 = vmatprep.subr.bf16.mxu0 0
    %681 = vmatpush1.bf16.msra.mxu0 %v504
    %682 = vmatprep.subr.bf16.mxu0 0
    %683 = vmatpush1.bf16.msra.mxu0 %v505
    %684 = vmatprep.subr.bf16.mxu0 0
    %685 = vmatpush1.bf16.msra.mxu0 %v506
    %686 = vmatprep.subr.bf16.mxu0 0
    %687 = vmatpush1.bf16.msra.mxu0 %v507
    %688 = vmatprep.subr.bf16.mxu0 0
    %689 = vmatpush1.bf16.msra.mxu0 %v508
    %690 = vmatprep.subr.bf16.mxu0 0
    %691 = vmatpush1.bf16.msra.mxu0 %v509
    %692 = vmatprep.subr.bf16.mxu0 0
    %693 = vmatpush1.bf16.msra.mxu0 %v510
    %694 = vmatprep.subr.bf16.mxu0 0
    %695 = vmatpush1.bf16.msra.mxu0 %v511
    %696 = vmatprep.subr.bf16.mxu0 0
    %697 = vmatpush1.bf16.msra.mxu0 %v512
    %698 = vmatprep.subr.bf16.mxu0 0
    %699 = vmatpush1.bf16.msra.mxu0 %v513
    %700 = vmatprep.subr.bf16.mxu0 0
    %701 = vmatpush1.bf16.msra.mxu0 %v514
    %702 = vmatprep.subr.bf16.mxu0 0
    %703 = vmatpush1.bf16.msra.mxu0 %v515
    %704 = vmatprep.subr.bf16.mxu0 0
    %705 = vmatpush1.bf16.msra.mxu0 %v516
    %706 = vmatprep.subr.bf16.mxu0 0
    %707 = vmatpush1.bf16.msra.mxu0 %v517
    %708 = vmatprep.subr.bf16.mxu0 0
    %709 = vmatpush1.bf16.msra.mxu0 %v518
    %710 = vmatprep.subr.bf16.mxu0 0
    %711 = vmatpush1.bf16.msra.mxu0 %v519
    %712 = vmatprep.mubr.bf16.mxu0 %v203
    %713 = vmatmul.mubr.bf16.gmra.mrb[0].mxu0 %v189
    %v714 = vpop.f32.mrb[0].mxu0
    %v715 = vadd.f32 %v675, %v714
    %v716 = vpop.f32.mrb[0].mxu0
    %v717 = vpop.f32.mrb[0].mxu0
    %v718 = vpop.f32.mrb[0].mxu0
    %719 = vdwg.mxu0
    %720 = vmatprep.subr.bf16.mxu0 0
    %721 = vmatpush1.bf16.msra.mxu0 %v520
    %722 = vmatprep.subr.bf16.mxu0 0
    %723 = vmatpush1.bf16.msra.mxu0 %v521
    %724 = vmatprep.subr.bf16.mxu0 0
    %725 = vmatpush1.bf16.msra.mxu0 %v522
    %726 = vmatprep.subr.bf16.mxu0 0
    %727 = vmatpush1.bf16.msra.mxu0 %v523
    %728 = vmatprep.subr.bf16.mxu0 0
    %729 = vmatpush1.bf16.msra.mxu0 %v524
    %730 = vmatprep.subr.bf16.mxu0 0
    %731 = vmatpush1.bf16.msra.mxu0 %v525
    %732 = vmatprep.subr.bf16.mxu0 0
    %733 = vmatpush1.bf16.msra.mxu0 %v526
    %734 = vmatprep.subr.bf16.mxu0 0
    %735 = vmatpush1.bf16.msra.mxu0 %v527
    %736 = vmatprep.subr.bf16.mxu0 0
    %737 = vmatpush1.bf16.msra.mxu0 %v528
    %738 = vmatprep.subr.bf16.mxu0 0
    %739 = vmatpush1.bf16.msra.mxu0 %v529
    %740 = vmatprep.subr.bf16.mxu0 0
    %741 = vmatpush1.bf16.msra.mxu0 %v530
    %742 = vmatprep.subr.bf16.mxu0 0
    %743 = vmatpush1.bf16.msra.mxu0 %v531
    %744 = vmatprep.subr.bf16.mxu0 0
    %745 = vmatpush1.bf16.msra.mxu0 %v532
    %746 = vmatprep.subr.bf16.mxu0 0
    %747 = vmatpush1.bf16.msra.mxu0 %v533
    %748 = vmatprep.subr.bf16.mxu0 0
    %749 = vmatpush1.bf16.msra.mxu0 %v534
    %750 = vmatprep.subr.bf16.mxu0 0
    %751 = vmatpush1.bf16.msra.mxu0 %v535
    %752 = vmatprep.mubr.bf16.mxu0 %v207
    %753 = vmatmul.mubr.bf16.gmra.mrb[0].mxu0 %v205
    %v754 = vpop.f32.mrb[0].mxu0
    %v755 = vadd.f32 %v715, %v754
    %v756 = vpop.f32.mrb[0].mxu0
    %v757 = vpop.f32.mrb[0].mxu0
    %v758 = vpop.f32.mrb[0].mxu0
    %759 = vdwg.mxu0
    %v760 = vmax.f32 %v755, 0.0
    %v761 = vpack.c.bf16 %v760, %v760
    %v762 = vld [vmem:[%s3] sm:$0xf]
    %v763 = vld [vmem:[%s3 + $0x4] sm:$0xf]
    %v764 = vld [vmem:[%s3 + $0x8] sm:$0xf]
    %v765 = vld [vmem:[%s3 + $0xc] sm:$0xf]
    %v766 = vld [vmem:[%s4] sm:$0x1]
    %v768 = vlaneseq
    %v769 = vshrl.u32 %v768, 7
    %v770 = vsub.s32 0, %v769
    %v771 = vrot.slane %v766, %v770
    %v777 = vunpack.c.l.b16 %v762
    %v778 = vunpack.c.l.b16 %v763
    %v779 = vunpack.c.l.b16 %v764
    %v780 = vunpack.c.l.b16 %v765
    %v781 = vpack.c.b16 %v778, %v777
    %v782 = vpack.c.b16 %v780, %v779
    %vm785 = vcmask 261120
    %v787 = vsel %vm785, %v761, 0
    %789 = vmatprep.subr.bf16.mxu0 0
    %790 = vmatpush1.bf16.msra.mxu0 %v781
    %791 = vmatprep.subr.bf16.mxu0 0
    %792 = vmatpush1.bf16.msra.mxu0 %v782
    %793 = vmatprep.subr.bf16.mxu0 0
    %794 = vmatpush1.bf16.msra.mxu0 0
    %795 = vmatprep.subr.bf16.mxu0 0
    %796 = vmatpush1.bf16.msra.mxu0 0
    %797 = vmatprep.subr.bf16.mxu0 0
    %798 = vmatpush1.bf16.msra.mxu0 0
    %799 = vmatprep.subr.bf16.mxu0 0
    %800 = vmatpush1.bf16.msra.mxu0 0
    %801 = vmatprep.subr.bf16.mxu0 0
    %802 = vmatpush1.bf16.msra.mxu0 0
    %803 = vmatprep.subr.bf16.mxu0 0
    %804 = vmatpush1.bf16.msra.mxu0 0
    %805 = vmatprep.subr.bf16.mxu0 0
    %806 = vmatpush1.bf16.msra.mxu0 0
    %807 = vmatprep.subr.bf16.mxu0 0
    %808 = vmatpush1.bf16.msra.mxu0 0
    %809 = vmatprep.subr.bf16.mxu0 0
    %810 = vmatpush1.bf16.msra.mxu0 0
    %811 = vmatprep.subr.bf16.mxu0 0
    %812 = vmatpush1.bf16.msra.mxu0 0
    %813 = vmatprep.subr.bf16.mxu0 0
    %814 = vmatpush1.bf16.msra.mxu0 0
    %815 = vmatprep.subr.bf16.mxu0 0
    %816 = vmatpush1.bf16.msra.mxu0 0
    %817 = vmatprep.subr.bf16.mxu0 0
    %818 = vmatpush1.bf16.msra.mxu0 0
    %819 = vmatprep.subr.bf16.mxu0 0
    %820 = vmatpush1.bf16.msra.mxu0 0
    %821 = vmatprep.mubr.bf16.mxu0 0
    %822 = vmatmul.mubr.bf16.gmra.mrb[0].mxu0 %v787
    %v823 = vpop.f32.mrb[0].mxu0
    %v824 = vadd.f32 %v771, %v823
    %v825 = vpop.f32.mrb[0].mxu0
    %v826 = vpop.f32.mrb[0].mxu0
    %v827 = vpop.f32.mrb[0].mxu0
    %828 = vdwg.mxu0
    %vm829 = vcmask 74752
    %830 = vst.msk [vmem:[#allocation2] sm:$0x3] %vm829, %v824
    // Predicated region
    $region22: #{convnet_forward.5} parent=1 // pred_check
      _
    $region23: #{convnet_forward.5} parent=1 // pred_check_branch
      %832 = sbr.rel (0) target = $region25
    $region24: #{convnet_forward.5} parent=1 // pred_region
      %s834 = ssub.s32 32, 32
      %835 = vsyncadd [#allocation3], %s834
      %s837 = sshll.u32 [#allocation2], 4
      %s838 = int_to_ptr.vmem [resolvable:$true] %s837
      %840 = dma.vmem_to_hbm [thread:$0]  %s838, 32, %s5, [#allocation3]
    $region25: #{convnet_forward.5} parent=1 // pred_fallthru
      _
    // Predicated region
    $region26: #{convnet_forward.5} parent=1 // pred_check
      _
    $region27: #{convnet_forward.5} parent=1 // pred_check_branch
      %842 = sbr.rel (0) target = $region29
    $region28: #{convnet_forward.5} parent=1 // pred_region
      %843 = dma.done [#allocation3], 32
    $region29: #{convnet_forward.5} parent=1 // pred_fallthru
      _
    %844 = vsyncpa [#allocation3], 1

</llo_original>
